<compile_context>
chip_gen: v6e
topology: v6e:2x2x1
jax: 0.10.0
libtpu: 0.0.40
codegen_flags: <defaults>
</compile_context>

<pallas_src>
import math
from functools import partial

import jax
import jax.numpy as jnp
from jax import lax
from jax.experimental import pallas as pl
from jax.experimental.pallas import tpu as pltpu


# ----------------------------------------------------------------------------------
# generation-aware sizing
# ----------------------------------------------------------------------------------
def _tpu_vmem_bytes():
    try:
        return int(pltpu.get_tpu_info().vmem_capacity_bytes)
    except Exception:
        return 64 * 1024 * 1024        # conservative (v7x-sized) fallback


_VMEM_BYTES = _tpu_vmem_bytes()
_TN_MAX = 512 if _VMEM_BYTES >= (96 << 20) else 256            # row tile (v5e/v6e vs v7x)
_VMEM_LIMIT = min(int(_VMEM_BYTES * 7 // 10), 100 * 1024 * 1024)


def _row_plan(n):
    """Return (row_tile, padded_rows). Single block when n fits in one tile."""
    if n <= _TN_MAX:
        return n, n
    tn = _TN_MAX
    return tn, ((n + tn - 1) // tn) * tn


def _k_plan(k):
    """Return (k_tile, padded_k) for the forget contraction dim."""
    if k <= 2048:
        return k, k
    tk = 512
    return tk, ((k + tk - 1) // tk) * tk


def _pad_rows(x, n_pad):
    n = x.shape[0]
    if n == n_pad:
        return x
    pad = [(0, n_pad - n)] + [(0, 0)] * (x.ndim - 1)
    return jnp.pad(x, pad)


# ----------------------------------------------------------------------------------
# init helpers
# ----------------------------------------------------------------------------------
def xavier_uniform(key, shape):
    fan_out, fan_in = shape[0], shape[1]
    a = math.sqrt(6.0 / (fan_in + fan_out))
    return jax.random.uniform(key, shape, jnp.float32, -a, a)


def small_uniform(key, shape, scale):
    return jax.random.uniform(key, shape, jnp.float32, -scale, scale)


def multi_hot(c, num_skill):
    # torch: eye(S+1)[c][..., :-1].sum(-2)   (c == -1 contributes nothing; duplicates count)
    return (c[..., None] == jnp.arange(num_skill)).sum(axis=-2).astype(jnp.bfloat16)


# ----------------------------------------------------------------------------------
# shared in-kernel attention (torch: softmax over all S, including zero-score skills)
# ----------------------------------------------------------------------------------
def _attention(q_bf, cv1, ske_t_bf, ske_bf, scale):
    qk = jnp.dot(q_bf, ske_t_bf, preferred_element_type=jnp.float32)        # (tn, S)
    scores = qk * cv1 * scale
    m = jnp.max(scores, axis=-1, keepdims=True)
    ex = jnp.exp(scores - m)
    p = ex * pl.reciprocal(jnp.sum(ex, axis=-1, keepdims=True), approx=True)
    return jnp.dot((p * cv1).astype(jnp.bfloat16), ske_bf,
                   preferred_element_type=jnp.float32)                       # (tn, E) f32


# ----------------------------------------------------------------------------------
# Kernel 1: concept attention + linear2 + input-LSTM input projection (fused epilogue)
# ----------------------------------------------------------------------------------
def _concept_pregates_kernel(qr_ref, cv1_ref, ske_t_ref, ske_ref,
                             w2qr_ref, w2c_ref, b2_ref, wih_ref, bl_ref,
                             o_ref, *, scale, edim):
    qr = qr_ref[...]                                                         # (tn, 2E) bf16
    q = qr[:, :edim]
    concept = _attention(q, cv1_ref[...], ske_t_ref[...], ske_ref[...], scale)
    xemb = (jnp.dot(qr, w2qr_ref[...], preferred_element_type=jnp.float32)
            + jnp.dot(concept.astype(jnp.bfloat16), w2c_ref[...],
                      preferred_element_type=jnp.float32)
            + b2_ref[...])
    pre = (jnp.dot(xemb.astype(jnp.bfloat16), wih_ref[...],
                   preferred_element_type=jnp.float32) + bl_ref[...])        # (tn, 4H)
    o_ref[...] = pre.astype(o_ref.dtype)


def concept_pregates(qr, cv1, ske_t, ske, w2qr, w2c, b2, wih, b_lstm, *, tn):
    Np, twoE = qr.shape
    E = twoE // 2
    S = cv1.shape[1]
    G = wih.shape[1]                                                          # 4H
    row = lambda i: (i, 0)
    rep = lambda i: (0, 0)
    return pl.pallas_call(
        partial(_concept_pregates_kernel, scale=1.0 / math.sqrt(E), edim=E),
        out_shape=jax.ShapeDtypeStruct((Np, G), jnp.bfloat16),
        grid=(Np // tn,),
        in_specs=[pl.BlockSpec((tn, twoE), row), pl.BlockSpec((tn, S), row),
                  pl.BlockSpec((E, S), rep), pl.BlockSpec((S, E), rep),
                  pl.BlockSpec((twoE, E), rep), pl.BlockSpec((E, E), rep),
                  pl.BlockSpec((1, E), rep),
                  pl.BlockSpec((E, G), rep), pl.BlockSpec((1, G), rep)],
        out_specs=pl.BlockSpec((tn, G), row),
        compiler_params=pltpu.CompilerParams(
            dimension_semantics=("parallel",), vmem_limit_bytes=_VMEM_LIMIT),
    )(qr, cv1, ske_t, ske, w2qr, w2c, b2, wih, b_lstm)


# ----------------------------------------------------------------------------------
# Kernel 2: shift attention + linear3 (shift path, no response emb, no LSTM fuse)
# ----------------------------------------------------------------------------------
def _shift_linear_kernel(q_ref, cv1_ref, ske_t_ref, ske_ref,
                         wq_ref, wc_ref, b_ref, o_ref, *, scale):
    q = q_ref[...]
    concept = _attention(q, cv1_ref[...], ske_t_ref[...], ske_ref[...], scale)
    out = (jnp.dot(q, wq_ref[...], preferred_element_type=jnp.float32)
           + jnp.dot(concept.astype(jnp.bfloat16), wc_ref[...],
                     preferred_element_type=jnp.float32)
           + b_ref[...])
    o_ref[...] = out.astype(o_ref.dtype)


def shift_linear(q_emb, cv1, ske_t, ske, wq, wc, b, *, tn):
    Np, E = q_emb.shape
    S = cv1.shape[1]
    row = lambda i: (i, 0)
    rep = lambda i: (0, 0)
    return pl.pallas_call(
        partial(_shift_linear_kernel, scale=1.0 / math.sqrt(E)),
        out_shape=jax.ShapeDtypeStruct((Np, E), jnp.bfloat16),
        grid=(Np // tn,),
        in_specs=[pl.BlockSpec((tn, E), row), pl.BlockSpec((tn, S), row),
                  pl.BlockSpec((E, S), rep), pl.BlockSpec((S, E), rep),
                  pl.BlockSpec((E, E), rep), pl.BlockSpec((E, E), rep),
                  pl.BlockSpec((1, E), rep)],
        out_specs=pl.BlockSpec((tn, E), row),
        compiler_params=pltpu.CompilerParams(
            dimension_semantics=("parallel",), vmem_limit_bytes=_VMEM_LIMIT),
    )(q_emb, cv1, ske_t, ske, wq, wc, b)


# ----------------------------------------------------------------------------------
# Kernel 3: ForgetIntegration hot path, K-tiled:
#   theta = g2 @ WcM + fv2 @ Wfv + b_pre     (accumulated over K tiles)
#   optionally fused: out = theta @ W_ih(forget LSTM) + b_lstm   (pre-gates)
# ----------------------------------------------------------------------------------
def _forget_kernel(*refs, fuse):
    if fuse:
        (g2_ref, fv2_ref, wcm_ref, wfv_ref, bpre_ref,
         wih_ref, bl_ref, o_ref, acc_ref) = refs
    else:
        (g2_ref, fv2_ref, wcm_ref, wfv_ref, bpre_ref, o_ref, acc_ref) = refs

    @pl.when(pl.program_id(1) == 0)
    def _():
        acc_ref[...] = jnp.zeros_like(acc_ref)

    acc_ref[...] += (jnp.dot(g2_ref[...], wcm_ref[...], preferred_element_type=jnp.float32)
                     + jnp.dot(fv2_ref[...], wfv_ref[...], preferred_element_type=jnp.float32))

    @pl.when(pl.program_id(1) == pl.num_programs(1) - 1)
    def _():
        theta = acc_ref[...] + bpre_ref[...]
        if fuse:
            pre = (jnp.dot(theta.astype(jnp.bfloat16), wih_ref[...],
                           preferred_element_type=jnp.float32) + bl_ref[...])
            o_ref[...] = pre.astype(o_ref.dtype)
        else:
            o_ref[...] = theta.astype(o_ref.dtype)


def forget_apply(g2_flat, fv2_flat, wcm, wfv, b_pre, tn, wih=None, b_lstm=None):
    Np, K_pad = g2_flat.shape
    E = wcm.shape[1]
    tk = K_pad if K_pad <= 2048 else 512
    kk = K_pad // tk
    fuse = wih is not None
    Gout = wih.shape[1] if fuse else E
    row = lambda i, k: (i, k)
    wrow = lambda i, k: (k, 0)
    rep = lambda i, k: (0, 0)
    in_specs = [pl.BlockSpec((tn, tk), row), pl.BlockSpec((tn, tk), row),
                pl.BlockSpec((tk, E), wrow), pl.BlockSpec((tk, E), wrow),
                pl.BlockSpec((1, E), rep)]
    args = [g2_flat, fv2_flat, wcm, wfv, b_pre]
    if fuse:
        in_specs += [pl.BlockSpec((E, Gout), rep), pl.BlockSpec((1, Gout), rep)]
        args += [wih, b_lstm]
    return pl.pallas_call(
        partial(_forget_kernel, fuse=fuse),
        out_shape=jax.ShapeDtypeStruct((Np, Gout), jnp.bfloat16),
        grid=(Np // tn, kk),
        in_specs=in_specs,
        out_specs=pl.BlockSpec((tn, Gout), lambda i, k: (i, 0)),
        scratch_shapes=[pltpu.VMEM((tn, E), jnp.float32)],
        compiler_params=pltpu.CompilerParams(
            dimension_semantics=("parallel", "arbitrary"),
            vmem_limit_bytes=_VMEM_LIMIT),
    )(*args)


def build_forget_inputs(c, rgaps, pcounts, acounts, cfg):
    """Returns (cv1-scaled fv2, fv2) flattened+K-padded (N, K_pad) in bf16."""
    B, L, MC = c.shape
    FL = cfg['forget_len']
    S = cfg['num_skill']
    nr = cfg['num_rgap'] + 5
    npc = cfg['num_pcount'] + 5
    nac = cfg['num_acount'] + 5
    bf = jnp.bfloat16
    rg = jnp.repeat(rgaps[..., None], FL, axis=3)                           # (B,L,MC,FL)
    emb_rg = jax.nn.one_hot(rg, nr, dtype=bf).reshape(B, L, MC, -1)
    emb_pc = jax.nn.one_hot(pcounts, npc, dtype=bf).reshape(B, L, MC, -1)
    emb_ac = jax.nn.one_hot(acounts, nac, dtype=bf).reshape(B, L, MC, -1)
    fv1 = jnp.concatenate([emb_rg, emb_pc, emb_ac], axis=-1)                # (B,L,MC,ntotal)
    ntotal = fv1.shape[-1]
    # TODO(synk): torch's python triple-loop scatter -> sequential per-concept scatters
    #             (last write wins, -1 dropped) in plain JAX.
    fv2 = jnp.zeros((B, L, S, ntotal), bf)
    b_idx, l_idx = jnp.meshgrid(jnp.arange(B), jnp.arange(L), indexing='ij')
    for m in range(MC):
        cm = jnp.where(c[:, :, m] < 0, S, c[:, :, m])                       # -1 -> OOB -> drop
        fv2 = fv2.at[b_idx, l_idx, cm].set(fv1[:, :, m], mode='drop')
    cv1 = multi_hot(c, S)                                                   # (B,L,S) bf16
    g2 = cv1[..., None] * fv2
    N = B * L
    K = S * ntotal
    _, K_pad = _k_plan(K)
    g2_flat = g2.reshape(N, K)
    fv2_flat = fv2.reshape(N, K)
    if K_pad != K:
        padw = ((0, 0), (0, K_pad - K))
        g2_flat = jnp.pad(g2_flat, padw)
        fv2_flat = jnp.pad(fv2_flat, padw)
    return g2_flat, fv2_flat


# ----------------------------------------------------------------------------------
# Kernel 4: dual LSTM recurrence (input + forget LSTM).  Input projections are
# pre-computed; the time loop only does h_prev @ Whh(4H-wide) + pre-gates.
#   torch LSTM(batch_first=False) on a (B, L, E) tensor -> time axis is B, batch is L.
#   grid = (2, T): axis 0 parallel (one LSTM per core on v7x), axis 1 arbitrary with
#   h/c carried in VMEM scratch.
# ----------------------------------------------------------------------------------
def _dual_lstm_kernel(pre_ref, whh_ref, h_out_ref, h_sc, c_sc, *, hdim):
    @pl.when(pl.program_id(1) == 0)
    def _():
        h_sc[...] = jnp.zeros_like(h_sc)
        c_sc[...] = jnp.zeros_like(c_sc)

    h_prev = h_sc[...].astype(jnp.bfloat16)                                 # (Nb, H)
    preact = (pre_ref[0, 0].astype(jnp.float32)
              + jnp.dot(h_prev, whh_ref[0], preferred_element_type=jnp.float32))  # (Nb, 4H)
    i = jax.nn.sigmoid(preact[:, :hdim])
    f = jax.nn.sigmoid(preact[:, hdim:2 * hdim])
    g = jnp.tanh(preact[:, 2 * hdim:3 * hdim])
    o = jax.nn.sigmoid(preact[:, 3 * hdim:])
    c_new = f * c_sc[...] + i * g
    h_new = o * jnp.tanh(c_new)
    c_sc[...] = c_new
    h_sc[...] = h_new
    h_out_ref[0, 0] = h_new.astype(h_out_ref.dtype)


def dual_lstm(pre_all, whh_all):
    Lcnt, T, Nb, G = pre_all.shape                                          # Lcnt == 2, G == 4H
    H = G // 4
    return pl.pallas_call(
        partial(_dual_lstm_kernel, hdim=H),
        out_shape=jax.ShapeDtypeStruct((Lcnt, T, Nb, H), jnp.bfloat16),
        grid=(Lcnt, T),
        in_specs=[pl.BlockSpec((1, 1, Nb, G), lambda l, t: (l, t, 0, 0)),
                  pl.BlockSpec((1, H, G), lambda l, t: (l, 0, 0))],
        out_specs=pl.BlockSpec((1, 1, Nb, H), lambda l, t: (l, t, 0, 0)),
        scratch_shapes=[pltpu.VMEM((Nb, H), jnp.float32),
                        pltpu.VMEM((Nb, H), jnp.float32)],
        compiler_params=pltpu.CompilerParams(
            dimension_semantics=("parallel", "arbitrary"),
            vmem_limit_bytes=_VMEM_LIMIT),
    )(pre_all, whh_all)


# ----------------------------------------------------------------------------------
# Kernel 5: fused prediction head with lane-dense (1, N) output
#   x1 = relu(fc4(cat(shift, input_h))); x2 = relu(fc5(cat(shift_forget, forget_h)))
#   y  = sigmoid(fc3(cat(x1, x2)))
# ----------------------------------------------------------------------------------
def _head_kernel(sh_ref, ih_ref, sf_ref, fh_ref,
                 w4a_ref, w4b_ref, b4_ref, w5a_ref, w5b_ref, b5_ref,
                 w3a_ref, w3b_ref, b3_ref, y_ref):
    x1 = jnp.maximum(
        jnp.dot(sh_ref[...], w4a_ref[...], preferred_element_type=jnp.float32)
        + jnp.dot(ih_ref[...], w4b_ref[...], preferred_element_type=jnp.float32)
        + b4_ref[...], 0.0)
    x2 = jnp.maximum(
        jnp.dot(sf_ref[...], w5a_ref[...], preferred_element_type=jnp.float32)
        + jnp.dot(fh_ref[...], w5b_ref[...], preferred_element_type=jnp.float32)
        + b5_ref[...], 0.0)
    l1 = lax.dot_general(w3a_ref[...], x1.astype(jnp.bfloat16),
                         (((1,), (1,)), ((), ())), preferred_element_type=jnp.float32)
    l2 = lax.dot_general(w3b_ref[...], x2.astype(jnp.bfloat16),
                         (((1,), (1,)), ((), ())), preferred_element_type=jnp.float32)
    y_ref[...] = jax.nn.sigmoid(l1 + l2 + b3_ref[...])


def head_call(shift, input_h, shift_forget, forget_h, prep, tn):
    Np, E = shift.shape
    row = lambda i: (i, 0)
    rep = lambda i: (0, 0)
    return pl.pallas_call(
        _head_kernel,
        out_shape=jax.ShapeDtypeStruct((1, Np), jnp.float32),
        grid=(Np // tn,),
        in_specs=[pl.BlockSpec((tn, E), row)] * 4 +
                 [pl.BlockSpec((E, E), rep), pl.BlockSpec((E, E), rep),
                  pl.BlockSpec((1, E), rep),
                  pl.BlockSpec((E, E), rep), pl.BlockSpec((E, E), rep),
                  pl.BlockSpec((1, E), rep),
                  pl.BlockSpec((1, E), rep), pl.BlockSpec((1, E), rep),
                  pl.BlockSpec((1, 1), rep)],
        out_specs=pl.BlockSpec((1, tn), lambda i: (0, i)),
        compiler_params=pltpu.CompilerParams(
            dimension_semantics=("parallel",), vmem_limit_bytes=_VMEM_LIMIT),
    )(shift, input_h, shift_forget, forget_h,
      prep['w4a'], prep['w4b'], prep['b4'],
      prep['w5a'], prep['w5b'], prep['b5'],
      prep['w3a'], prep['w3b'], prep['b3'])


# ----------------------------------------------------------------------------------
# One-time parameter preparation (transposes / splits / folded forget weights / bf16)
# ----------------------------------------------------------------------------------
def prepare_params(p, cfg):
    E = cfg['emb_dim']
    S = cfg['num_skill']
    ntotal = cfg['ntotal']
    H = E
    bf = jnp.bfloat16
    prep = {}
    prep['emb_question'] = p['emb_question']
    prep['emb_response'] = p['emb_response']
    prep['ske'] = p['emb_skill'].astype(bf)                                 # (S, E)
    prep['ske_t'] = p['emb_skill'].T.astype(bf)                             # (E, S)

    w2 = p['linear2_w']                                                     # (E, 3E)
    prep['w2qr'] = w2[:, :2 * E].T.astype(bf)                               # (2E, E)
    prep['w2c'] = w2[:, 2 * E:].T.astype(bf)
    prep['b2'] = p['linear2_b'].reshape(1, E).astype(jnp.float32)

    w3 = p['linear3_w']                                                     # (E, 2E)
    prep['w3q'] = w3[:, :E].T.astype(bf)
    prep['w3c'] = w3[:, E:].T.astype(bf)
    prep['b3l'] = p['linear3_b'].reshape(1, E).astype(jnp.float32)

    # LSTMs: fused 4H-wide gate weights; the x@W_ih projection is hoisted to producers
    prep['wih_i'] = p['ilstm_wih'].T.astype(bf)                             # (E, 4H)
    prep['wih_f'] = p['flstm_wih'].T.astype(bf)
    prep['b_lstm_i'] = (p['ilstm_bih'] + p['ilstm_bhh']).reshape(1, 4 * H).astype(jnp.float32)
    prep['b_lstm_f'] = (p['flstm_bih'] + p['flstm_bhh']).reshape(1, 4 * H).astype(jnp.float32)
    prep['lstm_whh'] = jnp.stack([p['ilstm_whh'].T, p['flstm_whh'].T]).astype(bf)  # (2,H,4H)

    # ForgetIntegration folded weights:
    #   WcM[s] = cemb^T @ diag(ske[s]) @ Wtheta[s],  Wfv[s] = fv2 part of lstm_pre
    wc_t = p['cemb_w'].T                                                    # (ntotal, E)
    wpre3 = p['lstm_pre_w'].reshape(E, S, E + ntotal)
    wth = jnp.transpose(wpre3[:, :, :E], (1, 2, 0))                         # (S, E, Eout)
    m_all = p['emb_skill'][:, :, None] * wth
    wcm = jnp.einsum('ke,seo->sko', wc_t, m_all).reshape(S * ntotal, E)
    wfv = jnp.transpose(wpre3[:, :, E:], (1, 2, 0)).reshape(S * ntotal, E)
    K = S * ntotal
    _, K_pad = _k_plan(K)
    if K_pad != K:
        wcm = jnp.pad(wcm, ((0, K_pad - K), (0, 0)))
        wfv = jnp.pad(wfv, ((0, K_pad - K), (0, 0)))
    prep['forget_wcm'] = wcm.astype(bf)
    prep['forget_wfv'] = wfv.astype(bf)
    prep['forget_b'] = p['lstm_pre_b'].reshape(1, E).astype(jnp.float32)

    # head
    w4, w5, w3h = p['fc4_w'], p['fc5_w'], p['fc3_w']
    prep['w4a'] = w4[:, :E].T.astype(bf)
    prep['w4b'] = w4[:, E:].T.astype(bf)
    prep['b4'] = p['fc4_b'].reshape(1, E).astype(jnp.float32)
    prep['w5a'] = w5[:, :E].T.astype(bf)
    prep['w5b'] = w5[:, E:].T.astype(bf)
    prep['b5'] = p['fc5_b'].reshape(1, E).astype(jnp.float32)
    prep['w3a'] = w3h[:, :E].reshape(1, E).astype(bf)
    prep['w3b'] = w3h[:, E:].reshape(1, E).astype(bf)
    prep['b3'] = p['fc3_b'].reshape(1, 1).astype(jnp.float32)
    return prep


# ----------------------------------------------------------------------------------
# Full forward
# ----------------------------------------------------------------------------------
def dkt_forget_total_forward(prep, q, c, shift_q, shift_c, r, dgaps, cfg):
    B, L = q.shape
    E = cfg['emb_dim']
    S = cfg['num_skill']
    H = E
    N = B * L
    tn, n_pad = _row_plan(N)
    bf = jnp.bfloat16

    emb_q = prep['emb_question'][q].reshape(N, E)
    emb_r = prep['emb_response'][r].reshape(N, E)
    qr = jnp.concatenate([emb_q, emb_r], axis=-1).astype(bf)                # (N, 2E)
    shift_emb = prep['emb_question'][shift_q].reshape(N, E).astype(bf)
    cv1_c = multi_hot(c, S).reshape(N, S)                                   # bf16 counts
    cv1_sc = multi_hot(shift_c, S).reshape(N, S)

    qr_p = _pad_rows(qr, n_pad)
    cv1_c_p = _pad_rows(cv1_c, n_pad)
    shift_p = _pad_rows(shift_emb, n_pad)
    cv1_sc_p = _pad_rows(cv1_sc, n_pad)

    # concept attention + linear2 + input-LSTM input projection (fused)
    in_pre = concept_pregates(qr_p, cv1_c_p, prep['ske_t'], prep['ske'],
                              prep['w2qr'], prep['w2c'], prep['b2'],
                              prep['wih_i'], prep['b_lstm_i'], tn=tn)        # (n_pad, 4H)
    # shift attention + linear3
    shift = shift_linear(shift_p, cv1_sc_p, prep['ske_t'], prep['ske'],
                         prep['w3q'], prep['w3c'], prep['b3l'], tn=tn)       # (n_pad, E)

    # ForgetIntegration (c path fused with forget-LSTM input projection; shift path plain)
    g2_a, fv2_a = build_forget_inputs(c, dgaps['rgaps'], dgaps['pcounts'],
                                      dgaps['acounts'], cfg)
    g2_b, fv2_b = build_forget_inputs(shift_c, dgaps['shft_rgaps'], dgaps['shft_pcounts'],
                                      dgaps['shft_acounts'], cfg)
    fg_pre = forget_apply(_pad_rows(g2_a, n_pad), _pad_rows(fv2_a, n_pad),
                          prep['forget_wcm'], prep['forget_wfv'], prep['forget_b'],
                          tn, prep['wih_f'], prep['b_lstm_f'])               # (n_pad, 4H)
    shift_forget = forget_apply(_pad_rows(g2_b, n_pad), _pad_rows(fv2_b, n_pad),
                                prep['forget_wcm'], prep['forget_wfv'], prep['forget_b'],
                                tn)                                          # (n_pad, E)

    # dual LSTM recurrence (torch LSTM is batch_first=False on (B, L, .) -> time axis B)
    pre_all = jnp.stack([in_pre[:N].reshape(B, L, 4 * H),
                         fg_pre[:N].reshape(B, L, 4 * H)], axis=0)           # (2,B,L,4H) bf16
    h_all = dual_lstm(pre_all, prep['lstm_whh'])                             # (2,B,L,H) bf16
    input_h = h_all[0].reshape(N, H)       # dropout == identity (eval)
    forget_h = h_all[1].reshape(N, H)      # dropout == identity (eval)

    y = head_call(shift, _pad_rows(input_h, n_pad),
                  shift_forget, _pad_rows(forget_h, n_pad), prep, tn)        # (1, n_pad)
    return y[0, :N].reshape(B, L)


# ----------------------------------------------------------------------------------
# Deterministic parameter init (shapes follow the torch __init__)
# ----------------------------------------------------------------------------------
def init_params(key, cfg):
    E = cfg['emb_dim']
    S = cfg['num_skill']
    Q = cfg['num_question']
    ntotal = cfg['ntotal']
    ks = jax.random.split(key, 32)
    p = {}
    p['emb_skill'] = xavier_uniform(ks[0], (S, E))
    p['emb_question'] = xavier_uniform(ks[1], (Q, E))
    p['emb_response'] = xavier_uniform(ks[2], (2, E))
    # input LSTM
    p['ilstm_wih'] = xavier_uniform(ks[3], (4 * E, E))
    p['ilstm_whh'] = xavier_uniform(ks[4], (4 * E, E))
    p['ilstm_bih'] = small_uniform(ks[5], (4 * E,), 1.0 / math.sqrt(E))
    p['ilstm_bhh'] = small_uniform(ks[6], (4 * E,), 1.0 / math.sqrt(E))
    # forget LSTM
    p['flstm_wih'] = xavier_uniform(ks[7], (4 * E, E))
    p['flstm_whh'] = xavier_uniform(ks[8], (4 * E, E))
    p['flstm_bih'] = small_uniform(ks[9], (4 * E,), 1.0 / math.sqrt(E))
    p['flstm_bhh'] = small_uniform(ks[10], (4 * E,), 1.0 / math.sqrt(E))
    # linears actually used in forward
    p['linear2_w'] = xavier_uniform(ks[11], (E, 3 * E))
    p['linear2_b'] = small_uniform(ks[12], (E,), 1.0 / math.sqrt(3 * E))
    p['linear3_w'] = xavier_uniform(ks[13], (E, 2 * E))
    p['linear3_b'] = small_uniform(ks[14], (E,), 1.0 / math.sqrt(2 * E))
    p['fc3_w'] = xavier_uniform(ks[15], (1, 2 * E))
    p['fc3_b'] = small_uniform(ks[16], (1,), 1.0 / math.sqrt(2 * E))
    p['fc4_w'] = xavier_uniform(ks[17], (E, 2 * E))
    p['fc4_b'] = small_uniform(ks[18], (E,), 1.0 / math.sqrt(2 * E))
    p['fc5_w'] = xavier_uniform(ks[19], (E, 2 * E))
    p['fc5_b'] = small_uniform(ks[20], (E,), 1.0 / math.sqrt(2 * E))
    # ForgetIntegration
    p['cemb_w'] = xavier_uniform(ks[21], (E, ntotal))                       # Linear(ntotal,E,bias=False)
    p['lstm_pre_w'] = xavier_uniform(ks[22], (E, S * (E + ntotal)))
    p['lstm_pre_b'] = small_uniform(ks[23], (E,), 1.0 / math.sqrt(S * (E + ntotal)))
    return p


# ----------------------------------------------------------------------------------
# main
# ----------------------------------------------------------------------------------
if __name__ == "__main__":
    B, L, MC = 2, 8, 3
    cfg = dict(num_question=20, num_skill=8, num_rgap=4, num_pcount=4, num_acount=4,
               emb_dim=32)
    forget_window = (1, 7)
    cfg['forget_len'] = len(forget_window) + 1
    cfg['ntotal'] = cfg['forget_len'] * (cfg['num_rgap'] + cfg['num_pcount']
                                         + cfg['num_acount'] + 15)

    root = jax.random.PRNGKey(0)
    pkey, dkey = jax.random.split(root)
    params = init_params(pkey, cfg)
    prep = prepare_params(params, cfg)           # weight transposes/folds once, outside jit

    dk = jax.random.split(dkey, 12)
    q = jax.random.randint(dk[0], (B, L), 0, cfg['num_question'], dtype=jnp.int32)
    shift_q = jax.random.randint(dk[1], (B, L), 0, cfg['num_question'], dtype=jnp.int32)
    r = jax.random.randint(dk[2], (B, L), 0, 2, dtype=jnp.int32)
    c = jax.random.randint(dk[3], (B, L, MC), -1, cfg['num_skill'], dtype=jnp.int32)
    shift_c = jax.random.randint(dk[4], (B, L, MC), -1, cfg['num_skill'], dtype=jnp.int32)
    FL = cfg['forget_len']
    dgaps = {
        'rgaps': jax.random.randint(dk[5], (B, L, MC), 0, cfg['num_rgap'] + 5, dtype=jnp.int32),
        'pcounts': jax.random.randint(dk[6], (B, L, MC, FL), 0, cfg['num_pcount'] + 5, dtype=jnp.int32),
        'acounts': jax.random.randint(dk[7], (B, L, MC, FL), 0, cfg['num_acount'] + 5, dtype=jnp.int32),
        'shft_rgaps': jax.random.randint(dk[8], (B, L, MC), 0, cfg['num_rgap'] + 5, dtype=jnp.int32),
        'shft_pcounts': jax.random.randint(dk[9], (B, L, MC, FL), 0, cfg['num_pcount'] + 5, dtype=jnp.int32),
        'shft_acounts': jax.random.randint(dk[10], (B, L, MC, FL), 0, cfg['num_acount'] + 5, dtype=jnp.int32),
    }

    fwd = jax.jit(lambda pp, q_, c_, sq_, sc_, r_, dg_:
                  dkt_forget_total_forward(pp, q_, c_, sq_, sc_, r_, dg_, cfg))
    y = fwd(prep, q, c, shift_q, shift_c, r, dgaps)
    y = jax.block_until_ready(y)
    assert y.shape == (B, L), y.shape
    assert bool(jnp.all(jnp.isfinite(y)))
    assert bool(jnp.all((y >= 0.0) & (y <= 1.0)))
    print("KERNEL_OK")
</pallas_src>

<mosaic_0001>
module attributes {stable_mosaic.version = 11 : i64} {
  func.func @_shift_linear_kernel(%arg0: i32, %arg1: memref<16x32xbf16, #tpu.memory_space<vmem>>, %arg2: memref<16x8xbf16, #tpu.memory_space<vmem>>, %arg3: memref<32x8xbf16, #tpu.memory_space<vmem>>, %arg4: memref<8x32xbf16, #tpu.memory_space<vmem>>, %arg5: memref<32x32xbf16, #tpu.memory_space<vmem>>, %arg6: memref<32x32xbf16, #tpu.memory_space<vmem>>, %arg7: memref<1x32xf32, #tpu.memory_space<vmem>>, %arg8: memref<16x32xbf16, #tpu.memory_space<vmem>>) attributes {dimension_semantics = [#tpu.dimension_semantics<parallel>], iteration_bounds = array<i64: 1>, scalar_prefetch = 0 : i64, scratch_operands = 0 : i64, tpu.core_type = #tpu.core_type<tc>, window_params = [{transform_indices = @transform_0, window_bounds = array<i64: 16, 32>}, {transform_indices = @transform_1, window_bounds = array<i64: 16, 8>}, {pipeline_mode = #tpu.pipeline_mode<synchronous>, transform_indices = @transform_2, window_bounds = array<i64: 32, 8>}, {pipeline_mode = #tpu.pipeline_mode<synchronous>, transform_indices = @transform_3, window_bounds = array<i64: 8, 32>}, {pipeline_mode = #tpu.pipeline_mode<synchronous>, transform_indices = @transform_4, window_bounds = array<i64: 32, 32>}, {pipeline_mode = #tpu.pipeline_mode<synchronous>, transform_indices = @transform_5, window_bounds = array<i64: 32, 32>}, {pipeline_mode = #tpu.pipeline_mode<synchronous>, transform_indices = @transform_6, window_bounds = array<i64: 1, 32>}, {transform_indices = @transform_7, window_bounds = array<i64: 16, 32>}]} {
    %c0 = arith.constant 0 : index
    %c0_0 = arith.constant 0 : index
    %0 = vector.load %arg1[%c0, %c0_0] : memref<16x32xbf16, #tpu.memory_space<vmem>>, vector<16x32xbf16>
    %c0_1 = arith.constant 0 : index
    %c0_2 = arith.constant 0 : index
    %1 = vector.load %arg2[%c0_1, %c0_2] : memref<16x8xbf16, #tpu.memory_space<vmem>>, vector<16x8xbf16>
    %c0_3 = arith.constant 0 : index
    %c0_4 = arith.constant 0 : index
    %2 = vector.load %arg3[%c0_3, %c0_4] : memref<32x8xbf16, #tpu.memory_space<vmem>>, vector<32x8xbf16>
    %c0_5 = arith.constant 0 : index
    %c0_6 = arith.constant 0 : index
    %3 = vector.load %arg4[%c0_5, %c0_6] : memref<8x32xbf16, #tpu.memory_space<vmem>>, vector<8x32xbf16>
    %cst = arith.constant dense<0.000000e+00> : vector<16x8xf32>
    %4 = tpu.matmul %0, %2, %cst {dimension_numbers = #tpu.dot_dimension_numbers<[1], [0], [0], [1], [0, 0, 1, 1], [], []>} : vector<16x32xbf16>, vector<32x8xbf16>, vector<16x8xf32> -> vector<16x8xf32>
    %5 = arith.extf %1 : vector<16x8xbf16> to vector<16x8xf32>
    %6 = arith.mulf %4, %5 : vector<16x8xf32>
    %cst_7 = arith.constant 0.176776692 : f32
    %7 = vector.broadcast %cst_7 : f32 to vector<16x8xf32>
    %8 = arith.mulf %6, %7 : vector<16x8xf32>
    %cst_8 = arith.constant dense<0xFF800000> : vector<16xf32>
    %9 = vector.multi_reduction <maximumf>, %8, %cst_8 [1] : vector<16x8xf32> to vector<16xf32>
    %10 = vector.shape_cast %9 : vector<16xf32> to vector<16x1xf32>
    %11 = vector.broadcast %10 : vector<16x1xf32> to vector<16x8xf32>
    %12 = arith.subf %8, %11 : vector<16x8xf32>
    %13 = math.exp %12 : vector<16x8xf32>
    %cst_9 = arith.constant dense<0.000000e+00> : vector<16xf32>
    %14 = vector.multi_reduction <add>, %13, %cst_9 [1] : vector<16x8xf32> to vector<16xf32>
    %15 = vector.shape_cast %14 : vector<16xf32> to vector<16x1xf32>
    %16 = tpu.reciprocal %15 {approx = true} : vector<16x1xf32> -> vector<16x1xf32>
    %17 = vector.broadcast %16 : vector<16x1xf32> to vector<16x8xf32>
    %18 = arith.mulf %13, %17 : vector<16x8xf32>
    %19 = arith.extf %1 : vector<16x8xbf16> to vector<16x8xf32>
    %20 = arith.mulf %18, %19 : vector<16x8xf32>
    %21 = arith.truncf %20 : vector<16x8xf32> to vector<16x8xbf16>
    %cst_10 = arith.constant dense<0.000000e+00> : vector<16x32xf32>
    %22 = tpu.matmul %21, %3, %cst_10 {dimension_numbers = #tpu.dot_dimension_numbers<[1], [0], [0], [1], [0, 0, 1, 1], [], []>} : vector<16x8xbf16>, vector<8x32xbf16>, vector<16x32xf32> -> vector<16x32xf32>
    %c0_11 = arith.constant 0 : index
    %c0_12 = arith.constant 0 : index
    %23 = vector.load %arg5[%c0_11, %c0_12] : memref<32x32xbf16, #tpu.memory_space<vmem>>, vector<32x32xbf16>
    %cst_13 = arith.constant dense<0.000000e+00> : vector<16x32xf32>
    %24 = tpu.matmul %0, %23, %cst_13 {dimension_numbers = #tpu.dot_dimension_numbers<[1], [0], [0], [1], [0, 0, 1, 1], [], []>} : vector<16x32xbf16>, vector<32x32xbf16>, vector<16x32xf32> -> vector<16x32xf32>
    %25 = arith.truncf %22 : vector<16x32xf32> to vector<16x32xbf16>
    %c0_14 = arith.constant 0 : index
    %c0_15 = arith.constant 0 : index
    %26 = vector.load %arg6[%c0_14, %c0_15] : memref<32x32xbf16, #tpu.memory_space<vmem>>, vector<32x32xbf16>
    %cst_16 = arith.constant dense<0.000000e+00> : vector<16x32xf32>
    %27 = tpu.matmul %25, %26, %cst_16 {dimension_numbers = #tpu.dot_dimension_numbers<[1], [0], [0], [1], [0, 0, 1, 1], [], []>} : vector<16x32xbf16>, vector<32x32xbf16>, vector<16x32xf32> -> vector<16x32xf32>
    %28 = arith.addf %24, %27 : vector<16x32xf32>
    %c0_17 = arith.constant 0 : index
    %c0_18 = arith.constant 0 : index
    %29 = vector.load %arg7[%c0_17, %c0_18] : memref<1x32xf32, #tpu.memory_space<vmem>>, vector<1x32xf32>
    %30 = vector.broadcast %29 : vector<1x32xf32> to vector<16x32xf32>
    %31 = arith.addf %28, %30 : vector<16x32xf32>
    %32 = arith.truncf %31 : vector<16x32xf32> to vector<16x32xbf16>
    %c0_19 = arith.constant 0 : index
    %c0_20 = arith.constant 0 : index
    %33 = vector.load %arg8[%c0_19, %c0_20] : memref<16x32xbf16, #tpu.memory_space<vmem>>, vector<16x32xbf16>
    tpu.vector_store %arg8[%c0_19, %c0_20], %32 {strides = array<i32>} : memref<16x32xbf16, #tpu.memory_space<vmem>>, vector<16x32xbf16>,
    return
  }
  func.func @transform_0(%arg0: i32) -> (i32, i32) {
    %c0_i32 = arith.constant 0 : i32
    %c0_i32_0 = arith.constant 0 : i32
    return %arg0, %c0_i32 : i32, i32
  }
  func.func @transform_1(%arg0: i32) -> (i32, i32) {
    %c0_i32 = arith.constant 0 : i32
    %c0_i32_0 = arith.constant 0 : i32
    return %arg0, %c0_i32 : i32, i32
  }
  func.func @transform_2(%arg0: i32) -> (i32, i32) {
    %c0_i32 = arith.constant 0 : i32
    %c0_i32_0 = arith.constant 0 : i32
    %c0_i32_1 = arith.constant 0 : i32
    return %c0_i32, %c0_i32_0 : i32, i32
  }
  func.func @transform_3(%arg0: i32) -> (i32, i32) {
    %c0_i32 = arith.constant 0 : i32
    %c0_i32_0 = arith.constant 0 : i32
    %c0_i32_1 = arith.constant 0 : i32
    return %c0_i32, %c0_i32_0 : i32, i32
  }
  func.func @transform_4(%arg0: i32) -> (i32, i32) {
    %c0_i32 = arith.constant 0 : i32
    %c0_i32_0 = arith.constant 0 : i32
    %c0_i32_1 = arith.constant 0 : i32
    return %c0_i32, %c0_i32_0 : i32, i32
  }
  func.func @transform_5(%arg0: i32) -> (i32, i32) {
    %c0_i32 = arith.constant 0 : i32
    %c0_i32_0 = arith.constant 0 : i32
    %c0_i32_1 = arith.constant 0 : i32
    return %c0_i32, %c0_i32_0 : i32, i32
  }
  func.func @transform_6(%arg0: i32) -> (i32, i32) {
    %c0_i32 = arith.constant 0 : i32
    %c0_i32_0 = arith.constant 0 : i32
    %c0_i32_1 = arith.constant 0 : i32
    return %c0_i32, %c0_i32_0 : i32, i32
  }
  func.func @transform_7(%arg0: i32) -> (i32, i32) {
    %c0_i32 = arith.constant 0 : i32
    %c0_i32_0 = arith.constant 0 : i32
    return %arg0, %c0_i32 : i32, i32
  }
}

module attributes {stable_mosaic.version = 11 : i64} {
  func.func @_forget_kernel(%arg0: i32, %arg1: i32, %arg2: memref<16x648xbf16, #tpu.memory_space<vmem>>, %arg3: memref<16x648xbf16, #tpu.memory_space<vmem>>, %arg4: memref<648x32xbf16, #tpu.memory_space<vmem>>, %arg5: memref<648x32xbf16, #tpu.memory_space<vmem>>, %arg6: memref<1x32xf32, #tpu.memory_space<vmem>>, %arg7: memref<32x128xbf16, #tpu.memory_space<vmem>>, %arg8: memref<1x128xf32, #tpu.memory_space<vmem>>, %arg9: memref<16x128xbf16, #tpu.memory_space<vmem>>, %arg10: memref<16x32xf32, #tpu.memory_space<vmem>>) attributes {dimension_semantics = [#tpu.dimension_semantics<parallel>, #tpu.dimension_semantics<arbitrary>], iteration_bounds = array<i64: 1, 1>, scalar_prefetch = 0 : i64, scratch_operands = 1 : i64, tpu.core_type = #tpu.core_type<tc>, window_params = [{transform_indices = @transform_0, window_bounds = array<i64: 16, 648>}, {transform_indices = @transform_1, window_bounds = array<i64: 16, 648>}, {transform_indices = @transform_2, window_bounds = array<i64: 648, 32>}, {transform_indices = @transform_3, window_bounds = array<i64: 648, 32>}, {pipeline_mode = #tpu.pipeline_mode<synchronous>, transform_indices = @transform_4, window_bounds = array<i64: 1, 32>}, {pipeline_mode = #tpu.pipeline_mode<synchronous>, transform_indices = @transform_5, window_bounds = array<i64: 32, 128>}, {pipeline_mode = #tpu.pipeline_mode<synchronous>, transform_indices = @transform_6, window_bounds = array<i64: 1, 128>}, {transform_indices = @transform_7, window_bounds = array<i64: 16, 128>}]} {
    %c0_i32 = arith.constant 0 : i32
    %0 = arith.cmpi eq, %arg1, %c0_i32 : i32
    %1 = arith.extui %0 : i1 to i32
    %c0_i32_0 = arith.constant 0 : i32
    %2 = arith.cmpi ne, %1, %c0_i32_0 : i32
    scf.if %2 {
      %cst_15 = arith.constant 0.000000e+00 : f32
      %16 = vector.broadcast %cst_15 : f32 to vector<16x32xf32>
      %c0_16 = arith.constant 0 : index
      %c0_17 = arith.constant 0 : index
      %17 = vector.load %arg10[%c0_16, %c0_17] : memref<16x32xf32, #tpu.memory_space<vmem>>, vector<16x32xf32>
      tpu.vector_store %arg10[%c0_16, %c0_17], %16 {strides = array<i32>} : memref<16x32xf32, #tpu.memory_space<vmem>>, vector<16x32xf32>,
    } else {
    }
    %c0 = arith.constant 0 : index
    %c0_1 = arith.constant 0 : index
    %3 = vector.load %arg10[%c0, %c0_1] : memref<16x32xf32, #tpu.memory_space<vmem>>, vector<16x32xf32>
    %c0_2 = arith.constant 0 : index
    %c0_3 = arith.constant 0 : index
    %4 = vector.load %arg2[%c0_2, %c0_3] : memref<16x648xbf16, #tpu.memory_space<vmem>>, vector<16x648xbf16>
    %c0_4 = arith.constant 0 : index
    %c0_5 = arith.constant 0 : index
    %5 = vector.load %arg4[%c0_4, %c0_5] : memref<648x32xbf16, #tpu.memory_space<vmem>>, vector<648x32xbf16>
    %cst = arith.constant dense<0.000000e+00> : vector<16x32xf32>
    %6 = tpu.matmul %4, %5, %cst {dimension_numbers = #tpu.dot_dimension_numbers<[1], [0], [0], [1], [0, 0, 1, 1], [], []>} : vector<16x648xbf16>, vector<648x32xbf16>, vector<16x32xf32> -> vector<16x32xf32>
    %c0_6 = arith.constant 0 : index
    %c0_7 = arith.constant 0 : index
    %7 = vector.load %arg3[%c0_6, %c0_7] : memref<16x648xbf16, #tpu.memory_space<vmem>>, vector<16x648xbf16>
    %c0_8 = arith.constant 0 : index
    %c0_9 = arith.constant 0 : index
    %8 = vector.load %arg5[%c0_8, %c0_9] : memref<648x32xbf16, #tpu.memory_space<vmem>>, vector<648x32xbf16>
    %cst_10 = arith.constant dense<0.000000e+00> : vector<16x32xf32>
    %9 = tpu.matmul %7, %8, %cst_10 {dimension_numbers = #tpu.dot_dimension_numbers<[1], [0], [0], [1], [0, 0, 1, 1], [], []>} : vector<16x648xbf16>, vector<648x32xbf16>, vector<16x32xf32> -> vector<16x32xf32>
    %10 = arith.addf %6, %9 : vector<16x32xf32>
    %11 = arith.addf %3, %10 : vector<16x32xf32>
    %c0_11 = arith.constant 0 : index
    %c0_12 = arith.constant 0 : index
    %12 = vector.load %arg10[%c0_11, %c0_12] : memref<16x32xf32, #tpu.memory_space<vmem>>, vector<16x32xf32>
    tpu.vector_store %arg10[%c0_11, %c0_12], %11 {strides = array<i32>} : memref<16x32xf32, #tpu.memory_space<vmem>>, vector<16x32xf32>,
    %c0_i32_13 = arith.constant 0 : i32
    %13 = arith.cmpi eq, %arg1, %c0_i32_13 : i32
    %14 = arith.extui %13 : i1 to i32
    %c0_i32_14 = arith.constant 0 : i32
    %15 = arith.cmpi ne, %14, %c0_i32_14 : i32
    scf.if %15 {
      %c0_15 = arith.constant 0 : index
      %c0_16 = arith.constant 0 : index
      %16 = vector.load %arg10[%c0_15, %c0_16] : memref<16x32xf32, #tpu.memory_space<vmem>>, vector<16x32xf32>
      %c0_17 = arith.constant 0 : index
      %c0_18 = arith.constant 0 : index
      %17 = vector.load %arg6[%c0_17, %c0_18] : memref<1x32xf32, #tpu.memory_space<vmem>>, vector<1x32xf32>
      %18 = vector.broadcast %17 : vector<1x32xf32> to vector<16x32xf32>
      %19 = arith.addf %16, %18 : vector<16x32xf32>
      %20 = arith.truncf %19 : vector<16x32xf32> to vector<16x32xbf16>
      %c0_19 = arith.constant 0 : index
      %c0_20 = arith.constant 0 : index
      %21 = vector.load %arg7[%c0_19, %c0_20] : memref<32x128xbf16, #tpu.memory_space<vmem>>, vector<32x128xbf16>
      %cst_21 = arith.constant dense<0.000000e+00> : vector<16x128xf32>
      %22 = tpu.matmul %20, %21, %cst_21 {dimension_numbers = #tpu.dot_dimension_numbers<[1], [0], [0], [1], [0, 0, 1, 1], [], []>} : vector<16x32xbf16>, vector<32x128xbf16>, vector<16x128xf32> -> vector<16x128xf32>
      %c0_22 = arith.constant 0 : index
      %c0_23 = arith.constant 0 : index
      %23 = vector.load %arg8[%c0_22, %c0_23] : memref<1x128xf32, #tpu.memory_space<vmem>>, vector<1x128xf32>
      %24 = vector.broadcast %23 : vector<1x128xf32> to vector<16x128xf32>
      %25 = arith.addf %22, %24 : vector<16x128xf32>
      %26 = arith.truncf %25 : vector<16x128xf32> to vector<16x128xbf16>
      %c0_24 = arith.constant 0 : index
      %c0_25 = arith.constant 0 : index
      %27 = vector.load %arg9[%c0_24, %c0_25] : memref<16x128xbf16, #tpu.memory_space<vmem>>, vector<16x128xbf16>
      tpu.vector_store %arg9[%c0_24, %c0_25], %26 {strides = array<i32>} : memref<16x128xbf16, #tpu.memory_space<vmem>>, vector<16x128xbf16>,
    } else {
    }
    return
  }
  func.func @transform_0(%arg0: i32, %arg1: i32) -> (i32, i32) {
    %c0_i32 = arith.constant 0 : i32
    return %arg0, %arg1 : i32, i32
  }
  func.func @transform_1(%arg0: i32, %arg1: i32) -> (i32, i32) {
    %c0_i32 = arith.constant 0 : i32
    return %arg0, %arg1 : i32, i32
  }
  func.func @transform_2(%arg0: i32, %arg1: i32) -> (i32, i32) {
    %c0_i32 = arith.constant 0 : i32
    %c0_i32_0 = arith.constant 0 : i32
    return %arg1, %c0_i32 : i32, i32
  }
  func.func @transform_3(%arg0: i32, %arg1: i32) -> (i32, i32) {
    %c0_i32 = arith.constant 0 : i32
    %c0_i32_0 = arith.constant 0 : i32
    return %arg1, %c0_i32 : i32, i32
  }
  func.func @transform_4(%arg0: i32, %arg1: i32) -> (i32, i32) {
    %c0_i32 = arith.constant 0 : i32
    %c0_i32_0 = arith.constant 0 : i32
    %c0_i32_1 = arith.constant 0 : i32
    return %c0_i32, %c0_i32_0 : i32, i32
  }
  func.func @transform_5(%arg0: i32, %arg1: i32) -> (i32, i32) {
    %c0_i32 = arith.constant 0 : i32
    %c0_i32_0 = arith.constant 0 : i32
    %c0_i32_1 = arith.constant 0 : i32
    return %c0_i32, %c0_i32_0 : i32, i32
  }
  func.func @transform_6(%arg0: i32, %arg1: i32) -> (i32, i32) {
    %c0_i32 = arith.constant 0 : i32
    %c0_i32_0 = arith.constant 0 : i32
    %c0_i32_1 = arith.constant 0 : i32
    return %c0_i32, %c0_i32_0 : i32, i32
  }
  func.func @transform_7(%arg0: i32, %arg1: i32) -> (i32, i32) {
    %c0_i32 = arith.constant 0 : i32
    %c0_i32_0 = arith.constant 0 : i32
    return %arg0, %c0_i32 : i32, i32
  }
}

module attributes {stable_mosaic.version = 11 : i64} {
  func.func @_concept_pregates_kernel(%arg0: i32, %arg1: memref<16x64xbf16, #tpu.memory_space<vmem>>, %arg2: memref<16x8xbf16, #tpu.memory_space<vmem>>, %arg3: memref<32x8xbf16, #tpu.memory_space<vmem>>, %arg4: memref<8x32xbf16, #tpu.memory_space<vmem>>, %arg5: memref<64x32xbf16, #tpu.memory_space<vmem>>, %arg6: memref<32x32xbf16, #tpu.memory_space<vmem>>, %arg7: memref<1x32xf32, #tpu.memory_space<vmem>>, %arg8: memref<32x128xbf16, #tpu.memory_space<vmem>>, %arg9: memref<1x128xf32, #tpu.memory_space<vmem>>, %arg10: memref<16x128xbf16, #tpu.memory_space<vmem>>) attributes {dimension_semantics = [#tpu.dimension_semantics<parallel>], iteration_bounds = array<i64: 1>, scalar_prefetch = 0 : i64, scratch_operands = 0 : i64, tpu.core_type = #tpu.core_type<tc>, window_params = [{transform_indices = @transform_0, window_bounds = array<i64: 16, 64>}, {transform_indices = @transform_1, window_bounds = array<i64: 16, 8>}, {pipeline_mode = #tpu.pipeline_mode<synchronous>, transform_indices = @transform_2, window_bounds = array<i64: 32, 8>}, {pipeline_mode = #tpu.pipeline_mode<synchronous>, transform_indices = @transform_3, window_bounds = array<i64: 8, 32>}, {pipeline_mode = #tpu.pipeline_mode<synchronous>, transform_indices = @transform_4, window_bounds = array<i64: 64, 32>}, {pipeline_mode = #tpu.pipeline_mode<synchronous>, transform_indices = @transform_5, window_bounds = array<i64: 32, 32>}, {pipeline_mode = #tpu.pipeline_mode<synchronous>, transform_indices = @transform_6, window_bounds = array<i64: 1, 32>}, {pipeline_mode = #tpu.pipeline_mode<synchronous>, transform_indices = @transform_7, window_bounds = array<i64: 32, 128>}, {pipeline_mode = #tpu.pipeline_mode<synchronous>, transform_indices = @transform_8, window_bounds = array<i64: 1, 128>}, {transform_indices = @transform_9, window_bounds = array<i64: 16, 128>}]} {
    %c0 = arith.constant 0 : index
    %c0_0 = arith.constant 0 : index
    %0 = vector.load %arg1[%c0, %c0_0] : memref<16x64xbf16, #tpu.memory_space<vmem>>, vector<16x64xbf16>
    %1 = vector.extract_strided_slice %0 {offsets = [0, 0], sizes = [16, 32], strides = [1, 1]} : vector<16x64xbf16> to vector<16x32xbf16>
    %c0_1 = arith.constant 0 : index
    %c0_2 = arith.constant 0 : index
    %2 = vector.load %arg2[%c0_1, %c0_2] : memref<16x8xbf16, #tpu.memory_space<vmem>>, vector<16x8xbf16>
    %c0_3 = arith.constant 0 : index
    %c0_4 = arith.constant 0 : index
    %3 = vector.load %arg3[%c0_3, %c0_4] : memref<32x8xbf16, #tpu.memory_space<vmem>>, vector<32x8xbf16>
    %c0_5 = arith.constant 0 : index
    %c0_6 = arith.constant 0 : index
    %4 = vector.load %arg4[%c0_5, %c0_6] : memref<8x32xbf16, #tpu.memory_space<vmem>>, vector<8x32xbf16>
    %cst = arith.constant dense<0.000000e+00> : vector<16x8xf32>
    %5 = tpu.matmul %1, %3, %cst {dimension_numbers = #tpu.dot_dimension_numbers<[1], [0], [0], [1], [0, 0, 1, 1], [], []>} : vector<16x32xbf16>, vector<32x8xbf16>, vector<16x8xf32> -> vector<16x8xf32>
    %6 = arith.extf %2 : vector<16x8xbf16> to vector<16x8xf32>
    %7 = arith.mulf %5, %6 : vector<16x8xf32>
    %cst_7 = arith.constant 0.176776692 : f32
    %8 = vector.broadcast %cst_7 : f32 to vector<16x8xf32>
    %9 = arith.mulf %7, %8 : vector<16x8xf32>
    %cst_8 = arith.constant dense<0xFF800000> : vector<16xf32>
    %10 = vector.multi_reduction <maximumf>, %9, %cst_8 [1] : vector<16x8xf32> to vector<16xf32>
    %11 = vector.shape_cast %10 : vector<16xf32> to vector<16x1xf32>
    %12 = vector.broadcast %11 : vector<16x1xf32> to vector<16x8xf32>
    %13 = arith.subf %9, %12 : vector<16x8xf32>
    %14 = math.exp %13 : vector<16x8xf32>
    %cst_9 = arith.constant dense<0.000000e+00> : vector<16xf32>
    %15 = vector.multi_reduction <add>, %14, %cst_9 [1] : vector<16x8xf32> to vector<16xf32>
    %16 = vector.shape_cast %15 : vector<16xf32> to vector<16x1xf32>
    %17 = tpu.reciprocal %16 {approx = true} : vector<16x1xf32> -> vector<16x1xf32>
    %18 = vector.broadcast %17 : vector<16x1xf32> to vector<16x8xf32>
    %19 = arith.mulf %14, %18 : vector<16x8xf32>
    %20 = arith.extf %2 : vector<16x8xbf16> to vector<16x8xf32>
    %21 = arith.mulf %19, %20 : vector<16x8xf32>
    %22 = arith.truncf %21 : vector<16x8xf32> to vector<16x8xbf16>
    %cst_10 = arith.constant dense<0.000000e+00> : vector<16x32xf32>
    %23 = tpu.matmul %22, %4, %cst_10 {dimension_numbers = #tpu.dot_dimension_numbers<[1], [0], [0], [1], [0, 0, 1, 1], [], []>} : vector<16x8xbf16>, vector<8x32xbf16>, vector<16x32xf32> -> vector<16x32xf32>
    %c0_11 = arith.constant 0 : index
    %c0_12 = arith.constant 0 : index
    %24 = vector.load %arg5[%c0_11, %c0_12] : memref<64x32xbf16, #tpu.memory_space<vmem>>, vector<64x32xbf16>
    %cst_13 = arith.constant dense<0.000000e+00> : vector<16x32xf32>
    %25 = tpu.matmul %0, %24, %cst_13 {dimension_numbers = #tpu.dot_dimension_numbers<[1], [0], [0], [1], [0, 0, 1, 1], [], []>} : vector<16x64xbf16>, vector<64x32xbf16>, vector<16x32xf32> -> vector<16x32xf32>
    %26 = arith.truncf %23 : vector<16x32xf32> to vector<16x32xbf16>
    %c0_14 = arith.constant 0 : index
    %c0_15 = arith.constant 0 : index
    %27 = vector.load %arg6[%c0_14, %c0_15] : memref<32x32xbf16, #tpu.memory_space<vmem>>, vector<32x32xbf16>
    %cst_16 = arith.constant dense<0.000000e+00> : vector<16x32xf32>
    %28 = tpu.matmul %26, %27, %cst_16 {dimension_numbers = #tpu.dot_dimension_numbers<[1], [0], [0], [1], [0, 0, 1, 1], [], []>} : vector<16x32xbf16>, vector<32x32xbf16>, vector<16x32xf32> -> vector<16x32xf32>
    %29 = arith.addf %25, %28 : vector<16x32xf32>
    %c0_17 = arith.constant 0 : index
    %c0_18 = arith.constant 0 : index
    %30 = vector.load %arg7[%c0_17, %c0_18] : memref<1x32xf32, #tpu.memory_space<vmem>>, vector<1x32xf32>
    %31 = vector.broadcast %30 : vector<1x32xf32> to vector<16x32xf32>
    %32 = arith.addf %29, %31 : vector<16x32xf32>
    %33 = arith.truncf %32 : vector<16x32xf32> to vector<16x32xbf16>
    %c0_19 = arith.constant 0 : index
    %c0_20 = arith.constant 0 : index
    %34 = vector.load %arg8[%c0_19, %c0_20] : memref<32x128xbf16, #tpu.memory_space<vmem>>, vector<32x128xbf16>
    %cst_21 = arith.constant dense<0.000000e+00> : vector<16x128xf32>
    %35 = tpu.matmul %33, %34, %cst_21 {dimension_numbers = #tpu.dot_dimension_numbers<[1], [0], [0], [1], [0, 0, 1, 1], [], []>} : vector<16x32xbf16>, vector<32x128xbf16>, vector<16x128xf32> -> vector<16x128xf32>
    %c0_22 = arith.constant 0 : index
    %c0_23 = arith.constant 0 : index
    %36 = vector.load %arg9[%c0_22, %c0_23] : memref<1x128xf32, #tpu.memory_space<vmem>>, vector<1x128xf32>
    %37 = vector.broadcast %36 : vector<1x128xf32> to vector<16x128xf32>
    %38 = arith.addf %35, %37 : vector<16x128xf32>
    %39 = arith.truncf %38 : vector<16x128xf32> to vector<16x128xbf16>
    %c0_24 = arith.constant 0 : index
    %c0_25 = arith.constant 0 : index
    %40 = vector.load %arg10[%c0_24, %c0_25] : memref<16x128xbf16, #tpu.memory_space<vmem>>, vector<16x128xbf16>
    tpu.vector_store %arg10[%c0_24, %c0_25], %39 {strides = array<i32>} : memref<16x128xbf16, #tpu.memory_space<vmem>>, vector<16x128xbf16>,
    return
  }
  func.func @transform_0(%arg0: i32) -> (i32, i32) {
    %c0_i32 = arith.constant 0 : i32
    %c0_i32_0 = arith.constant 0 : i32
    return %arg0, %c0_i32 : i32, i32
  }
  func.func @transform_1(%arg0: i32) -> (i32, i32) {
    %c0_i32 = arith.constant 0 : i32
    %c0_i32_0 = arith.constant 0 : i32
    return %arg0, %c0_i32 : i32, i32
  }
  func.func @transform_2(%arg0: i32) -> (i32, i32) {
    %c0_i32 = arith.constant 0 : i32
    %c0_i32_0 = arith.constant 0 : i32
    %c0_i32_1 = arith.constant 0 : i32
    return %c0_i32, %c0_i32_0 : i32, i32
  }
  func.func @transform_3(%arg0: i32) -> (i32, i32) {
    %c0_i32 = arith.constant 0 : i32
    %c0_i32_0 = arith.constant 0 : i32
    %c0_i32_1 = arith.constant 0 : i32
    return %c0_i32, %c0_i32_0 : i32, i32
  }
  func.func @transform_4(%arg0: i32) -> (i32, i32) {
    %c0_i32 = arith.constant 0 : i32
    %c0_i32_0 = arith.constant 0 : i32
    %c0_i32_1 = arith.constant 0 : i32
    return %c0_i32, %c0_i32_0 : i32, i32
  }
  func.func @transform_5(%arg0: i32) -> (i32, i32) {
    %c0_i32 = arith.constant 0 : i32
    %c0_i32_0 = arith.constant 0 : i32
    %c0_i32_1 = arith.constant 0 : i32
    return %c0_i32, %c0_i32_0 : i32, i32
  }
  func.func @transform_6(%arg0: i32) -> (i32, i32) {
    %c0_i32 = arith.constant 0 : i32
    %c0_i32_0 = arith.constant 0 : i32
    %c0_i32_1 = arith.constant 0 : i32
    return %c0_i32, %c0_i32_0 : i32, i32
  }
  func.func @transform_7(%arg0: i32) -> (i32, i32) {
    %c0_i32 = arith.constant 0 : i32
    %c0_i32_0 = arith.constant 0 : i32
    %c0_i32_1 = arith.constant 0 : i32
    return %c0_i32, %c0_i32_0 : i32, i32
  }
  func.func @transform_8(%arg0: i32) -> (i32, i32) {
    %c0_i32 = arith.constant 0 : i32
    %c0_i32_0 = arith.constant 0 : i32
    %c0_i32_1 = arith.constant 0 : i32
    return %c0_i32, %c0_i32_0 : i32, i32
  }
  func.func @transform_9(%arg0: i32) -> (i32, i32) {
    %c0_i32 = arith.constant 0 : i32
    %c0_i32_0 = arith.constant 0 : i32
    return %arg0, %c0_i32 : i32, i32
  }
}

module attributes {stable_mosaic.version = 11 : i64} {
  func.func @_dual_lstm_kernel(%arg0: i32, %arg1: i32, %arg2: memref<1x1x8x128xbf16, #tpu.memory_space<vmem>>, %arg3: memref<1x32x128xbf16, #tpu.memory_space<vmem>>, %arg4: memref<1x1x8x32xbf16, #tpu.memory_space<vmem>>, %arg5: memref<8x32xf32, #tpu.memory_space<vmem>>, %arg6: memref<8x32xf32, #tpu.memory_space<vmem>>) attributes {dimension_semantics = [#tpu.dimension_semantics<parallel>, #tpu.dimension_semantics<arbitrary>], iteration_bounds = array<i64: 2, 2>, scalar_prefetch = 0 : i64, scratch_operands = 2 : i64, tpu.core_type = #tpu.core_type<tc>, window_params = [{transform_indices = @transform_0, window_bounds = array<i64: 1, 1, 8, 128>}, {transform_indices = @transform_1, window_bounds = array<i64: 1, 32, 128>}, {transform_indices = @transform_2, window_bounds = array<i64: 1, 1, 8, 32>}]} {
    %c0_i32 = arith.constant 0 : i32
    %0 = arith.cmpi eq, %arg1, %c0_i32 : i32
    %1 = arith.extui %0 : i1 to i32
    %c0_i32_0 = arith.constant 0 : i32
    %2 = arith.cmpi ne, %1, %c0_i32_0 : i32
    scf.if %2 {
      %cst_22 = arith.constant 0.000000e+00 : f32
      %44 = vector.broadcast %cst_22 : f32 to vector<8x32xf32>
      %c0_23 = arith.constant 0 : index
      %c0_24 = arith.constant 0 : index
      %45 = vector.load %arg5[%c0_23, %c0_24] : memref<8x32xf32, #tpu.memory_space<vmem>>, vector<8x32xf32>
      tpu.vector_store %arg5[%c0_23, %c0_24], %44 {strides = array<i32>} : memref<8x32xf32, #tpu.memory_space<vmem>>, vector<8x32xf32>,
      %cst_25 = arith.constant 0.000000e+00 : f32
      %46 = vector.broadcast %cst_25 : f32 to vector<8x32xf32>
      %c0_26 = arith.constant 0 : index
      %c0_27 = arith.constant 0 : index
      %47 = vector.load %arg6[%c0_26, %c0_27] : memref<8x32xf32, #tpu.memory_space<vmem>>, vector<8x32xf32>
      tpu.vector_store %arg6[%c0_26, %c0_27], %46 {strides = array<i32>} : memref<8x32xf32, #tpu.memory_space<vmem>>, vector<8x32xf32>,
    } else {
    }
    %c0 = arith.constant 0 : index
    %c0_1 = arith.constant 0 : index
    %3 = vector.load %arg5[%c0, %c0_1] : memref<8x32xf32, #tpu.memory_space<vmem>>, vector<8x32xf32>
    %4 = arith.truncf %3 : vector<8x32xf32> to vector<8x32xbf16>
    %c0_2 = arith.constant 0 : index
    %c0_3 = arith.constant 0 : index
    %c0_4 = arith.constant 0 : index
    %c0_5 = arith.constant 0 : index
    %5 = vector.load %arg2[%c0_2, %c0_3, %c0_4, %c0_5] : memref<1x1x8x128xbf16, #tpu.memory_space<vmem>>, vector<1x1x8x128xbf16>
    %6 = vector.shape_cast %5 : vector<1x1x8x128xbf16> to vector<8x128xbf16>
    %7 = arith.extf %6 : vector<8x128xbf16> to vector<8x128xf32>
    %c0_6 = arith.constant 0 : index
    %c0_7 = arith.constant 0 : index
    %c0_8 = arith.constant 0 : index
    %8 = vector.load %arg3[%c0_6, %c0_7, %c0_8] : memref<1x32x128xbf16, #tpu.memory_space<vmem>>, vector<1x32x128xbf16>
    %9 = vector.shape_cast %8 : vector<1x32x128xbf16> to vector<32x128xbf16>
    %cst = arith.constant dense<0.000000e+00> : vector<8x128xf32>
    %10 = tpu.matmul %4, %9, %cst {dimension_numbers = #tpu.dot_dimension_numbers<[1], [0], [0], [1], [0, 0, 1, 1], [], []>} : vector<8x32xbf16>, vector<32x128xbf16>, vector<8x128xf32> -> vector<8x128xf32>
    %11 = arith.addf %7, %10 : vector<8x128xf32>
    %12 = vector.extract_strided_slice %11 {offsets = [0, 0], sizes = [8, 32], strides = [1, 1]} : vector<8x128xf32> to vector<8x32xf32>
    %13 = arith.negf %12 : vector<8x32xf32>
    %14 = math.exp %13 : vector<8x32xf32>
    %cst_9 = arith.constant 1.000000e+00 : f32
    %15 = vector.broadcast %cst_9 : f32 to vector<8x32xf32>
    %16 = arith.addf %15, %14 : vector<8x32xf32>
    %17 = arith.divf %15, %16 : vector<8x32xf32>
    %18 = vector.extract_strided_slice %11 {offsets = [0, 32], sizes = [8, 32], strides = [1, 1]} : vector<8x128xf32> to vector<8x32xf32>
    %19 = arith.negf %18 : vector<8x32xf32>
    %20 = math.exp %19 : vector<8x32xf32>
    %cst_10 = arith.constant 1.000000e+00 : f32
    %21 = vector.broadcast %cst_10 : f32 to vector<8x32xf32>
    %22 = arith.addf %21, %20 : vector<8x32xf32>
    %23 = arith.divf %21, %22 : vector<8x32xf32>
    %24 = vector.extract_strided_slice %11 {offsets = [0, 64], sizes = [8, 32], strides = [1, 1]} : vector<8x128xf32> to vector<8x32xf32>
    %25 = math.tanh %24 : vector<8x32xf32>
    %26 = vector.extract_strided_slice %11 {offsets = [0, 96], sizes = [8, 32], strides = [1, 1]} : vector<8x128xf32> to vector<8x32xf32>
    %27 = arith.negf %26 : vector<8x32xf32>
    %28 = math.exp %27 : vector<8x32xf32>
    %cst_11 = arith.constant 1.000000e+00 : f32
    %29 = vector.broadcast %cst_11 : f32 to vector<8x32xf32>
    %30 = arith.addf %29, %28 : vector<8x32xf32>
    %31 = arith.divf %29, %30 : vector<8x32xf32>
    %c0_12 = arith.constant 0 : index
    %c0_13 = arith.constant 0 : index
    %32 = vector.load %arg6[%c0_12, %c0_13] : memref<8x32xf32, #tpu.memory_space<vmem>>, vector<8x32xf32>
    %33 = arith.mulf %23, %32 : vector<8x32xf32>
    %34 = arith.mulf %17, %25 : vector<8x32xf32>
    %35 = arith.addf %33, %34 : vector<8x32xf32>
    %36 = math.tanh %35 : vector<8x32xf32>
    %37 = arith.mulf %31, %36 : vector<8x32xf32>
    %c0_14 = arith.constant 0 : index
    %c0_15 = arith.constant 0 : index
    %38 = vector.load %arg6[%c0_14, %c0_15] : memref<8x32xf32, #tpu.memory_space<vmem>>, vector<8x32xf32>
    tpu.vector_store %arg6[%c0_14, %c0_15], %35 {strides = array<i32>} : memref<8x32xf32, #tpu.memory_space<vmem>>, vector<8x32xf32>,
    %c0_16 = arith.constant 0 : index
    %c0_17 = arith.constant 0 : index
    %39 = vector.load %arg5[%c0_16, %c0_17] : memref<8x32xf32, #tpu.memory_space<vmem>>, vector<8x32xf32>
    tpu.vector_store %arg5[%c0_16, %c0_17], %37 {strides = array<i32>} : memref<8x32xf32, #tpu.memory_space<vmem>>, vector<8x32xf32>,
    %40 = arith.truncf %37 : vector<8x32xf32> to vector<8x32xbf16>
    %c0_18 = arith.constant 0 : index
    %c0_19 = arith.constant 0 : index
    %c0_20 = arith.constant 0 : index
    %c0_21 = arith.constant 0 : index
    %41 = vector.load %arg4[%c0_18, %c0_19, %c0_20, %c0_21] : memref<1x1x8x32xbf16, #tpu.memory_space<vmem>>, vector<1x1x8x32xbf16>
    %42 = vector.shape_cast %41 : vector<1x1x8x32xbf16> to vector<8x32xbf16>
    %43 = vector.shape_cast %40 : vector<8x32xbf16> to vector<1x1x8x32xbf16>
    tpu.vector_store %arg4[%c0_18, %c0_19, %c0_20, %c0_21], %43 {strides = array<i32>} : memref<1x1x8x32xbf16, #tpu.memory_space<vmem>>, vector<1x1x8x32xbf16>,
    return
  }
  func.func @transform_0(%arg0: i32, %arg1: i32) -> (i32, i32, i32, i32) {
    %c0_i32 = arith.constant 0 : i32
    %c0_i32_0 = arith.constant 0 : i32
    %c0_i32_1 = arith.constant 0 : i32
    return %arg0, %arg1, %c0_i32, %c0_i32_0 : i32, i32, i32, i32
  }
  func.func @transform_1(%arg0: i32, %arg1: i32) -> (i32, i32, i32) {
    %c0_i32 = arith.constant 0 : i32
    %c0_i32_0 = arith.constant 0 : i32
    %c0_i32_1 = arith.constant 0 : i32
    return %arg0, %c0_i32, %c0_i32_0 : i32, i32, i32
  }
  func.func @transform_2(%arg0: i32, %arg1: i32) -> (i32, i32, i32, i32) {
    %c0_i32 = arith.constant 0 : i32
    %c0_i32_0 = arith.constant 0 : i32
    %c0_i32_1 = arith.constant 0 : i32
    return %arg0, %arg1, %c0_i32, %c0_i32_0 : i32, i32, i32, i32
  }
}

module attributes {stable_mosaic.version = 11 : i64} {
  func.func @_forget_kernel(%arg0: i32, %arg1: i32, %arg2: memref<16x648xbf16, #tpu.memory_space<vmem>>, %arg3: memref<16x648xbf16, #tpu.memory_space<vmem>>, %arg4: memref<648x32xbf16, #tpu.memory_space<vmem>>, %arg5: memref<648x32xbf16, #tpu.memory_space<vmem>>, %arg6: memref<1x32xf32, #tpu.memory_space<vmem>>, %arg7: memref<16x32xbf16, #tpu.memory_space<vmem>>, %arg8: memref<16x32xf32, #tpu.memory_space<vmem>>) attributes {dimension_semantics = [#tpu.dimension_semantics<parallel>, #tpu.dimension_semantics<arbitrary>], iteration_bounds = array<i64: 1, 1>, scalar_prefetch = 0 : i64, scratch_operands = 1 : i64, tpu.core_type = #tpu.core_type<tc>, window_params = [{transform_indices = @transform_0, window_bounds = array<i64: 16, 648>}, {transform_indices = @transform_1, window_bounds = array<i64: 16, 648>}, {transform_indices = @transform_2, window_bounds = array<i64: 648, 32>}, {transform_indices = @transform_3, window_bounds = array<i64: 648, 32>}, {pipeline_mode = #tpu.pipeline_mode<synchronous>, transform_indices = @transform_4, window_bounds = array<i64: 1, 32>}, {transform_indices = @transform_5, window_bounds = array<i64: 16, 32>}]} {
    %c0_i32 = arith.constant 0 : i32
    %0 = arith.cmpi eq, %arg1, %c0_i32 : i32
    %1 = arith.extui %0 : i1 to i32
    %c0_i32_0 = arith.constant 0 : i32
    %2 = arith.cmpi ne, %1, %c0_i32_0 : i32
    scf.if %2 {
      %cst_15 = arith.constant 0.000000e+00 : f32
      %16 = vector.broadcast %cst_15 : f32 to vector<16x32xf32>
      %c0_16 = arith.constant 0 : index
      %c0_17 = arith.constant 0 : index
      %17 = vector.load %arg8[%c0_16, %c0_17] : memref<16x32xf32, #tpu.memory_space<vmem>>, vector<16x32xf32>
      tpu.vector_store %arg8[%c0_16, %c0_17], %16 {strides = array<i32>} : memref<16x32xf32, #tpu.memory_space<vmem>>, vector<16x32xf32>,
    } else {
    }
    %c0 = arith.constant 0 : index
    %c0_1 = arith.constant 0 : index
    %3 = vector.load %arg8[%c0, %c0_1] : memref<16x32xf32, #tpu.memory_space<vmem>>, vector<16x32xf32>
    %c0_2 = arith.constant 0 : index
    %c0_3 = arith.constant 0 : index
    %4 = vector.load %arg2[%c0_2, %c0_3] : memref<16x648xbf16, #tpu.memory_space<vmem>>, vector<16x648xbf16>
    %c0_4 = arith.constant 0 : index
    %c0_5 = arith.constant 0 : index
    %5 = vector.load %arg4[%c0_4, %c0_5] : memref<648x32xbf16, #tpu.memory_space<vmem>>, vector<648x32xbf16>
    %cst = arith.constant dense<0.000000e+00> : vector<16x32xf32>
    %6 = tpu.matmul %4, %5, %cst {dimension_numbers = #tpu.dot_dimension_numbers<[1], [0], [0], [1], [0, 0, 1, 1], [], []>} : vector<16x648xbf16>, vector<648x32xbf16>, vector<16x32xf32> -> vector<16x32xf32>
    %c0_6 = arith.constant 0 : index
    %c0_7 = arith.constant 0 : index
    %7 = vector.load %arg3[%c0_6, %c0_7] : memref<16x648xbf16, #tpu.memory_space<vmem>>, vector<16x648xbf16>
    %c0_8 = arith.constant 0 : index
    %c0_9 = arith.constant 0 : index
    %8 = vector.load %arg5[%c0_8, %c0_9] : memref<648x32xbf16, #tpu.memory_space<vmem>>, vector<648x32xbf16>
    %cst_10 = arith.constant dense<0.000000e+00> : vector<16x32xf32>
    %9 = tpu.matmul %7, %8, %cst_10 {dimension_numbers = #tpu.dot_dimension_numbers<[1], [0], [0], [1], [0, 0, 1, 1], [], []>} : vector<16x648xbf16>, vector<648x32xbf16>, vector<16x32xf32> -> vector<16x32xf32>
    %10 = arith.addf %6, %9 : vector<16x32xf32>
    %11 = arith.addf %3, %10 : vector<16x32xf32>
    %c0_11 = arith.constant 0 : index
    %c0_12 = arith.constant 0 : index
    %12 = vector.load %arg8[%c0_11, %c0_12] : memref<16x32xf32, #tpu.memory_space<vmem>>, vector<16x32xf32>
    tpu.vector_store %arg8[%c0_11, %c0_12], %11 {strides = array<i32>} : memref<16x32xf32, #tpu.memory_space<vmem>>, vector<16x32xf32>,
    %c0_i32_13 = arith.constant 0 : i32
    %13 = arith.cmpi eq, %arg1, %c0_i32_13 : i32
    %14 = arith.extui %13 : i1 to i32
    %c0_i32_14 = arith.constant 0 : i32
    %15 = arith.cmpi ne, %14, %c0_i32_14 : i32
    scf.if %15 {
      %c0_15 = arith.constant 0 : index
      %c0_16 = arith.constant 0 : index
      %16 = vector.load %arg8[%c0_15, %c0_16] : memref<16x32xf32, #tpu.memory_space<vmem>>, vector<16x32xf32>
      %c0_17 = arith.constant 0 : index
      %c0_18 = arith.constant 0 : index
      %17 = vector.load %arg6[%c0_17, %c0_18] : memref<1x32xf32, #tpu.memory_space<vmem>>, vector<1x32xf32>
      %18 = vector.broadcast %17 : vector<1x32xf32> to vector<16x32xf32>
      %19 = arith.addf %16, %18 : vector<16x32xf32>
      %20 = arith.truncf %19 : vector<16x32xf32> to vector<16x32xbf16>
      %c0_19 = arith.constant 0 : index
      %c0_20 = arith.constant 0 : index
      %21 = vector.load %arg7[%c0_19, %c0_20] : memref<16x32xbf16, #tpu.memory_space<vmem>>, vector<16x32xbf16>
      tpu.vector_store %arg7[%c0_19, %c0_20], %20 {strides = array<i32>} : memref<16x32xbf16, #tpu.memory_space<vmem>>, vector<16x32xbf16>,
    } else {
    }
    return
  }
  func.func @transform_0(%arg0: i32, %arg1: i32) -> (i32, i32) {
    %c0_i32 = arith.constant 0 : i32
    return %arg0, %arg1 : i32, i32
  }
  func.func @transform_1(%arg0: i32, %arg1: i32) -> (i32, i32) {
    %c0_i32 = arith.constant 0 : i32
    return %arg0, %arg1 : i32, i32
  }
  func.func @transform_2(%arg0: i32, %arg1: i32) -> (i32, i32) {
    %c0_i32 = arith.constant 0 : i32
    %c0_i32_0 = arith.constant 0 : i32
    return %arg1, %c0_i32 : i32, i32
  }
  func.func @transform_3(%arg0: i32, %arg1: i32) -> (i32, i32) {
    %c0_i32 = arith.constant 0 : i32
    %c0_i32_0 = arith.constant 0 : i32
    return %arg1, %c0_i32 : i32, i32
  }
  func.func @transform_4(%arg0: i32, %arg1: i32) -> (i32, i32) {
    %c0_i32 = arith.constant 0 : i32
    %c0_i32_0 = arith.constant 0 : i32
    %c0_i32_1 = arith.constant 0 : i32
    return %c0_i32, %c0_i32_0 : i32, i32
  }
  func.func @transform_5(%arg0: i32, %arg1: i32) -> (i32, i32) {
    %c0_i32 = arith.constant 0 : i32
    %c0_i32_0 = arith.constant 0 : i32
    return %arg0, %c0_i32 : i32, i32
  }
}

module attributes {stable_mosaic.version = 11 : i64} {
  func.func @_head_kernel(%arg0: i32, %arg1: memref<16x32xbf16, #tpu.memory_space<vmem>>, %arg2: memref<16x32xbf16, #tpu.memory_space<vmem>>, %arg3: memref<16x32xbf16, #tpu.memory_space<vmem>>, %arg4: memref<16x32xbf16, #tpu.memory_space<vmem>>, %arg5: memref<32x32xbf16, #tpu.memory_space<vmem>>, %arg6: memref<32x32xbf16, #tpu.memory_space<vmem>>, %arg7: memref<1x32xf32, #tpu.memory_space<vmem>>, %arg8: memref<32x32xbf16, #tpu.memory_space<vmem>>, %arg9: memref<32x32xbf16, #tpu.memory_space<vmem>>, %arg10: memref<1x32xf32, #tpu.memory_space<vmem>>, %arg11: memref<1x32xbf16, #tpu.memory_space<vmem>>, %arg12: memref<1x32xbf16, #tpu.memory_space<vmem>>, %arg13: memref<1x1xf32, #tpu.memory_space<vmem>>, %arg14: memref<1x16xf32, #tpu.memory_space<vmem>>) attributes {dimension_semantics = [#tpu.dimension_semantics<parallel>], iteration_bounds = array<i64: 1>, scalar_prefetch = 0 : i64, scratch_operands = 0 : i64, tpu.core_type = #tpu.core_type<tc>, window_params = [{transform_indices = @transform_0, window_bounds = array<i64: 16, 32>}, {transform_indices = @transform_1, window_bounds = array<i64: 16, 32>}, {transform_indices = @transform_2, window_bounds = array<i64: 16, 32>}, {transform_indices = @transform_3, window_bounds = array<i64: 16, 32>}, {pipeline_mode = #tpu.pipeline_mode<synchronous>, transform_indices = @transform_4, window_bounds = array<i64: 32, 32>}, {pipeline_mode = #tpu.pipeline_mode<synchronous>, transform_indices = @transform_5, window_bounds = array<i64: 32, 32>}, {pipeline_mode = #tpu.pipeline_mode<synchronous>, transform_indices = @transform_6, window_bounds = array<i64: 1, 32>}, {pipeline_mode = #tpu.pipeline_mode<synchronous>, transform_indices = @transform_7, window_bounds = array<i64: 32, 32>}, {pipeline_mode = #tpu.pipeline_mode<synchronous>, transform_indices = @transform_8, window_bounds = array<i64: 32, 32>}, {pipeline_mode = #tpu.pipeline_mode<synchronous>, transform_indices = @transform_9, window_bounds = array<i64: 1, 32>}, {pipeline_mode = #tpu.pipeline_mode<synchronous>, transform_indices = @transform_10, window_bounds = array<i64: 1, 32>}, {pipeline_mode = #tpu.pipeline_mode<synchronous>, transform_indices = @transform_11, window_bounds = array<i64: 1, 32>}, {pipeline_mode = #tpu.pipeline_mode<synchronous>, transform_indices = @transform_12, window_bounds = array<i64: 1, 1>}, {transform_indices = @transform_13, window_bounds = array<i64: 1, 16>}]} {
    %c0 = arith.constant 0 : index
    %c0_0 = arith.constant 0 : index
    %0 = vector.load %arg1[%c0, %c0_0] : memref<16x32xbf16, #tpu.memory_space<vmem>>, vector<16x32xbf16>
    %c0_1 = arith.constant 0 : index
    %c0_2 = arith.constant 0 : index
    %1 = vector.load %arg5[%c0_1, %c0_2] : memref<32x32xbf16, #tpu.memory_space<vmem>>, vector<32x32xbf16>
    %cst = arith.constant dense<0.000000e+00> : vector<16x32xf32>
    %2 = tpu.matmul %0, %1, %cst {dimension_numbers = #tpu.dot_dimension_numbers<[1], [0], [0], [1], [0, 0, 1, 1], [], []>} : vector<16x32xbf16>, vector<32x32xbf16>, vector<16x32xf32> -> vector<16x32xf32>
    %c0_3 = arith.constant 0 : index
    %c0_4 = arith.constant 0 : index
    %3 = vector.load %arg2[%c0_3, %c0_4] : memref<16x32xbf16, #tpu.memory_space<vmem>>, vector<16x32xbf16>
    %c0_5 = arith.constant 0 : index
    %c0_6 = arith.constant 0 : index
    %4 = vector.load %arg6[%c0_5, %c0_6] : memref<32x32xbf16, #tpu.memory_space<vmem>>, vector<32x32xbf16>
    %cst_7 = arith.constant dense<0.000000e+00> : vector<16x32xf32>
    %5 = tpu.matmul %3, %4, %cst_7 {dimension_numbers = #tpu.dot_dimension_numbers<[1], [0], [0], [1], [0, 0, 1, 1], [], []>} : vector<16x32xbf16>, vector<32x32xbf16>, vector<16x32xf32> -> vector<16x32xf32>
    %6 = arith.addf %2, %5 : vector<16x32xf32>
    %c0_8 = arith.constant 0 : index
    %c0_9 = arith.constant 0 : index
    %7 = vector.load %arg7[%c0_8, %c0_9] : memref<1x32xf32, #tpu.memory_space<vmem>>, vector<1x32xf32>
    %8 = vector.broadcast %7 : vector<1x32xf32> to vector<16x32xf32>
    %9 = arith.addf %6, %8 : vector<16x32xf32>
    %cst_10 = arith.constant 0.000000e+00 : f32
    %10 = vector.broadcast %cst_10 : f32 to vector<16x32xf32>
    %11 = arith.maximumf %9, %10 : vector<16x32xf32>
    %c0_11 = arith.constant 0 : index
    %c0_12 = arith.constant 0 : index
    %12 = vector.load %arg3[%c0_11, %c0_12] : memref<16x32xbf16, #tpu.memory_space<vmem>>, vector<16x32xbf16>
    %c0_13 = arith.constant 0 : index
    %c0_14 = arith.constant 0 : index
    %13 = vector.load %arg8[%c0_13, %c0_14] : memref<32x32xbf16, #tpu.memory_space<vmem>>, vector<32x32xbf16>
    %cst_15 = arith.constant dense<0.000000e+00> : vector<16x32xf32>
    %14 = tpu.matmul %12, %13, %cst_15 {dimension_numbers = #tpu.dot_dimension_numbers<[1], [0], [0], [1], [0, 0, 1, 1], [], []>} : vector<16x32xbf16>, vector<32x32xbf16>, vector<16x32xf32> -> vector<16x32xf32>
    %c0_16 = arith.constant 0 : index
    %c0_17 = arith.constant 0 : index
    %15 = vector.load %arg4[%c0_16, %c0_17] : memref<16x32xbf16, #tpu.memory_space<vmem>>, vector<16x32xbf16>
    %c0_18 = arith.constant 0 : index
    %c0_19 = arith.constant 0 : index
    %16 = vector.load %arg9[%c0_18, %c0_19] : memref<32x32xbf16, #tpu.memory_space<vmem>>, vector<32x32xbf16>
    %cst_20 = arith.constant dense<0.000000e+00> : vector<16x32xf32>
    %17 = tpu.matmul %15, %16, %cst_20 {dimension_numbers = #tpu.dot_dimension_numbers<[1], [0], [0], [1], [0, 0, 1, 1], [], []>} : vector<16x32xbf16>, vector<32x32xbf16>, vector<16x32xf32> -> vector<16x32xf32>
    %18 = arith.addf %14, %17 : vector<16x32xf32>
    %c0_21 = arith.constant 0 : index
    %c0_22 = arith.constant 0 : index
    %19 = vector.load %arg10[%c0_21, %c0_22] : memref<1x32xf32, #tpu.memory_space<vmem>>, vector<1x32xf32>
    %20 = vector.broadcast %19 : vector<1x32xf32> to vector<16x32xf32>
    %21 = arith.addf %18, %20 : vector<16x32xf32>
    %cst_23 = arith.constant 0.000000e+00 : f32
    %22 = vector.broadcast %cst_23 : f32 to vector<16x32xf32>
    %23 = arith.maximumf %21, %22 : vector<16x32xf32>
    %c0_24 = arith.constant 0 : index
    %c0_25 = arith.constant 0 : index
    %24 = vector.load %arg11[%c0_24, %c0_25] : memref<1x32xbf16, #tpu.memory_space<vmem>>, vector<1x32xbf16>
    %25 = arith.truncf %11 : vector<16x32xf32> to vector<16x32xbf16>
    %cst_26 = arith.constant dense<0.000000e+00> : vector<1x16xf32>
    %26 = tpu.matmul %24, %25, %cst_26 {dimension_numbers = #tpu.dot_dimension_numbers<[1], [1], [0], [0], [0, 0, 1, 0], [], []>} : vector<1x32xbf16>, vector<16x32xbf16>, vector<1x16xf32> -> vector<1x16xf32>
    %c0_27 = arith.constant 0 : index
    %c0_28 = arith.constant 0 : index
    %27 = vector.load %arg12[%c0_27, %c0_28] : memref<1x32xbf16, #tpu.memory_space<vmem>>, vector<1x32xbf16>
    %28 = arith.truncf %23 : vector<16x32xf32> to vector<16x32xbf16>
    %cst_29 = arith.constant dense<0.000000e+00> : vector<1x16xf32>
    %29 = tpu.matmul %27, %28, %cst_29 {dimension_numbers = #tpu.dot_dimension_numbers<[1], [1], [0], [0], [0, 0, 1, 0], [], []>} : vector<1x32xbf16>, vector<16x32xbf16>, vector<1x16xf32> -> vector<1x16xf32>
    %30 = arith.addf %26, %29 : vector<1x16xf32>
    %c0_30 = arith.constant 0 : index
    %c0_31 = arith.constant 0 : index
    %31 = vector.load %arg13[%c0_30, %c0_31] : memref<1x1xf32, #tpu.memory_space<vmem>>, vector<1x1xf32>
    %32 = vector.broadcast %31 : vector<1x1xf32> to vector<1x16xf32>
    %33 = arith.addf %30, %32 : vector<1x16xf32>
    %34 = arith.negf %33 : vector<1x16xf32>
    %35 = math.exp %34 : vector<1x16xf32>
    %cst_32 = arith.constant 1.000000e+00 : f32
    %36 = vector.broadcast %cst_32 : f32 to vector<1x16xf32>
    %37 = arith.addf %36, %35 : vector<1x16xf32>
    %38 = arith.divf %36, %37 : vector<1x16xf32>
    %c0_33 = arith.constant 0 : index
    %c0_34 = arith.constant 0 : index
    %39 = vector.load %arg14[%c0_33, %c0_34] : memref<1x16xf32, #tpu.memory_space<vmem>>, vector<1x16xf32>
    tpu.vector_store %arg14[%c0_33, %c0_34], %38 {strides = array<i32>} : memref<1x16xf32, #tpu.memory_space<vmem>>, vector<1x16xf32>,
    return
  }
  func.func @transform_0(%arg0: i32) -> (i32, i32) {
    %c0_i32 = arith.constant 0 : i32
    %c0_i32_0 = arith.constant 0 : i32
    return %arg0, %c0_i32 : i32, i32
  }
  func.func @transform_1(%arg0: i32) -> (i32, i32) {
    %c0_i32 = arith.constant 0 : i32
    %c0_i32_0 = arith.constant 0 : i32
    return %arg0, %c0_i32 : i32, i32
  }
  func.func @transform_2(%arg0: i32) -> (i32, i32) {
    %c0_i32 = arith.constant 0 : i32
    %c0_i32_0 = arith.constant 0 : i32
    return %arg0, %c0_i32 : i32, i32
  }
  func.func @transform_3(%arg0: i32) -> (i32, i32) {
    %c0_i32 = arith.constant 0 : i32
    %c0_i32_0 = arith.constant 0 : i32
    return %arg0, %c0_i32 : i32, i32
  }
  func.func @transform_4(%arg0: i32) -> (i32, i32) {
    %c0_i32 = arith.constant 0 : i32
    %c0_i32_0 = arith.constant 0 : i32
    %c0_i32_1 = arith.constant 0 : i32
    return %c0_i32, %c0_i32_0 : i32, i32
  }
  func.func @transform_5(%arg0: i32) -> (i32, i32) {
    %c0_i32 = arith.constant 0 : i32
    %c0_i32_0 = arith.constant 0 : i32
    %c0_i32_1 = arith.constant 0 : i32
    return %c0_i32, %c0_i32_0 : i32, i32
  }
  func.func @transform_6(%arg0: i32) -> (i32, i32) {
    %c0_i32 = arith.constant 0 : i32
    %c0_i32_0 = arith.constant 0 : i32
    %c0_i32_1 = arith.constant 0 : i32
    return %c0_i32, %c0_i32_0 : i32, i32
  }
  func.func @transform_7(%arg0: i32) -> (i32, i32) {
    %c0_i32 = arith.constant 0 : i32
    %c0_i32_0 = arith.constant 0 : i32
    %c0_i32_1 = arith.constant 0 : i32
    return %c0_i32, %c0_i32_0 : i32, i32
  }
  func.func @transform_8(%arg0: i32) -> (i32, i32) {
    %c0_i32 = arith.constant 0 : i32
    %c0_i32_0 = arith.constant 0 : i32
    %c0_i32_1 = arith.constant 0 : i32
    return %c0_i32, %c0_i32_0 : i32, i32
  }
  func.func @transform_9(%arg0: i32) -> (i32, i32) {
    %c0_i32 = arith.constant 0 : i32
    %c0_i32_0 = arith.constant 0 : i32
    %c0_i32_1 = arith.constant 0 : i32
    return %c0_i32, %c0_i32_0 : i32, i32
  }
  func.func @transform_10(%arg0: i32) -> (i32, i32) {
    %c0_i32 = arith.constant 0 : i32
    %c0_i32_0 = arith.constant 0 : i32
    %c0_i32_1 = arith.constant 0 : i32
    return %c0_i32, %c0_i32_0 : i32, i32
  }
  func.func @transform_11(%arg0: i32) -> (i32, i32) {
    %c0_i32 = arith.constant 0 : i32
    %c0_i32_0 = arith.constant 0 : i32
    %c0_i32_1 = arith.constant 0 : i32
    return %c0_i32, %c0_i32_0 : i32, i32
  }
  func.func @transform_12(%arg0: i32) -> (i32, i32) {
    %c0_i32 = arith.constant 0 : i32
    %c0_i32_0 = arith.constant 0 : i32
    %c0_i32_1 = arith.constant 0 : i32
    return %c0_i32, %c0_i32_0 : i32, i32
  }
  func.func @transform_13(%arg0: i32) -> (i32, i32) {
    %c0_i32 = arith.constant 0 : i32
    %c0_i32_0 = arith.constant 0 : i32
    return %c0_i32, %arg0 : i32, i32
  }
}

</mosaic_0001>

<llo_original>
// kernel: _lambda_.7
$region0: #{_lambda_.7}
  #allocation0 [shape = 'u32[]', space=smem, size = 0x4, offset = 0x4, fixed_abs, tag = 'smem constant byte address 0x4 - core index']
  #allocation1 [shape = 'u32[144,128]{1,0:T(1,128)}', space=vmem, size = 0x12000, scoped, tag = 'internal scratch']
  %s0 = inlined_call_operand.vmem [shape: bf16[16,32], index: 0, kind: input, shape index: {}]
  %s1 = inlined_call_operand.vmem [shape: bf16[16,8], index: 1, kind: input, shape index: {}]
  %s2 = inlined_call_operand.vmem [shape: bf16[32,8], index: 2, kind: input, shape index: {}]
  %s3 = inlined_call_operand.vmem [shape: bf16[8,32], index: 3, kind: input, shape index: {}]
  %s4 = inlined_call_operand.vmem [shape: bf16[32,32], index: 4, kind: input, shape index: {}]
  %s5 = inlined_call_operand.vmem [shape: bf16[32,32], index: 5, kind: input, shape index: {}]
  %s6 = inlined_call_operand.vmem [shape: f32[1,32], index: 6, kind: input, shape index: {}]
  %s7 = inlined_call_operand.vmem [shape: bf16[16,32], index: 7, kind: output, shape index: {}]
  %s8 = sld [smem:[#allocation0]]
  $region38: #{_lambda_.7} parent=0
    _
  %s10 = ssub.s32 1, %s8
  %s11 = scalar_select 0, %s10, %s8
  // Predicated region
  $region2: #{_lambda_.7} parent=0 // pred_check
    _
  $region3: #{_lambda_.7} parent=0 // pred_check_branch
    %13 = sbr.rel (0) target = $region5
  $region4: #{_lambda_.7} parent=0 // pred_region
    _
  $region5: #{_lambda_.7} parent=0 // pred_fallthru
    _
  // Predicated region
  $region6: #{_lambda_.7} parent=0 // pred_check
    _
  $region7: #{_lambda_.7} parent=0 // pred_check_branch
    %15 = sbr.rel (0) target = $region9
  $region8: #{_lambda_.7} parent=0 // pred_region
    _
  $region9: #{_lambda_.7} parent=0 // pred_fallthru
    _
  // Predicated region
  $region10: #{_lambda_.7} parent=0 // pred_check
    _
  $region11: #{_lambda_.7} parent=0 // pred_check_branch
    %17 = sbr.rel (0) target = $region13
  $region12: #{_lambda_.7} parent=0 // pred_region
    _
  $region13: #{_lambda_.7} parent=0 // pred_fallthru
    _
  // Predicated region
  $region14: #{_lambda_.7} parent=0 // pred_check
    _
  $region15: #{_lambda_.7} parent=0 // pred_check_branch
    %19 = sbr.rel (0) target = $region17
  $region16: #{_lambda_.7} parent=0 // pred_region
    _
  $region17: #{_lambda_.7} parent=0 // pred_fallthru
    _
  // Predicated region
  $region18: #{_lambda_.7} parent=0 // pred_check
    _
  $region19: #{_lambda_.7} parent=0 // pred_check_branch
    %21 = sbr.rel (0) target = $region21
  $region20: #{_lambda_.7} parent=0 // pred_region
    _
  $region21: #{_lambda_.7} parent=0 // pred_fallthru
    _
  // Predicated region
  $region22: #{_lambda_.7} parent=0 // pred_check
    _
  $region23: #{_lambda_.7} parent=0 // pred_check_branch
    %23 = sbr.rel (0) target = $region25
  $region24: #{_lambda_.7} parent=0 // pred_region
    _
  $region25: #{_lambda_.7} parent=0 // pred_fallthru
    _
  // Predicated region
  $region26: #{_lambda_.7} parent=0 // pred_check
    _
  $region27: #{_lambda_.7} parent=0 // pred_check_branch
    %25 = sbr.rel (0) target = $region29
  $region28: #{_lambda_.7} parent=0 // pred_region
    _
  $region29: #{_lambda_.7} parent=0 // pred_fallthru
    _
  %v27 = vld [vmem:[%s0] sm:$0xf]
  %v28 = vld [vmem:[%s0 + $0x4] sm:$0xf]
  %v29 = vld [vmem:[%s1] sm:$0xf]
  %v30 = vld [vmem:[%s1 + $0x4] sm:$0xf]
  %v31 = vld [vmem:[%s2] sm:$0xf]
  %v32 = vld [vmem:[%s2 + $0x4] sm:$0xf]
  %v33 = vld [vmem:[%s2 + $0x8] sm:$0xf]
  %v34 = vld [vmem:[%s2 + $0xc] sm:$0xf]
  %v35 = vld [vmem:[%s3] sm:$0xf]
  %v38 = vunpack.c.l.b16 %v27
  %v39 = vunpack.c.l.b16 %v28
  %v40 = vpack.c.b16 %v39, %v38
  %v45 = vunpack.c.l.b16 %v31
  %v46 = vunpack.c.l.b16 %v32
  %v47 = vunpack.c.l.b16 %v33
  %v48 = vunpack.c.l.b16 %v34
  %v49 = vpack.c.b16 %v46, %v45
  %v50 = vpack.c.b16 %v48, %v47
  %vm53 = vcmask 261120
  %v55 = vsel %vm53, %v40, 0
  %57 = vmatprep.subr.bf16.mxu0 0
  %58 = vmatpush1.bf16.msra.mxu0 0
  %59 = vmatprep.subr.bf16.mxu0 0
  %60 = vmatpush1.bf16.msra.mxu0 0
  %61 = vmatprep.subr.bf16.mxu0 0
  %62 = vmatpush1.bf16.msra.mxu0 0
  %63 = vmatprep.subr.bf16.mxu0 0
  %64 = vmatpush1.bf16.msra.mxu0 0
  %65 = vmatprep.subr.bf16.mxu0 0
  %66 = vmatpush1.bf16.msra.mxu0 0
  %67 = vmatprep.subr.bf16.mxu0 0
  %68 = vmatpush1.bf16.msra.mxu0 0
  %69 = vmatprep.subr.bf16.mxu0 0
  %70 = vmatpush1.bf16.msra.mxu0 %v50
  %71 = vmatprep.subr.bf16.mxu0 0
  %72 = vmatpush1.bf16.msra.mxu0 %v49
  %73 = vmatprep.subr.bf16.mxu0 0
  %74 = vmatpush2.bf16.msra.mxu0 0
  %75 = vmatprep.subr.bf16.mxu0 0
  %76 = vmatpush2.bf16.msra.mxu0 0
  %77 = vmatprep.subr.bf16.mxu0 0
  %78 = vmatpush2.bf16.msra.mxu0 0
  %79 = vmatprep.subr.bf16.mxu0 0
  %80 = vmatpush2.bf16.msra.mxu0 0
  %81 = vmatprep.subr.bf16.mxu0 0
  %82 = vmatpush2.bf16.msra.mxu0 0
  %83 = vmatprep.subr.bf16.mxu0 0
  %84 = vmatpush2.bf16.msra.mxu0 0
  %85 = vmatprep.subr.bf16.mxu0 0
  %86 = vmatpush2.bf16.msra.mxu0 0
  %87 = vmatprep.subr.bf16.mxu0 0
  %88 = vmatpush2.bf16.msra.mxu0 0
  %89 = vmatprep.mubr.bf16.mxu0 0
  %90 = vmatmul.mubr.bf16.gmra.mxu0 %v55
  %v91 = vpop.f32.mrf.mxu0
  %v92 = vadd.f32 0.0, %v91
  %v93 = vpop.f32.mrf.mxu0
  %v94 = vpop.f32.mrf.mxu0
  %v95 = vadd.f32 0.0, %v94
  %v96 = vpop.f32.mrf.mxu0
  %97 = vdwg.mxu0
  %v98 = vunpack.c.l.bf16 %v29
  %v99 = vunpack.c.l.bf16 %v30
  %v100 = vmul.f32 %v92, %v98
  %v101 = vmul.f32 %v95, %v99
  %v102 = vmul.f32 %v100, 0.17677669
  %v103 = vmul.f32 %v101, 0.17677669
  %vm104 = vcmask 64512
  %v105 = vsel %vm104, %v102, -inf
  %106 = vmax.xlane.f32.xlu0 %v105
  %v107 = vpop.xlane.xlu0 %106
  %v108 = vsel %vm104, %v103, -inf
  %109 = vmax.xlane.f32.xlu0 %v108
  %v110 = vpop.xlane.xlu0 %109
  %v111 = vsub.f32 %v102, %v107
  %v112 = vsub.f32 %v103, %v110
  %v113 = vmul.f32 %v111, 1.442695
  %v114 = vpow.pop %v113
  %v115 = vmul.f32 %v112, 1.442695
  %v116 = vpow.pop %v115
  %v117 = vsel %vm104, %v114, 0.0
  %118 = vadd.xlane.f32.xlu0 %v117
  %v119 = vpop.xlane.xlu0 %118
  %v120 = vsel %vm104, %v116, 0.0
  %121 = vadd.xlane.f32.xlu0 %v120
  %v122 = vpop.xlane.xlu0 %121
  %v123 = vrcp.pop %v119
  %v124 = vrcp.pop %v122
  %v125 = vmul.f32 %v114, %v123
  %v126 = vmul.f32 %v116, %v124
  %v127 = vmul.f32 %v125, %v98
  %v128 = vmul.f32 %v126, %v99
  %v129 = vpack.c.bf16 %v128, %v127
  %v131 = vsel %vm104, %v129, 0
  %vm133 = vcmask 1043456
  %v135 = vsel %vm133, %v35, 0
  %137 = vmatprep.subr.bf16.mxu0 0
  %138 = vmatpush1.bf16.msra.mxu0 0
  %139 = vmatprep.subr.bf16.mxu0 0
  %140 = vmatpush1.bf16.msra.mxu0 0
  %141 = vmatprep.subr.bf16.mxu0 0
  %142 = vmatpush1.bf16.msra.mxu0 0
  %143 = vmatprep.subr.bf16.mxu0 0
  %144 = vmatpush1.bf16.msra.mxu0 0
  %145 = vmatprep.subr.bf16.mxu0 0
  %146 = vmatpush1.bf16.msra.mxu0 0
  %147 = vmatprep.subr.bf16.mxu0 0
  %148 = vmatpush1.bf16.msra.mxu0 0
  %149 = vmatprep.subr.bf16.mxu0 0
  %150 = vmatpush1.bf16.msra.mxu0 0
  %151 = vmatprep.subr.bf16.mxu0 0
  %152 = vmatpush1.bf16.msra.mxu0 %v135
  %153 = vmatprep.subr.bf16.mxu0 0
  %154 = vmatpush2.bf16.msra.mxu0 0
  %155 = vmatprep.subr.bf16.mxu0 0
  %156 = vmatpush2.bf16.msra.mxu0 0
  %157 = vmatprep.subr.bf16.mxu0 0
  %158 = vmatpush2.bf16.msra.mxu0 0
  %159 = vmatprep.subr.bf16.mxu0 0
  %160 = vmatpush2.bf16.msra.mxu0 0
  %161 = vmatprep.subr.bf16.mxu0 0
  %162 = vmatpush2.bf16.msra.mxu0 0
  %163 = vmatprep.subr.bf16.mxu0 0
  %164 = vmatpush2.bf16.msra.mxu0 0
  %165 = vmatprep.subr.bf16.mxu0 0
  %166 = vmatpush2.bf16.msra.mxu0 0
  %167 = vmatprep.subr.bf16.mxu0 0
  %168 = vmatpush2.bf16.msra.mxu0 0
  %169 = vmatprep.mubr.bf16.mxu0 0
  %170 = vmatmul.mubr.bf16.gmra.mxu0 %v131
  %v171 = vpop.f32.mrf.mxu0
  %v172 = vadd.f32 0.0, %v171
  %v173 = vpop.f32.mrf.mxu0
  %v174 = vpop.f32.mrf.mxu0
  %v175 = vadd.f32 0.0, %v174
  %v176 = vpop.f32.mrf.mxu0
  %177 = vdwg.mxu0
  %v178 = vld [vmem:[%s4] sm:$0xf]
  %v179 = vld [vmem:[%s4 + $0x4] sm:$0xf]
  %v180 = vld [vmem:[%s4 + $0x8] sm:$0xf]
  %v181 = vld [vmem:[%s4 + $0xc] sm:$0xf]
  %v182 = vpack.c.bf16 %v175, %v172
  %v183 = vld [vmem:[%s5] sm:$0xf]
  %v184 = vld [vmem:[%s5 + $0x4] sm:$0xf]
  %v185 = vld [vmem:[%s5 + $0x8] sm:$0xf]
  %v186 = vld [vmem:[%s5 + $0xc] sm:$0xf]
  %v191 = vunpack.c.l.b16 %v183
  %v192 = vunpack.c.l.b16 %v184
  %v193 = vunpack.c.l.b16 %v185
  %v194 = vunpack.c.l.b16 %v186
  %v195 = vpack.c.b16 %v192, %v191
  %v196 = vpack.c.b16 %v194, %v193
  %v200 = vsel %vm53, %v182, 0
  %202 = vmatprep.subr.bf16.mxu0 0
  %203 = vmatpush1.bf16.msra.mxu0 0
  %204 = vmatprep.subr.bf16.mxu0 0
  %205 = vmatpush1.bf16.msra.mxu0 0
  %206 = vmatprep.subr.bf16.mxu0 0
  %207 = vmatpush1.bf16.msra.mxu0 0
  %208 = vmatprep.subr.bf16.mxu0 0
  %209 = vmatpush1.bf16.msra.mxu0 0
  %210 = vmatprep.subr.bf16.mxu0 0
  %211 = vmatpush1.bf16.msra.mxu0 0
  %212 = vmatprep.subr.bf16.mxu0 0
  %213 = vmatpush1.bf16.msra.mxu0 0
  %214 = vmatprep.subr.bf16.mxu0 0
  %215 = vmatpush1.bf16.msra.mxu0 %v196
  %216 = vmatprep.subr.bf16.mxu0 0
  %217 = vmatpush1.bf16.msra.mxu0 %v195
  %218 = vmatprep.subr.bf16.mxu0 0
  %219 = vmatpush2.bf16.msra.mxu0 0
  %220 = vmatprep.subr.bf16.mxu0 0
  %221 = vmatpush2.bf16.msra.mxu0 0
  %222 = vmatprep.subr.bf16.mxu0 0
  %223 = vmatpush2.bf16.msra.mxu0 0
  %224 = vmatprep.subr.bf16.mxu0 0
  %225 = vmatpush2.bf16.msra.mxu0 0
  %226 = vmatprep.subr.bf16.mxu0 0
  %227 = vmatpush2.bf16.msra.mxu0 0
  %228 = vmatprep.subr.bf16.mxu0 0
  %229 = vmatpush2.bf16.msra.mxu0 0
  %230 = vmatprep.subr.bf16.mxu0 0
  %231 = vmatpush2.bf16.msra.mxu0 0
  %232 = vmatprep.subr.bf16.mxu0 0
  %233 = vmatpush2.bf16.msra.mxu0 0
  %234 = vmatprep.mubr.bf16.mxu0 0
  %235 = vmatmul.mubr.bf16.gmra.mxu0 %v200
  %v236 = vpop.f32.mrf.mxu0
  %v237 = vadd.f32 0.0, %v236
  %v238 = vpop.f32.mrf.mxu0
  %v239 = vpop.f32.mrf.mxu0
  %v240 = vadd.f32 0.0, %v239
  %v241 = vpop.f32.mrf.mxu0
  %242 = vdwg.mxu0
  %v247 = vunpack.c.l.b16 %v178
  %v248 = vunpack.c.l.b16 %v179
  %v249 = vunpack.c.l.b16 %v180
  %v250 = vunpack.c.l.b16 %v181
  %v251 = vpack.c.b16 %v248, %v247
  %v252 = vpack.c.b16 %v250, %v249
  %255 = vmatprep.subr.bf16.mxu0 0
  %256 = vmatpush1.bf16.msra.mxu0 0
  %257 = vmatprep.subr.bf16.mxu0 0
  %258 = vmatpush1.bf16.msra.mxu0 0
  %259 = vmatprep.subr.bf16.mxu0 0
  %260 = vmatpush1.bf16.msra.mxu0 0
  %261 = vmatprep.subr.bf16.mxu0 0
  %262 = vmatpush1.bf16.msra.mxu0 0
  %263 = vmatprep.subr.bf16.mxu0 0
  %264 = vmatpush1.bf16.msra.mxu0 0
  %265 = vmatprep.subr.bf16.mxu0 0
  %266 = vmatpush1.bf16.msra.mxu0 0
  %267 = vmatprep.subr.bf16.mxu0 0
  %268 = vmatpush1.bf16.msra.mxu0 %v252
  %269 = vmatprep.subr.bf16.mxu0 0
  %270 = vmatpush1.bf16.msra.mxu0 %v251
  %271 = vmatprep.subr.bf16.mxu0 0
  %272 = vmatpush2.bf16.msra.mxu0 0
  %273 = vmatprep.subr.bf16.mxu0 0
  %274 = vmatpush2.bf16.msra.mxu0 0
  %275 = vmatprep.subr.bf16.mxu0 0
  %276 = vmatpush2.bf16.msra.mxu0 0
  %277 = vmatprep.subr.bf16.mxu0 0
  %278 = vmatpush2.bf16.msra.mxu0 0
  %279 = vmatprep.subr.bf16.mxu0 0
  %280 = vmatpush2.bf16.msra.mxu0 0
  %281 = vmatprep.subr.bf16.mxu0 0
  %282 = vmatpush2.bf16.msra.mxu0 0
  %283 = vmatprep.subr.bf16.mxu0 0
  %284 = vmatpush2.bf16.msra.mxu0 0
  %285 = vmatprep.subr.bf16.mxu0 0
  %286 = vmatpush2.bf16.msra.mxu0 0
  %287 = vmatprep.mubr.bf16.mxu0 0
  %288 = vmatmul.mubr.bf16.gmra.mxu0 %v55
  %v289 = vpop.f32.mrf.mxu0
  %v290 = vadd.f32 %v237, %v289
  %v291 = vpop.f32.mrf.mxu0
  %v292 = vpop.f32.mrf.mxu0
  %v293 = vadd.f32 %v240, %v292
  %v294 = vpop.f32.mrf.mxu0
  %295 = vdwg.mxu0
  %v296 = vld [vmem:[%s6] sm:$0x1]
  %v298 = vlaneseq
  %v299 = vshrl.u32 %v298, 7
  %v300 = vsub.s32 0, %v299
  %v301 = vrot.slane %v296, %v300
  %v303 = vadd.f32 %v290, %v301
  %v304 = vadd.f32 %v293, %v301
  %v305 = vpack.c.bf16 %v304, %v303
  %v307 = vunpack.c.l.b16 %v305
  %v308 = vunpack.c.h.b16 %v305
  %v309 = vpack.c.b16 %v307, %v307
  %v310 = vpack.c.b16 %v308, %v308
  %vm313 = vcmask 257024
  %314 = vst.msk [vmem:[%s7] sm:$0xf] %vm313, %v309
  %315 = vst.msk [vmem:[%s7 + $0x4] sm:$0xf] %vm313, %v310
  // Predicated region
  $region30: #{_lambda_.7} parent=0 // pred_check
    _
  $region31: #{_lambda_.7} parent=0 // pred_check_branch
    %317 = sbr.rel (0) target = $region33
  $region32: #{_lambda_.7} parent=0 // pred_region
    _
  $region33: #{_lambda_.7} parent=0 // pred_fallthru
    _
  // Predicated region
  $region34: #{_lambda_.7} parent=0 // pred_check
    _
  $region35: #{_lambda_.7} parent=0 // pred_check_branch
    %319 = sbr.rel (0) target = $region37
  $region36: #{_lambda_.7} parent=0 // pred_region
    _
  $region37: #{_lambda_.7} parent=0 // pred_fallthru
    _

// kernel: _lambda_.8
$region0: #{_lambda_.8}
  #allocation0 [shape = 'u32[]', space=smem, size = 0x4, offset = 0x4, fixed_abs, tag = 'smem constant byte address 0x4 - core index']
  #allocation1 [shape = 'u32[144,128]{1,0:T(1,128)}', space=vmem, size = 0x12000, scoped, tag = 'internal scratch']
  #allocation2 [shape = 'f32[16,32]{1,0:T(8,128)}', space=vmem, size = 0x2000, scoped, tag = 'scratch operand']
  %s0 = inlined_call_operand.vmem [shape: bf16[16,648], index: 0, kind: input, shape index: {}]
  %s1 = inlined_call_operand.vmem [shape: bf16[16,648], index: 1, kind: input, shape index: {}]
  %s2 = inlined_call_operand.vmem [shape: bf16[648,32], index: 2, kind: input, shape index: {}]
  %s3 = inlined_call_operand.vmem [shape: bf16[648,32], index: 3, kind: input, shape index: {}]
  %s4 = inlined_call_operand.vmem [shape: f32[1,32], index: 4, kind: input, shape index: {}]
  %s5 = inlined_call_operand.vmem [shape: bf16[32,128], index: 5, kind: input, shape index: {}]
  %s6 = inlined_call_operand.vmem [shape: f32[1,128], index: 6, kind: input, shape index: {}]
  %s7 = inlined_call_operand.vmem [shape: bf16[16,128], index: 7, kind: output, shape index: {}]
  %s8 = sld [smem:[#allocation0]]
  $region46: #{_lambda_.8} parent=0
    _
  %s10 = ssub.s32 1, %s8
  %s11 = scalar_select 0, %s10, %s8
  // Predicated region
  $region2: #{_lambda_.8} parent=0 // pred_check
    _
  $region3: #{_lambda_.8} parent=0 // pred_check_branch
    %13 = sbr.rel (0) target = $region5
  $region4: #{_lambda_.8} parent=0 // pred_region
    _
  $region5: #{_lambda_.8} parent=0 // pred_fallthru
    _
  // Predicated region
  $region6: #{_lambda_.8} parent=0 // pred_check
    _
  $region7: #{_lambda_.8} parent=0 // pred_check_branch
    %15 = sbr.rel (0) target = $region9
  $region8: #{_lambda_.8} parent=0 // pred_region
    _
  $region9: #{_lambda_.8} parent=0 // pred_fallthru
    _
  // Predicated region
  $region10: #{_lambda_.8} parent=0 // pred_check
    _
  $region11: #{_lambda_.8} parent=0 // pred_check_branch
    %17 = sbr.rel (0) target = $region13
  $region12: #{_lambda_.8} parent=0 // pred_region
    _
  $region13: #{_lambda_.8} parent=0 // pred_fallthru
    _
  // Predicated region
  $region14: #{_lambda_.8} parent=0 // pred_check
    _
  $region15: #{_lambda_.8} parent=0 // pred_check_branch
    %19 = sbr.rel (0) target = $region17
  $region16: #{_lambda_.8} parent=0 // pred_region
    _
  $region17: #{_lambda_.8} parent=0 // pred_fallthru
    _
  // Predicated region
  $region18: #{_lambda_.8} parent=0 // pred_check
    _
  $region19: #{_lambda_.8} parent=0 // pred_check_branch
    %21 = sbr.rel (0) target = $region21
  $region20: #{_lambda_.8} parent=0 // pred_region
    _
  $region21: #{_lambda_.8} parent=0 // pred_fallthru
    _
  // Predicated region
  $region22: #{_lambda_.8} parent=0 // pred_check
    _
  $region23: #{_lambda_.8} parent=0 // pred_check_branch
    %23 = sbr.rel (0) target = $region25
  $region24: #{_lambda_.8} parent=0 // pred_region
    _
  $region25: #{_lambda_.8} parent=0 // pred_fallthru
    _
  // Predicated region
  $region26: #{_lambda_.8} parent=0 // pred_check
    _
  $region27: #{_lambda_.8} parent=0 // pred_check_branch
    %25 = sbr.rel (0) target = $region29
  $region28: #{_lambda_.8} parent=0 // pred_region
    _
  $region29: #{_lambda_.8} parent=0 // pred_fallthru
    _
  %p27 = scmp.eq.s32.totalorder 0, 0
  // Predicated region
  $region30: #{_lambda_.8} parent=0 // pred_check
    %p28 = pneg %p27
  $region31: #{_lambda_.8} parent=0 // pred_check_branch
    %30 = sbr.rel (%p28) target = $region33
  $region32: #{_lambda_.8} parent=0 // pred_region
    %vm31 = vcmask 261120
    %32 = vst.msk [vmem:[#allocation2] sm:$0xff] %vm31, 0.0
    %33 = vst.msk [vmem:[#allocation2 + $0x8] sm:$0xff] %vm31, 0.0
  $region33: #{_lambda_.8} parent=0 // pred_fallthru
    _
  %v34 = vld [vmem:[#allocation2] sm:$0xff]
  %v35 = vld [vmem:[#allocation2 + $0x8] sm:$0xff]
  %v36 = vld [vmem:[%s0] sm:$0xff]
  %v37 = vld [vmem:[%s0 + $0x8] sm:$0xff]
  %v38 = vld [vmem:[%s0 + $0x10] sm:$0xff]
  %v39 = vld [vmem:[%s0 + $0x18] sm:$0xff]
  %v40 = vld [vmem:[%s0 + $0x20] sm:$0xff]
  %v41 = vld [vmem:[%s0 + $0x28] sm:$0xff]
  %v42 = vld [vmem:[%s2] sm:$0xf]
  %v43 = vld [vmem:[%s2 + $0x4] sm:$0xf]
  %v44 = vld [vmem:[%s2 + $0x8] sm:$0xf]
  %v45 = vld [vmem:[%s2 + $0xc] sm:$0xf]
  %v46 = vld [vmem:[%s2 + $0x10] sm:$0xf]
  %v47 = vld [vmem:[%s2 + $0x14] sm:$0xf]
  %v48 = vld [vmem:[%s2 + $0x18] sm:$0xf]
  %v49 = vld [vmem:[%s2 + $0x1c] sm:$0xf]
  %v50 = vld [vmem:[%s2 + $0x20] sm:$0xf]
  %v51 = vld [vmem:[%s2 + $0x24] sm:$0xf]
  %v52 = vld [vmem:[%s2 + $0x28] sm:$0xf]
  %v53 = vld [vmem:[%s2 + $0x2c] sm:$0xf]
  %v54 = vld [vmem:[%s2 + $0x30] sm:$0xf]
  %v55 = vld [vmem:[%s2 + $0x34] sm:$0xf]
  %v56 = vld [vmem:[%s2 + $0x38] sm:$0xf]
  %v57 = vld [vmem:[%s2 + $0x3c] sm:$0xf]
  %v58 = vld [vmem:[%s2 + $0x40] sm:$0xf]
  %v59 = vld [vmem:[%s2 + $0x44] sm:$0xf]
  %v60 = vld [vmem:[%s2 + $0x48] sm:$0xf]
  %v61 = vld [vmem:[%s2 + $0x4c] sm:$0xf]
  %v62 = vld [vmem:[%s2 + $0x50] sm:$0xf]
  %v63 = vld [vmem:[%s2 + $0x54] sm:$0xf]
  %v64 = vld [vmem:[%s2 + $0x58] sm:$0xf]
  %v65 = vld [vmem:[%s2 + $0x5c] sm:$0xf]
  %v66 = vld [vmem:[%s2 + $0x60] sm:$0xf]
  %v67 = vld [vmem:[%s2 + $0x64] sm:$0xf]
  %v68 = vld [vmem:[%s2 + $0x68] sm:$0xf]
  %v69 = vld [vmem:[%s2 + $0x6c] sm:$0xf]
  %v70 = vld [vmem:[%s2 + $0x70] sm:$0xf]
  %v71 = vld [vmem:[%s2 + $0x74] sm:$0xf]
  %v72 = vld [vmem:[%s2 + $0x78] sm:$0xf]
  %v73 = vld [vmem:[%s2 + $0x7c] sm:$0xf]
  %v74 = vld [vmem:[%s2 + $0x80] sm:$0xf]
  %v75 = vld [vmem:[%s2 + $0x84] sm:$0xf]
  %v76 = vld [vmem:[%s2 + $0x88] sm:$0xf]
  %v77 = vld [vmem:[%s2 + $0x8c] sm:$0xf]
  %v78 = vld [vmem:[%s2 + $0x90] sm:$0xf]
  %v79 = vld [vmem:[%s2 + $0x94] sm:$0xf]
  %v80 = vld [vmem:[%s2 + $0x98] sm:$0xf]
  %v81 = vld [vmem:[%s2 + $0x9c] sm:$0xf]
  %v82 = vld [vmem:[%s2 + $0xa0] sm:$0xf]
  %v83 = vld [vmem:[%s2 + $0xa4] sm:$0xf]
  %v84 = vld [vmem:[%s2 + $0xa8] sm:$0xf]
  %v85 = vld [vmem:[%s2 + $0xac] sm:$0xf]
  %v86 = vld [vmem:[%s2 + $0xb0] sm:$0xf]
  %v87 = vld [vmem:[%s2 + $0xb4] sm:$0xf]
  %v88 = vld [vmem:[%s2 + $0xb8] sm:$0xf]
  %v89 = vld [vmem:[%s2 + $0xbc] sm:$0xf]
  %v90 = vld [vmem:[%s2 + $0xc0] sm:$0xf]
  %v91 = vld [vmem:[%s2 + $0xc4] sm:$0xf]
  %v92 = vld [vmem:[%s2 + $0xc8] sm:$0xf]
  %v93 = vld [vmem:[%s2 + $0xcc] sm:$0xf]
  %v94 = vld [vmem:[%s2 + $0xd0] sm:$0xf]
  %v95 = vld [vmem:[%s2 + $0xd4] sm:$0xf]
  %v96 = vld [vmem:[%s2 + $0xd8] sm:$0xf]
  %v97 = vld [vmem:[%s2 + $0xdc] sm:$0xf]
  %v98 = vld [vmem:[%s2 + $0xe0] sm:$0xf]
  %v99 = vld [vmem:[%s2 + $0xe4] sm:$0xf]
  %v100 = vld [vmem:[%s2 + $0xe8] sm:$0xf]
  %v101 = vld [vmem:[%s2 + $0xec] sm:$0xf]
  %v102 = vld [vmem:[%s2 + $0xf0] sm:$0xf]
  %v103 = vld [vmem:[%s2 + $0xf4] sm:$0xf]
  %v104 = vld [vmem:[%s2 + $0xf8] sm:$0xf]
  %v105 = vld [vmem:[%s2 + $0xfc] sm:$0xf]
  %v106 = vld [vmem:[%s2 + $0x100] sm:$0xf]
  %v107 = vld [vmem:[%s2 + $0x104] sm:$0xf]
  %v108 = vld [vmem:[%s2 + $0x108] sm:$0xf]
  %v109 = vld [vmem:[%s2 + $0x10c] sm:$0xf]
  %v110 = vld [vmem:[%s2 + $0x110] sm:$0xf]
  %v111 = vld [vmem:[%s2 + $0x114] sm:$0xf]
  %v112 = vld [vmem:[%s2 + $0x118] sm:$0xf]
  %v113 = vld [vmem:[%s2 + $0x11c] sm:$0xf]
  %v114 = vld [vmem:[%s2 + $0x120] sm:$0xf]
  %v115 = vld [vmem:[%s2 + $0x124] sm:$0xf]
  %v116 = vld [vmem:[%s2 + $0x128] sm:$0xf]
  %v117 = vld [vmem:[%s2 + $0x12c] sm:$0xf]
  %v118 = vld [vmem:[%s2 + $0x130] sm:$0xf]
  %v119 = vld [vmem:[%s2 + $0x134] sm:$0xf]
  %v120 = vld [vmem:[%s2 + $0x138] sm:$0xf]
  %v121 = vld [vmem:[%s2 + $0x13c] sm:$0xf]
  %v122 = vld [vmem:[%s2 + $0x140] sm:$0xf]
  %v123 = vld [vmem:[%s1] sm:$0xff]
  %v124 = vld [vmem:[%s1 + $0x8] sm:$0xff]
  %v125 = vld [vmem:[%s1 + $0x10] sm:$0xff]
  %v126 = vld [vmem:[%s1 + $0x18] sm:$0xff]
  %v127 = vld [vmem:[%s1 + $0x20] sm:$0xff]
  %v128 = vld [vmem:[%s1 + $0x28] sm:$0xff]
  %v129 = vld [vmem:[%s3] sm:$0xf]
  %v130 = vld [vmem:[%s3 + $0x4] sm:$0xf]
  %v131 = vld [vmem:[%s3 + $0x8] sm:$0xf]
  %v132 = vld [vmem:[%s3 + $0xc] sm:$0xf]
  %v133 = vld [vmem:[%s3 + $0x10] sm:$0xf]
  %v134 = vld [vmem:[%s3 + $0x14] sm:$0xf]
  %v135 = vld [vmem:[%s3 + $0x18] sm:$0xf]
  %v136 = vld [vmem:[%s3 + $0x1c] sm:$0xf]
  %v137 = vld [vmem:[%s3 + $0x20] sm:$0xf]
  %v138 = vld [vmem:[%s3 + $0x24] sm:$0xf]
  %v139 = vld [vmem:[%s3 + $0x28] sm:$0xf]
  %v140 = vld [vmem:[%s3 + $0x2c] sm:$0xf]
  %v141 = vld [vmem:[%s3 + $0x30] sm:$0xf]
  %v142 = vld [vmem:[%s3 + $0x34] sm:$0xf]
  %v143 = vld [vmem:[%s3 + $0x38] sm:$0xf]
  %v144 = vld [vmem:[%s3 + $0x3c] sm:$0xf]
  %v145 = vld [vmem:[%s3 + $0x40] sm:$0xf]
  %v146 = vld [vmem:[%s3 + $0x44] sm:$0xf]
  %v147 = vld [vmem:[%s3 + $0x48] sm:$0xf]
  %v148 = vld [vmem:[%s3 + $0x4c] sm:$0xf]
  %v149 = vld [vmem:[%s3 + $0x50] sm:$0xf]
  %v150 = vld [vmem:[%s3 + $0x54] sm:$0xf]
  %v151 = vld [vmem:[%s3 + $0x58] sm:$0xf]
  %v152 = vld [vmem:[%s3 + $0x5c] sm:$0xf]
  %v153 = vld [vmem:[%s3 + $0x60] sm:$0xf]
  %v154 = vld [vmem:[%s3 + $0x64] sm:$0xf]
  %v155 = vld [vmem:[%s3 + $0x68] sm:$0xf]
  %v156 = vld [vmem:[%s3 + $0x6c] sm:$0xf]
  %v157 = vld [vmem:[%s3 + $0x70] sm:$0xf]
  %v158 = vld [vmem:[%s3 + $0x74] sm:$0xf]
  %v159 = vld [vmem:[%s3 + $0x78] sm:$0xf]
  %v160 = vld [vmem:[%s3 + $0x7c] sm:$0xf]
  %v161 = vld [vmem:[%s3 + $0x80] sm:$0xf]
  %v162 = vld [vmem:[%s3 + $0x84] sm:$0xf]
  %v163 = vld [vmem:[%s3 + $0x88] sm:$0xf]
  %v164 = vld [vmem:[%s3 + $0x8c] sm:$0xf]
  %v165 = vld [vmem:[%s3 + $0x90] sm:$0xf]
  %v166 = vld [vmem:[%s3 + $0x94] sm:$0xf]
  %v167 = vld [vmem:[%s3 + $0x98] sm:$0xf]
  %v168 = vld [vmem:[%s3 + $0x9c] sm:$0xf]
  %v169 = vld [vmem:[%s3 + $0xa0] sm:$0xf]
  %v170 = vld [vmem:[%s3 + $0xa4] sm:$0xf]
  %v171 = vld [vmem:[%s3 + $0xa8] sm:$0xf]
  %v172 = vld [vmem:[%s3 + $0xac] sm:$0xf]
  %v173 = vld [vmem:[%s3 + $0xb0] sm:$0xf]
  %v174 = vld [vmem:[%s3 + $0xb4] sm:$0xf]
  %v175 = vld [vmem:[%s3 + $0xb8] sm:$0xf]
  %v176 = vld [vmem:[%s3 + $0xbc] sm:$0xf]
  %v177 = vld [vmem:[%s3 + $0xc0] sm:$0xf]
  %v178 = vld [vmem:[%s3 + $0xc4] sm:$0xf]
  %v179 = vld [vmem:[%s3 + $0xc8] sm:$0xf]
  %v180 = vld [vmem:[%s3 + $0xcc] sm:$0xf]
  %v181 = vld [vmem:[%s3 + $0xd0] sm:$0xf]
  %v182 = vld [vmem:[%s3 + $0xd4] sm:$0xf]
  %v183 = vld [vmem:[%s3 + $0xd8] sm:$0xf]
  %v184 = vld [vmem:[%s3 + $0xdc] sm:$0xf]
  %v185 = vld [vmem:[%s3 + $0xe0] sm:$0xf]
  %v186 = vld [vmem:[%s3 + $0xe4] sm:$0xf]
  %v187 = vld [vmem:[%s3 + $0xe8] sm:$0xf]
  %v188 = vld [vmem:[%s3 + $0xec] sm:$0xf]
  %v189 = vld [vmem:[%s3 + $0xf0] sm:$0xf]
  %v190 = vld [vmem:[%s3 + $0xf4] sm:$0xf]
  %v191 = vld [vmem:[%s3 + $0xf8] sm:$0xf]
  %v192 = vld [vmem:[%s3 + $0xfc] sm:$0xf]
  %v193 = vld [vmem:[%s3 + $0x100] sm:$0xf]
  %v194 = vld [vmem:[%s3 + $0x104] sm:$0xf]
  %v195 = vld [vmem:[%s3 + $0x108] sm:$0xf]
  %v196 = vld [vmem:[%s3 + $0x10c] sm:$0xf]
  %v197 = vld [vmem:[%s3 + $0x110] sm:$0xf]
  %v198 = vld [vmem:[%s3 + $0x114] sm:$0xf]
  %v199 = vld [vmem:[%s3 + $0x118] sm:$0xf]
  %v200 = vld [vmem:[%s3 + $0x11c] sm:$0xf]
  %v201 = vld [vmem:[%s3 + $0x120] sm:$0xf]
  %v202 = vld [vmem:[%s3 + $0x124] sm:$0xf]
  %v203 = vld [vmem:[%s3 + $0x128] sm:$0xf]
  %v204 = vld [vmem:[%s3 + $0x12c] sm:$0xf]
  %v205 = vld [vmem:[%s3 + $0x130] sm:$0xf]
  %v206 = vld [vmem:[%s3 + $0x134] sm:$0xf]
  %v207 = vld [vmem:[%s3 + $0x138] sm:$0xf]
  %v208 = vld [vmem:[%s3 + $0x13c] sm:$0xf]
  %v209 = vld [vmem:[%s3 + $0x140] sm:$0xf]
  %v216 = vunpack.c.l.b16 %v123
  %v217 = vunpack.c.h.b16 %v123
  %v218 = vunpack.c.l.b16 %v124
  %v219 = vunpack.c.h.b16 %v124
  %v220 = vunpack.c.l.b16 %v125
  %v221 = vunpack.c.h.b16 %v125
  %v222 = vunpack.c.l.b16 %v126
  %v223 = vunpack.c.h.b16 %v126
  %v224 = vunpack.c.l.b16 %v127
  %v225 = vunpack.c.h.b16 %v127
  %v226 = vunpack.c.l.b16 %v128
  %v227 = vunpack.c.h.b16 %v128
  %v228 = vpack.c.b16 %v222, %v216
  %v229 = vpack.c.b16 %v223, %v217
  %v230 = vpack.c.b16 %v224, %v218
  %v231 = vpack.c.b16 %v225, %v219
  %v232 = vpack.c.b16 %v226, %v220
  %v233 = vpack.c.b16 %v227, %v221
  %v320 = vunpack.c.l.b16 %v129
  %v321 = vunpack.c.l.b16 %v130
  %v322 = vunpack.c.l.b16 %v131
  %v323 = vunpack.c.l.b16 %v132
  %v324 = vunpack.c.l.b16 %v133
  %v325 = vunpack.c.l.b16 %v134
  %v326 = vunpack.c.l.b16 %v135
  %v327 = vunpack.c.l.b16 %v136
  %v328 = vunpack.c.l.b16 %v137
  %v329 = vunpack.c.l.b16 %v138
  %v330 = vunpack.c.l.b16 %v139
  %v331 = vunpack.c.l.b16 %v140
  %v332 = vunpack.c.l.b16 %v141
  %v333 = vunpack.c.l.b16 %v142
  %v334 = vunpack.c.l.b16 %v143
  %v335 = vunpack.c.l.b16 %v144
  %v336 = vunpack.c.l.b16 %v145
  %v337 = vunpack.c.l.b16 %v146
  %v338 = vunpack.c.l.b16 %v147
  %v339 = vunpack.c.l.b16 %v148
  %v340 = vunpack.c.l.b16 %v149
  %v341 = vunpack.c.l.b16 %v150
  %v342 = vunpack.c.l.b16 %v151
  %v343 = vunpack.c.l.b16 %v152
  %v344 = vunpack.c.l.b16 %v153
  %v345 = vunpack.c.l.b16 %v154
  %v346 = vunpack.c.l.b16 %v155
  %v347 = vunpack.c.l.b16 %v156
  %v348 = vunpack.c.l.b16 %v157
  %v349 = vunpack.c.l.b16 %v158
  %v350 = vunpack.c.l.b16 %v159
  %v351 = vunpack.c.l.b16 %v160
  %v352 = vunpack.c.l.b16 %v161
  %v353 = vunpack.c.l.b16 %v162
  %v354 = vunpack.c.l.b16 %v163
  %v355 = vunpack.c.l.b16 %v164
  %v356 = vunpack.c.l.b16 %v165
  %v357 = vunpack.c.l.b16 %v166
  %v358 = vunpack.c.l.b16 %v167
  %v359 = vunpack.c.l.b16 %v168
  %v360 = vunpack.c.l.b16 %v169
  %v361 = vunpack.c.l.b16 %v170
  %v362 = vunpack.c.l.b16 %v171
  %v363 = vunpack.c.l.b16 %v172
  %v364 = vunpack.c.l.b16 %v173
  %v365 = vunpack.c.l.b16 %v174
  %v366 = vunpack.c.l.b16 %v175
  %v367 = vunpack.c.l.b16 %v176
  %v368 = vunpack.c.l.b16 %v177
  %v369 = vunpack.c.l.b16 %v178
  %v370 = vunpack.c.l.b16 %v179
  %v371 = vunpack.c.l.b16 %v180
  %v372 = vunpack.c.l.b16 %v181
  %v373 = vunpack.c.l.b16 %v182
  %v374 = vunpack.c.l.b16 %v183
  %v375 = vunpack.c.l.b16 %v184
  %v376 = vunpack.c.l.b16 %v185
  %v377 = vunpack.c.l.b16 %v186
  %v378 = vunpack.c.l.b16 %v187
  %v379 = vunpack.c.l.b16 %v188
  %v380 = vunpack.c.l.b16 %v189
  %v381 = vunpack.c.l.b16 %v190
  %v382 = vunpack.c.l.b16 %v191
  %v383 = vunpack.c.l.b16 %v192
  %v384 = vunpack.c.l.b16 %v193
  %v385 = vunpack.c.l.b16 %v194
  %v386 = vunpack.c.l.b16 %v195
  %v387 = vunpack.c.l.b16 %v196
  %v388 = vunpack.c.l.b16 %v197
  %v389 = vunpack.c.l.b16 %v198
  %v390 = vunpack.c.l.b16 %v199
  %v391 = vunpack.c.l.b16 %v200
  %v392 = vunpack.c.l.b16 %v201
  %v393 = vunpack.c.l.b16 %v202
  %v394 = vunpack.c.l.b16 %v203
  %v395 = vunpack.c.l.b16 %v204
  %v396 = vunpack.c.l.b16 %v205
  %v397 = vunpack.c.l.b16 %v206
  %v398 = vunpack.c.l.b16 %v207
  %v399 = vunpack.c.l.b16 %v208
  %v400 = vunpack.c.l.b16 %v209
  %v401 = vpack.c.b16 %v321, %v320
  %v402 = vpack.c.b16 %v323, %v322
  %v403 = vpack.c.b16 %v325, %v324
  %v404 = vpack.c.b16 %v327, %v326
  %v405 = vpack.c.b16 %v329, %v328
  %v406 = vpack.c.b16 %v331, %v330
  %v407 = vpack.c.b16 %v333, %v332
  %v408 = vpack.c.b16 %v335, %v334
  %v409 = vpack.c.b16 %v337, %v336
  %v410 = vpack.c.b16 %v339, %v338
  %v411 = vpack.c.b16 %v341, %v340
  %v412 = vpack.c.b16 %v343, %v342
  %v413 = vpack.c.b16 %v345, %v344
  %v414 = vpack.c.b16 %v347, %v346
  %v415 = vpack.c.b16 %v349, %v348
  %v416 = vpack.c.b16 %v351, %v350
  %v417 = vpack.c.b16 %v353, %v352
  %v418 = vpack.c.b16 %v355, %v354
  %v419 = vpack.c.b16 %v357, %v356
  %v420 = vpack.c.b16 %v359, %v358
  %v421 = vpack.c.b16 %v361, %v360
  %v422 = vpack.c.b16 %v363, %v362
  %v423 = vpack.c.b16 %v365, %v364
  %v424 = vpack.c.b16 %v367, %v366
  %v425 = vpack.c.b16 %v369, %v368
  %v426 = vpack.c.b16 %v371, %v370
  %v427 = vpack.c.b16 %v373, %v372
  %v428 = vpack.c.b16 %v375, %v374
  %v429 = vpack.c.b16 %v377, %v376
  %v430 = vpack.c.b16 %v379, %v378
  %v431 = vpack.c.b16 %v381, %v380
  %v432 = vpack.c.b16 %v383, %v382
  %v433 = vpack.c.b16 %v385, %v384
  %v434 = vpack.c.b16 %v387, %v386
  %v435 = vpack.c.b16 %v389, %v388
  %v436 = vpack.c.b16 %v391, %v390
  %v437 = vpack.c.b16 %v393, %v392
  %v438 = vpack.c.b16 %v395, %v394
  %v439 = vpack.c.b16 %v397, %v396
  %v440 = vpack.c.b16 %v399, %v398
  %v441 = vpack.c.b16 %v400, %v400
  %vm482 = vcmask 64512
  %v484 = vsel %vm482, %v233, 0
  %vm486 = vcmask 1043456
  %v488 = vsel %vm486, %v441, 0
  %490 = vmatprep.subr.bf16.mxu0 0
  %491 = vmatpush1.bf16.msra.mxu0 %v408
  %492 = vmatprep.subr.bf16.mxu0 0
  %493 = vmatpush1.bf16.msra.mxu0 %v407
  %494 = vmatprep.subr.bf16.mxu0 0
  %495 = vmatpush1.bf16.msra.mxu0 %v406
  %496 = vmatprep.subr.bf16.mxu0 0
  %497 = vmatpush1.bf16.msra.mxu0 %v405
  %498 = vmatprep.subr.bf16.mxu0 0
  %499 = vmatpush1.bf16.msra.mxu0 %v404
  %500 = vmatprep.subr.bf16.mxu0 0
  %501 = vmatpush1.bf16.msra.mxu0 %v403
  %502 = vmatprep.subr.bf16.mxu0 0
  %503 = vmatpush1.bf16.msra.mxu0 %v402
  %504 = vmatprep.subr.bf16.mxu0 0
  %505 = vmatpush1.bf16.msra.mxu0 %v401
  %506 = vmatprep.subr.bf16.mxu0 0
  %507 = vmatpush2.bf16.msra.mxu0 %v416
  %508 = vmatprep.subr.bf16.mxu0 0
  %509 = vmatpush2.bf16.msra.mxu0 %v415
  %510 = vmatprep.subr.bf16.mxu0 0
  %511 = vmatpush2.bf16.msra.mxu0 %v414
  %512 = vmatprep.subr.bf16.mxu0 0
  %513 = vmatpush2.bf16.msra.mxu0 %v413
  %514 = vmatprep.subr.bf16.mxu0 0
  %515 = vmatpush2.bf16.msra.mxu0 %v412
  %516 = vmatprep.subr.bf16.mxu0 0
  %517 = vmatpush2.bf16.msra.mxu0 %v411
  %518 = vmatprep.subr.bf16.mxu0 0
  %519 = vmatpush2.bf16.msra.mxu0 %v410
  %520 = vmatprep.subr.bf16.mxu0 0
  %521 = vmatpush2.bf16.msra.mxu0 %v409
  %522 = vmatprep.mubr.bf16.mxu0 %v229
  %523 = vmatmul.mubr.bf16.gmra.mxu0 %v228
  %v524 = vpop.f32.mrf.mxu0
  %v525 = vadd.f32 0.0, %v524
  %v526 = vpop.f32.mrf.mxu0
  %v527 = vpop.f32.mrf.mxu0
  %v528 = vadd.f32 0.0, %v527
  %v529 = vpop.f32.mrf.mxu0
  %530 = vdwg.mxu0
  %531 = vmatprep.subr.bf16.mxu0 0
  %532 = vmatpush1.bf16.msra.mxu0 %v424
  %533 = vmatprep.subr.bf16.mxu0 0
  %534 = vmatpush1.bf16.msra.mxu0 %v423
  %535 = vmatprep.subr.bf16.mxu0 0
  %536 = vmatpush1.bf16.msra.mxu0 %v422
  %537 = vmatprep.subr.bf16.mxu0 0
  %538 = vmatpush1.bf16.msra.mxu0 %v421
  %539 = vmatprep.subr.bf16.mxu0 0
  %540 = vmatpush1.bf16.msra.mxu0 %v420
  %541 = vmatprep.subr.bf16.mxu0 0
  %542 = vmatpush1.bf16.msra.mxu0 %v419
  %543 = vmatprep.subr.bf16.mxu0 0
  %544 = vmatpush1.bf16.msra.mxu0 %v418
  %545 = vmatprep.subr.bf16.mxu0 0
  %546 = vmatpush1.bf16.msra.mxu0 %v417
  %547 = vmatprep.subr.bf16.mxu0 0
  %548 = vmatpush2.bf16.msra.mxu0 %v432
  %549 = vmatprep.subr.bf16.mxu0 0
  %550 = vmatpush2.bf16.msra.mxu0 %v431
  %551 = vmatprep.subr.bf16.mxu0 0
  %552 = vmatpush2.bf16.msra.mxu0 %v430
  %553 = vmatprep.subr.bf16.mxu0 0
  %554 = vmatpush2.bf16.msra.mxu0 %v429
  %555 = vmatprep.subr.bf16.mxu0 0
  %556 = vmatpush2.bf16.msra.mxu0 %v428
  %557 = vmatprep.subr.bf16.mxu0 0
  %558 = vmatpush2.bf16.msra.mxu0 %v427
  %559 = vmatprep.subr.bf16.mxu0 0
  %560 = vmatpush2.bf16.msra.mxu0 %v426
  %561 = vmatprep.subr.bf16.mxu0 0
  %562 = vmatpush2.bf16.msra.mxu0 %v425
  %563 = vmatprep.mubr.bf16.mxu0 %v231
  %564 = vmatmul.mubr.bf16.gmra.mxu0 %v230
  %v565 = vpop.f32.mrf.mxu0
  %v566 = vadd.f32 %v525, %v565
  %v567 = vpop.f32.mrf.mxu0
  %v568 = vpop.f32.mrf.mxu0
  %v569 = vadd.f32 %v528, %v568
  %v570 = vpop.f32.mrf.mxu0
  %571 = vdwg.mxu0
  %572 = vmatprep.subr.bf16.mxu0 0
  %573 = vmatpush1.bf16.msra.mxu0 %v440
  %574 = vmatprep.subr.bf16.mxu0 0
  %575 = vmatpush1.bf16.msra.mxu0 %v439
  %576 = vmatprep.subr.bf16.mxu0 0
  %577 = vmatpush1.bf16.msra.mxu0 %v438
  %578 = vmatprep.subr.bf16.mxu0 0
  %579 = vmatpush1.bf16.msra.mxu0 %v437
  %580 = vmatprep.subr.bf16.mxu0 0
  %581 = vmatpush1.bf16.msra.mxu0 %v436
  %582 = vmatprep.subr.bf16.mxu0 0
  %583 = vmatpush1.bf16.msra.mxu0 %v435
  %584 = vmatprep.subr.bf16.mxu0 0
  %585 = vmatpush1.bf16.msra.mxu0 %v434
  %586 = vmatprep.subr.bf16.mxu0 0
  %587 = vmatpush1.bf16.msra.mxu0 %v433
  %588 = vmatprep.subr.bf16.mxu0 0
  %589 = vmatpush2.bf16.msra.mxu0 0
  %590 = vmatprep.subr.bf16.mxu0 0
  %591 = vmatpush2.bf16.msra.mxu0 0
  %592 = vmatprep.subr.bf16.mxu0 0
  %593 = vmatpush2.bf16.msra.mxu0 0
  %594 = vmatprep.subr.bf16.mxu0 0
  %595 = vmatpush2.bf16.msra.mxu0 0
  %596 = vmatprep.subr.bf16.mxu0 0
  %597 = vmatpush2.bf16.msra.mxu0 0
  %598 = vmatprep.subr.bf16.mxu0 0
  %599 = vmatpush2.bf16.msra.mxu0 0
  %600 = vmatprep.subr.bf16.mxu0 0
  %601 = vmatpush2.bf16.msra.mxu0 0
  %602 = vmatprep.subr.bf16.mxu0 0
  %603 = vmatpush2.bf16.msra.mxu0 %v488
  %604 = vmatprep.mubr.bf16.mxu0 %v484
  %605 = vmatmul.mubr.bf16.gmra.mxu0 %v232
  %v606 = vpop.f32.mrf.mxu0
  %v607 = vadd.f32 %v566, %v606
  %v608 = vpop.f32.mrf.mxu0
  %v609 = vpop.f32.mrf.mxu0
  %v610 = vadd.f32 %v569, %v609
  %v611 = vpop.f32.mrf.mxu0
  %612 = vdwg.mxu0
  %v619 = vunpack.c.l.b16 %v36
  %v620 = vunpack.c.h.b16 %v36
  %v621 = vunpack.c.l.b16 %v37
  %v622 = vunpack.c.h.b16 %v37
  %v623 = vunpack.c.l.b16 %v38
  %v624 = vunpack.c.h.b16 %v38
  %v625 = vunpack.c.l.b16 %v39
  %v626 = vunpack.c.h.b16 %v39
  %v627 = vunpack.c.l.b16 %v40
  %v628 = vunpack.c.h.b16 %v40
  %v629 = vunpack.c.l.b16 %v41
  %v630 = vunpack.c.h.b16 %v41
  %v631 = vpack.c.b16 %v625, %v619
  %v632 = vpack.c.b16 %v626, %v620
  %v633 = vpack.c.b16 %v627, %v621
  %v634 = vpack.c.b16 %v628, %v622
  %v635 = vpack.c.b16 %v629, %v623
  %v636 = vpack.c.b16 %v630, %v624
  %v723 = vunpack.c.l.b16 %v42
  %v724 = vunpack.c.l.b16 %v43
  %v725 = vunpack.c.l.b16 %v44
  %v726 = vunpack.c.l.b16 %v45
  %v727 = vunpack.c.l.b16 %v46
  %v728 = vunpack.c.l.b16 %v47
  %v729 = vunpack.c.l.b16 %v48
  %v730 = vunpack.c.l.b16 %v49
  %v731 = vunpack.c.l.b16 %v50
  %v732 = vunpack.c.l.b16 %v51
  %v733 = vunpack.c.l.b16 %v52
  %v734 = vunpack.c.l.b16 %v53
  %v735 = vunpack.c.l.b16 %v54
  %v736 = vunpack.c.l.b16 %v55
  %v737 = vunpack.c.l.b16 %v56
  %v738 = vunpack.c.l.b16 %v57
  %v739 = vunpack.c.l.b16 %v58
  %v740 = vunpack.c.l.b16 %v59
  %v741 = vunpack.c.l.b16 %v60
  %v742 = vunpack.c.l.b16 %v61
  %v743 = vunpack.c.l.b16 %v62
  %v744 = vunpack.c.l.b16 %v63
  %v745 = vunpack.c.l.b16 %v64
  %v746 = vunpack.c.l.b16 %v65
  %v747 = vunpack.c.l.b16 %v66
  %v748 = vunpack.c.l.b16 %v67
  %v749 = vunpack.c.l.b16 %v68
  %v750 = vunpack.c.l.b16 %v69
  %v751 = vunpack.c.l.b16 %v70
  %v752 = vunpack.c.l.b16 %v71
  %v753 = vunpack.c.l.b16 %v72
  %v754 = vunpack.c.l.b16 %v73
  %v755 = vunpack.c.l.b16 %v74
  %v756 = vunpack.c.l.b16 %v75
  %v757 = vunpack.c.l.b16 %v76
  %v758 = vunpack.c.l.b16 %v77
  %v759 = vunpack.c.l.b16 %v78
  %v760 = vunpack.c.l.b16 %v79
  %v761 = vunpack.c.l.b16 %v80
  %v762 = vunpack.c.l.b16 %v81
  %v763 = vunpack.c.l.b16 %v82
  %v764 = vunpack.c.l.b16 %v83
  %v765 = vunpack.c.l.b16 %v84
  %v766 = vunpack.c.l.b16 %v85
  %v767 = vunpack.c.l.b16 %v86
  %v768 = vunpack.c.l.b16 %v87
  %v769 = vunpack.c.l.b16 %v88
  %v770 = vunpack.c.l.b16 %v89
  %v771 = vunpack.c.l.b16 %v90
  %v772 = vunpack.c.l.b16 %v91
  %v773 = vunpack.c.l.b16 %v92
  %v774 = vunpack.c.l.b16 %v93
  %v775 = vunpack.c.l.b16 %v94
  %v776 = vunpack.c.l.b16 %v95
  %v777 = vunpack.c.l.b16 %v96
  %v778 = vunpack.c.l.b16 %v97
  %v779 = vunpack.c.l.b16 %v98
  %v780 = vunpack.c.l.b16 %v99
  %v781 = vunpack.c.l.b16 %v100
  %v782 = vunpack.c.l.b16 %v101
  %v783 = vunpack.c.l.b16 %v102
  %v784 = vunpack.c.l.b16 %v103
  %v785 = vunpack.c.l.b16 %v104
  %v786 = vunpack.c.l.b16 %v105
  %v787 = vunpack.c.l.b16 %v106
  %v788 = vunpack.c.l.b16 %v107
  %v789 = vunpack.c.l.b16 %v108
  %v790 = vunpack.c.l.b16 %v109
  %v791 = vunpack.c.l.b16 %v110
  %v792 = vunpack.c.l.b16 %v111
  %v793 = vunpack.c.l.b16 %v112
  %v794 = vunpack.c.l.b16 %v113
  %v795 = vunpack.c.l.b16 %v114
  %v796 = vunpack.c.l.b16 %v115
  %v797 = vunpack.c.l.b16 %v116
  %v798 = vunpack.c.l.b16 %v117
  %v799 = vunpack.c.l.b16 %v118
  %v800 = vunpack.c.l.b16 %v119
  %v801 = vunpack.c.l.b16 %v120
  %v802 = vunpack.c.l.b16 %v121
  %v803 = vunpack.c.l.b16 %v122
  %v804 = vpack.c.b16 %v724, %v723
  %v805 = vpack.c.b16 %v726, %v725
  %v806 = vpack.c.b16 %v728, %v727
  %v807 = vpack.c.b16 %v730, %v729
  %v808 = vpack.c.b16 %v732, %v731
  %v809 = vpack.c.b16 %v734, %v733
  %v810 = vpack.c.b16 %v736, %v735
  %v811 = vpack.c.b16 %v738, %v737
  %v812 = vpack.c.b16 %v740, %v739
  %v813 = vpack.c.b16 %v742, %v741
  %v814 = vpack.c.b16 %v744, %v743
  %v815 = vpack.c.b16 %v746, %v745
  %v816 = vpack.c.b16 %v748, %v747
  %v817 = vpack.c.b16 %v750, %v749
  %v818 = vpack.c.b16 %v752, %v751
  %v819 = vpack.c.b16 %v754, %v753
  %v820 = vpack.c.b16 %v756, %v755
  %v821 = vpack.c.b16 %v758, %v757
  %v822 = vpack.c.b16 %v760, %v759
  %v823 = vpack.c.b16 %v762, %v761
  %v824 = vpack.c.b16 %v764, %v763
  %v825 = vpack.c.b16 %v766, %v765
  %v826 = vpack.c.b16 %v768, %v767
  %v827 = vpack.c.b16 %v770, %v769
  %v828 = vpack.c.b16 %v772, %v771
  %v829 = vpack.c.b16 %v774, %v773
  %v830 = vpack.c.b16 %v776, %v775
  %v831 = vpack.c.b16 %v778, %v777
  %v832 = vpack.c.b16 %v780, %v779
  %v833 = vpack.c.b16 %v782, %v781
  %v834 = vpack.c.b16 %v784, %v783
  %v835 = vpack.c.b16 %v786, %v785
  %v836 = vpack.c.b16 %v788, %v787
  %v837 = vpack.c.b16 %v790, %v789
  %v838 = vpack.c.b16 %v792, %v791
  %v839 = vpack.c.b16 %v794, %v793
  %v840 = vpack.c.b16 %v796, %v795
  %v841 = vpack.c.b16 %v798, %v797
  %v842 = vpack.c.b16 %v800, %v799
  %v843 = vpack.c.b16 %v802, %v801
  %v844 = vpack.c.b16 %v803, %v803
  %v886 = vsel %vm482, %v636, 0
  %v889 = vsel %vm486, %v844, 0
  %891 = vmatprep.subr.bf16.mxu0 0
  %892 = vmatpush1.bf16.msra.mxu0 %v811
  %893 = vmatprep.subr.bf16.mxu0 0
  %894 = vmatpush1.bf16.msra.mxu0 %v810
  %895 = vmatprep.subr.bf16.mxu0 0
  %896 = vmatpush1.bf16.msra.mxu0 %v809
  %897 = vmatprep.subr.bf16.mxu0 0
  %898 = vmatpush1.bf16.msra.mxu0 %v808
  %899 = vmatprep.subr.bf16.mxu0 0
  %900 = vmatpush1.bf16.msra.mxu0 %v807
  %901 = vmatprep.subr.bf16.mxu0 0
  %902 = vmatpush1.bf16.msra.mxu0 %v806
  %903 = vmatprep.subr.bf16.mxu0 0
  %904 = vmatpush1.bf16.msra.mxu0 %v805
  %905 = vmatprep.subr.bf16.mxu0 0
  %906 = vmatpush1.bf16.msra.mxu0 %v804
  %907 = vmatprep.subr.bf16.mxu0 0
  %908 = vmatpush2.bf16.msra.mxu0 %v819
  %909 = vmatprep.subr.bf16.mxu0 0
  %910 = vmatpush2.bf16.msra.mxu0 %v818
  %911 = vmatprep.subr.bf16.mxu0 0
  %912 = vmatpush2.bf16.msra.mxu0 %v817
  %913 = vmatprep.subr.bf16.mxu0 0
  %914 = vmatpush2.bf16.msra.mxu0 %v816
  %915 = vmatprep.subr.bf16.mxu0 0
  %916 = vmatpush2.bf16.msra.mxu0 %v815
  %917 = vmatprep.subr.bf16.mxu0 0
  %918 = vmatpush2.bf16.msra.mxu0 %v814
  %919 = vmatprep.subr.bf16.mxu0 0
  %920 = vmatpush2.bf16.msra.mxu0 %v813
  %921 = vmatprep.subr.bf16.mxu0 0
  %922 = vmatpush2.bf16.msra.mxu0 %v812
  %923 = vmatprep.mubr.bf16.mxu0 %v632
  %924 = vmatmul.mubr.bf16.gmra.mxu0 %v631
  %v925 = vpop.f32.mrf.mxu0
  %v926 = vadd.f32 %v607, %v925
  %v927 = vpop.f32.mrf.mxu0
  %v928 = vpop.f32.mrf.mxu0
  %v929 = vadd.f32 %v610, %v928
  %v930 = vpop.f32.mrf.mxu0
  %931 = vdwg.mxu0
  %932 = vmatprep.subr.bf16.mxu0 0
  %933 = vmatpush1.bf16.msra.mxu0 %v827
  %934 = vmatprep.subr.bf16.mxu0 0
  %935 = vmatpush1.bf16.msra.mxu0 %v826
  %936 = vmatprep.subr.bf16.mxu0 0
  %937 = vmatpush1.bf16.msra.mxu0 %v825
  %938 = vmatprep.subr.bf16.mxu0 0
  %939 = vmatpush1.bf16.msra.mxu0 %v824
  %940 = vmatprep.subr.bf16.mxu0 0
  %941 = vmatpush1.bf16.msra.mxu0 %v823
  %942 = vmatprep.subr.bf16.mxu0 0
  %943 = vmatpush1.bf16.msra.mxu0 %v822
  %944 = vmatprep.subr.bf16.mxu0 0
  %945 = vmatpush1.bf16.msra.mxu0 %v821
  %946 = vmatprep.subr.bf16.mxu0 0
  %947 = vmatpush1.bf16.msra.mxu0 %v820
  %948 = vmatprep.subr.bf16.mxu0 0
  %949 = vmatpush2.bf16.msra.mxu0 %v835
  %950 = vmatprep.subr.bf16.mxu0 0
  %951 = vmatpush2.bf16.msra.mxu0 %v834
  %952 = vmatprep.subr.bf16.mxu0 0
  %953 = vmatpush2.bf16.msra.mxu0 %v833
  %954 = vmatprep.subr.bf16.mxu0 0
  %955 = vmatpush2.bf16.msra.mxu0 %v832
  %956 = vmatprep.subr.bf16.mxu0 0
  %957 = vmatpush2.bf16.msra.mxu0 %v831
  %958 = vmatprep.subr.bf16.mxu0 0
  %959 = vmatpush2.bf16.msra.mxu0 %v830
  %960 = vmatprep.subr.bf16.mxu0 0
  %961 = vmatpush2.bf16.msra.mxu0 %v829
  %962 = vmatprep.subr.bf16.mxu0 0
  %963 = vmatpush2.bf16.msra.mxu0 %v828
  %964 = vmatprep.mubr.bf16.mxu0 %v634
  %965 = vmatmul.mubr.bf16.gmra.mxu0 %v633
  %v966 = vpop.f32.mrf.mxu0
  %v967 = vadd.f32 %v926, %v966
  %v968 = vpop.f32.mrf.mxu0
  %v969 = vpop.f32.mrf.mxu0
  %v970 = vadd.f32 %v929, %v969
  %v971 = vpop.f32.mrf.mxu0
  %972 = vdwg.mxu0
  %973 = vmatprep.subr.bf16.mxu0 0
  %974 = vmatpush1.bf16.msra.mxu0 %v843
  %975 = vmatprep.subr.bf16.mxu0 0
  %976 = vmatpush1.bf16.msra.mxu0 %v842
  %977 = vmatprep.subr.bf16.mxu0 0
  %978 = vmatpush1.bf16.msra.mxu0 %v841
  %979 = vmatprep.subr.bf16.mxu0 0
  %980 = vmatpush1.bf16.msra.mxu0 %v840
  %981 = vmatprep.subr.bf16.mxu0 0
  %982 = vmatpush1.bf16.msra.mxu0 %v839
  %983 = vmatprep.subr.bf16.mxu0 0
  %984 = vmatpush1.bf16.msra.mxu0 %v838
  %985 = vmatprep.subr.bf16.mxu0 0
  %986 = vmatpush1.bf16.msra.mxu0 %v837
  %987 = vmatprep.subr.bf16.mxu0 0
  %988 = vmatpush1.bf16.msra.mxu0 %v836
  %989 = vmatprep.subr.bf16.mxu0 0
  %990 = vmatpush2.bf16.msra.mxu0 0
  %991 = vmatprep.subr.bf16.mxu0 0
  %992 = vmatpush2.bf16.msra.mxu0 0
  %993 = vmatprep.subr.bf16.mxu0 0
  %994 = vmatpush2.bf16.msra.mxu0 0
  %995 = vmatprep.subr.bf16.mxu0 0
  %996 = vmatpush2.bf16.msra.mxu0 0
  %997 = vmatprep.subr.bf16.mxu0 0
  %998 = vmatpush2.bf16.msra.mxu0 0
  %999 = vmatprep.subr.bf16.mxu0 0
  %1000 = vmatpush2.bf16.msra.mxu0 0
  %1001 = vmatprep.subr.bf16.mxu0 0
  %1002 = vmatpush2.bf16.msra.mxu0 0
  %1003 = vmatprep.subr.bf16.mxu0 0
  %1004 = vmatpush2.bf16.msra.mxu0 %v889
  %1005 = vmatprep.mubr.bf16.mxu0 %v886
  %1006 = vmatmul.mubr.bf16.gmra.mxu0 %v635
  %v1007 = vpop.f32.mrf.mxu0
  %v1008 = vadd.f32 %v967, %v1007
  %v1009 = vpop.f32.mrf.mxu0
  %v1010 = vpop.f32.mrf.mxu0
  %v1011 = vadd.f32 %v970, %v1010
  %v1012 = vpop.f32.mrf.mxu0
  %1013 = vdwg.mxu0
  %v1014 = vadd.f32 %v34, %v1008
  %v1015 = vadd.f32 %v35, %v1011
  %vm1016 = vcmask 261120
  %1017 = vst.msk [vmem:[#allocation2] sm:$0xff] %vm1016, %v1014
  %1018 = vst.msk [vmem:[#allocation2 + $0x8] sm:$0xff] %vm1016, %v1015
  // Predicated region
  $region34: #{_lambda_.8} parent=0 // pred_check
    %p1019 = pneg %p27
  $region35: #{_lambda_.8} parent=0 // pred_check_branch
    %1021 = sbr.rel (%p1019) target = $region37
  $region36: #{_lambda_.8} parent=0 // pred_region
    %v1022 = vld [vmem:[#allocation2] sm:$0xff]
    %v1023 = vld [vmem:[#allocation2 + $0x8] sm:$0xff]
    %v1024 = vld [vmem:[%s4] sm:$0x1]
    %v1026 = vlaneseq
    %v1027 = vshrl.u32 %v1026, 7
    %v1028 = vsub.s32 0, %v1027
    %v1029 = vrot.slane %v1024, %v1028
    %v1031 = vadd.f32 %v1022, %v1029
    %v1032 = vadd.f32 %v1023, %v1029
    %v1033 = vpack.c.bf16 %v1032, %v1031
    %v1034 = vld [vmem:[%s5] sm:$0xf]
    %v1035 = vld [vmem:[%s5 + $0x4] sm:$0xf]
    %v1036 = vld [vmem:[%s5 + $0x8] sm:$0xf]
    %v1037 = vld [vmem:[%s5 + $0xc] sm:$0xf]
    %v1038 = vld [vmem:[%s6] sm:$0x1]
    %v1040 = vlaneseq
    %v1041 = vshrl.u32 %v1040, 7
    %v1042 = vsub.s32 0, %v1041
    %v1043 = vrot.slane %v1038, %v1042
    %v1049 = vunpack.c.l.b16 %v1034
    %v1050 = vunpack.c.l.b16 %v1035
    %v1051 = vunpack.c.l.b16 %v1036
    %v1052 = vunpack.c.l.b16 %v1037
    %v1053 = vpack.c.b16 %v1050, %v1049
    %v1054 = vpack.c.b16 %v1052, %v1051
    %v1058 = vsel %vm1016, %v1033, 0
    %1060 = vmatprep.subr.bf16.mxu0 0
    %1061 = vmatpush1.bf16.msra.mxu0 0
    %1062 = vmatprep.subr.bf16.mxu0 0
    %1063 = vmatpush1.bf16.msra.mxu0 0
    %1064 = vmatprep.subr.bf16.mxu0 0
    %1065 = vmatpush1.bf16.msra.mxu0 0
    %1066 = vmatprep.subr.bf16.mxu0 0
    %1067 = vmatpush1.bf16.msra.mxu0 0
    %1068 = vmatprep.subr.bf16.mxu0 0
    %1069 = vmatpush1.bf16.msra.mxu0 0
    %1070 = vmatprep.subr.bf16.mxu0 0
    %1071 = vmatpush1.bf16.msra.mxu0 0
    %1072 = vmatprep.subr.bf16.mxu0 0
    %1073 = vmatpush1.bf16.msra.mxu0 %v1054
    %1074 = vmatprep.subr.bf16.mxu0 0
    %1075 = vmatpush1.bf16.msra.mxu0 %v1053
    %1076 = vmatprep.subr.bf16.mxu0 0
    %1077 = vmatpush2.bf16.msra.mxu0 0
    %1078 = vmatprep.subr.bf16.mxu0 0
    %1079 = vmatpush2.bf16.msra.mxu0 0
    %1080 = vmatprep.subr.bf16.mxu0 0
    %1081 = vmatpush2.bf16.msra.mxu0 0
    %1082 = vmatprep.subr.bf16.mxu0 0
    %1083 = vmatpush2.bf16.msra.mxu0 0
    %1084 = vmatprep.subr.bf16.mxu0 0
    %1085 = vmatpush2.bf16.msra.mxu0 0
    %1086 = vmatprep.subr.bf16.mxu0 0
    %1087 = vmatpush2.bf16.msra.mxu0 0
    %1088 = vmatprep.subr.bf16.mxu0 0
    %1089 = vmatpush2.bf16.msra.mxu0 0
    %1090 = vmatprep.subr.bf16.mxu0 0
    %1091 = vmatpush2.bf16.msra.mxu0 0
    %1092 = vmatprep.mubr.bf16.mxu0 0
    %1093 = vmatmul.mubr.bf16.gmra.mxu0 %v1058
    %v1094 = vpop.f32.mrf.mxu0
    %v1095 = vadd.f32 %v1043, %v1094
    %v1096 = vpop.f32.mrf.mxu0
    %v1097 = vpop.f32.mrf.mxu0
    %v1098 = vadd.f32 %v1043, %v1097
    %v1099 = vpop.f32.mrf.mxu0
    %1100 = vdwg.mxu0
    %v1101 = vpack.c.bf16 %v1098, %v1095
    %v1103 = vunpack.c.l.b16 %v1101
    %v1104 = vunpack.c.h.b16 %v1101
    %v1105 = vpack.c.b16 %v1103, %v1103
    %v1106 = vpack.c.b16 %v1104, %v1104
    %1109 = vst [vmem:[%s7] sm:$0xf] %v1105
    %1110 = vst [vmem:[%s7 + $0x4] sm:$0xf] %v1106
  $region37: #{_lambda_.8} parent=0 // pred_fallthru
    _
  // Predicated region
  $region38: #{_lambda_.8} parent=0 // pred_check
    _
  $region39: #{_lambda_.8} parent=0 // pred_check_branch
    %1112 = sbr.rel (0) target = $region41
  $region40: #{_lambda_.8} parent=0 // pred_region
    _
  $region41: #{_lambda_.8} parent=0 // pred_fallthru
    _
  // Predicated region
  $region42: #{_lambda_.8} parent=0 // pred_check
    _
  $region43: #{_lambda_.8} parent=0 // pred_check_branch
    %1114 = sbr.rel (0) target = $region45
  $region44: #{_lambda_.8} parent=0 // pred_region
    _
  $region45: #{_lambda_.8} parent=0 // pred_fallthru
    _

// kernel: _lambda_.10
$region0: #{_lambda_.10}
  #allocation0 [shape = 'u32[]', space=smem, size = 0x4, offset = 0x4, fixed_abs, tag = 'smem constant byte address 0x4 - core index']
  #allocation1 [shape = 'u32[144,128]{1,0:T(1,128)}', space=vmem, size = 0x12000, scoped, tag = 'internal scratch']
  #allocation2 [shape = 'f32[8,32]{1,0:T(8,128)}', space=vmem, size = 0x1000, scoped, tag = 'scratch operand']
  #allocation3 [shape = 'f32[8,32]{1,0:T(8,128)}', space=vmem, size = 0x1000, scoped, tag = 'scratch operand']
  %s0 = inlined_call_operand.vmem [shape: bf16[2,2,8,128], index: 0, kind: input, shape index: {}]
  %s1 = inlined_call_operand.vmem [shape: bf16[2,32,128], index: 1, kind: input, shape index: {}]
  %s2 = inlined_call_operand.vmem [shape: bf16[2,2,8,32], index: 2, kind: output, shape index: {}]
  %s3 = sld [smem:[#allocation0]]
  $region45: #{_lambda_.10} parent=0
    _
  %s5 = ssub.s32 1, %s3
  %s6 = scalar_select 0, %s5, %s3
  loop: start=0, step=1, limit=6
  $region2: #{_lambda_.10} parent=0 // loop_pre_header
    _
  $region3: #{_lambda_.10} parent=0 // loop_header
    %s8 = sphi 0, %s12
    %p9 = scmp.ge.s32.totalorder %s8, 6
    %s15 = sphi 0, %s27
    %s16 = sphi 0, %s23
    %s17 = sphi 0, %s15
    %s18 = sphi 0, %s16
    %s19 = sphi 0, %s17
    %s20 = sphi 0, %s18
    %s32 = sphi 0, %s34
    %s35 = sphi 0, %s32
    %s36 = sphi 0, %s35
    %s52 = sphi 0, %s36
    %s58 = sphi 0, %s60
    %s61 = sphi 0, %s58
    %s62 = sphi 0, %s61
    %s78 = sphi 0, %s62
    %s86 = sphi 0, %s88
    %s89 = sphi 0, %s86
    %s90 = sphi 0, %s89
    %s106 = sphi 0, %s90
  $region4: #{_lambda_.10} parent=0 // loop_header_branch
    %11 = sbr.rel (%p9) target = $region8
  $region5: #{_lambda_.10} parent=0 // loop_body
    %s13 = ssub.s32 %s8, 1
    %s14 = ssub.s32 %s8, 2
    %s21 = sadd.s32 1, %s16
    %p22 = scmp.ge.s32.totalorder %s21, 2
    %s23 = scalar_select %p22, 0, %s21
    %s24 = sadd.s32 1, %s15
    %s25 = scalar_select %p22, %s24, %s15
    %p26 = scmp.ge.s32.totalorder %s25, 2
    %s27 = scalar_select %p26, 0, %s25
    %s28 = ssub.s32 %s15, %s27
    %s29 = ssub.s32 %s16, %s23
    %s30 = sor.u32 %s28, %s29
    %p31 = scmp.eq.s32.totalorder %s30, 0
    %s33 = sadd.s32 %s32, 1
    %s34 = scalar_select %p31, %s32, %s33
    %p37 = pneg %p31
    %p38 = scmp.eq.s32.totalorder %s8, 3
    %p39 = por %p37, %p38
    %p40 = scmp.ne.s32.totalorder %s32, %s35
    %p41 = scmp.eq.s32.totalorder %s8, 0
    %p42 = por %p40, %p41
    %p43 = scmp.ne.s32.totalorder %s32, %s35
    %p44 = scmp.eq.s32.totalorder %s13, 3
    %p45 = por %p43, %p44
    %p46 = scmp.ne.s32.totalorder %s35, %s36
    %p47 = scmp.eq.s32.totalorder %s13, 0
    %p48 = por %p46, %p47
    %p49 = scmp.ne.s32.totalorder %s35, %s36
    %p50 = scmp.eq.s32.totalorder %s14, 3
    %p51 = por %p49, %p50
    %p53 = scmp.ne.s32.totalorder %s36, %s52
    %p54 = scmp.eq.s32.totalorder %s14, 0
    %p55 = por %p53, %p54
    %s56 = ssub.s32 %s15, %s27
    %p57 = scmp.eq.s32.totalorder %s56, 0
    %s59 = sadd.s32 %s58, 1
    %s60 = scalar_select %p57, %s58, %s59
    %p63 = pneg %p57
    %p64 = scmp.eq.s32.totalorder %s8, 3
    %p65 = por %p63, %p64
    %p66 = scmp.ne.s32.totalorder %s58, %s61
    %p67 = scmp.eq.s32.totalorder %s8, 0
    %p68 = por %p66, %p67
    %p69 = scmp.ne.s32.totalorder %s58, %s61
    %p70 = scmp.eq.s32.totalorder %s13, 3
    %p71 = por %p69, %p70
    %p72 = scmp.ne.s32.totalorder %s61, %s62
    %p73 = scmp.eq.s32.totalorder %s13, 0
    %p74 = por %p72, %p73
    %p75 = scmp.ne.s32.totalorder %s61, %s62
    %p76 = scmp.eq.s32.totalorder %s14, 3
    %p77 = por %p75, %p76
    %p79 = scmp.ne.s32.totalorder %s62, %s78
    %p80 = scmp.eq.s32.totalorder %s14, 0
    %p81 = por %p79, %p80
    %s82 = ssub.s32 %s15, %s27
    %s83 = ssub.s32 %s16, %s23
    %s84 = sor.u32 %s82, %s83
    %p85 = scmp.eq.s32.totalorder %s84, 0
    %s87 = sadd.s32 %s86, 1
    %s88 = scalar_select %p85, %s86, %s87
    %p91 = pneg %p85
    %p92 = scmp.eq.s32.totalorder %s8, 3
    %p93 = por %p91, %p92
    %p94 = scmp.ne.s32.totalorder %s86, %s89
    %p95 = scmp.eq.s32.totalorder %s8, 0
    %p96 = por %p94, %p95
    %p97 = scmp.ne.s32.totalorder %s86, %s89
    %p98 = scmp.eq.s32.totalorder %s13, 3
    %p99 = por %p97, %p98
    %p100 = scmp.ne.s32.totalorder %s89, %s90
    %p101 = scmp.eq.s32.totalorder %s13, 0
    %p102 = por %p100, %p101
    %p103 = scmp.ne.s32.totalorder %s89, %s90
    %p104 = scmp.eq.s32.totalorder %s14, 3
    %p105 = por %p103, %p104
    %p107 = scmp.ne.s32.totalorder %s90, %s106
    %p108 = scmp.eq.s32.totalorder %s14, 0
    %p109 = por %p107, %p108
    %p110 = scmp.le.s32.totalorder 1, %s8
    %p111 = scmp.lt.s32.totalorder %s8, 5
    %p112 = pnand %p110, %p111
    %p113 = pneg %p112
    // Predicated region
    $region9: #{_lambda_.10} parent=5 // pred_check
      _
    $region10: #{_lambda_.10} parent=5 // pred_check_branch
      %115 = sbr.rel (%p112) target = $region12
    $region11: #{_lambda_.10} parent=5 // pred_region
      %s116 = ssub.s32 %s8, 1
    $region12: #{_lambda_.10} parent=5 // pred_fallthru
      _
    %p117 = scmp.lt.s32.totalorder %s8, 4
    // Predicated region
    $region13: #{_lambda_.10} parent=5 // pred_check
      %p118 = pneg %p117
    $region14: #{_lambda_.10} parent=5 // pred_check_branch
      %120 = sbr.rel (%p118) target = $region16
    $region15: #{_lambda_.10} parent=5 // pred_region
      // Predicated region
      $region17: #{_lambda_.10} parent=15 // pred_check
        %p121 = pneg %p42
      $region18: #{_lambda_.10} parent=15 // pred_check_branch
        %123 = sbr.rel (%p121) target = $region20
      $region19: #{_lambda_.10} parent=15 // pred_region
        %p124 = scmp.lt.s32.totalorder %s15, 1
        %s125 = scalar_select %p124, %s15, 1
        %p126 = scmp.lt.s32.totalorder %s16, 1
        %s127 = scalar_select %p126, %s16, 1
        %s128 = smul.addr %s125, 2
        %s129 = sadd.s32 %s127, %s128
        %s130 = smul.addr %s129, 4
        %s131 = scalar_lea.vmem %s0, %s130
      $region20: #{_lambda_.10} parent=15 // pred_fallthru
        _
      // Predicated region
      $region21: #{_lambda_.10} parent=15 // pred_check
        %p132 = pneg %p68
      $region22: #{_lambda_.10} parent=15 // pred_check_branch
        %134 = sbr.rel (%p132) target = $region24
      $region23: #{_lambda_.10} parent=15 // pred_region
        %p135 = scmp.lt.s32.totalorder %s15, 1
        %s136 = scalar_select %p135, %s15, 1
        %s137 = smul.addr %s136, 4
        %s138 = smul.addr %s137, 4
        %s139 = scalar_lea.vmem %s1, %s138
      $region24: #{_lambda_.10} parent=15 // pred_fallthru
        _
    $region16: #{_lambda_.10} parent=5 // pred_fallthru
      _
    %p140 = scmp.le.s32.totalorder 1, %s8
    %p141 = scmp.lt.s32.totalorder %s8, 5
    %p142 = pnand %p140, %p141
    %p143 = pneg %p142
    // Predicated region
    $region25: #{_lambda_.10} parent=5 // pred_check
      _
    $region26: #{_lambda_.10} parent=5 // pred_check_branch
      %145 = sbr.rel (%p142) target = $region28
    $region27: #{_lambda_.10} parent=5 // pred_region
      %s146 = ssub.s32 %s8, 1
      %p147 = scmp.lt.s32.totalorder %s17, 1
      %s148 = scalar_select %p147, %s17, 1
      %p149 = scmp.lt.s32.totalorder %s18, 1
      %s150 = scalar_select %p149, %s18, 1
      %s151 = smul.addr %s148, 2
      %s152 = sadd.s32 %s150, %s151
      %s153 = smul.addr %s152, 4
      %s154 = scalar_lea.vmem %s0, %s153
      %p155 = pneg %p48
      %p156 = pneg %p45
      %p157 = scmp.lt.s32.totalorder %s17, 1
      %s158 = scalar_select %p157, %s17, 1
      %s159 = smul.addr %s158, 4
      %s160 = smul.addr %s159, 4
      %s161 = scalar_lea.vmem %s1, %s160
      %p162 = pneg %p74
      %p163 = pneg %p71
      %p164 = pneg %p102
      %p165 = pneg %p99
      %p166 = scmp.lt.s32.totalorder %s17, 1
      %s167 = scalar_select %p166, %s17, 1
      %p168 = scmp.lt.s32.totalorder %s18, 1
      %s169 = scalar_select %p168, %s18, 1
      %s170 = smul.addr %s167, 2
      %s171 = sadd.s32 %s169, %s170
      %s172 = smul.addr %s171, 4
      %s173 = scalar_lea.vmem %s2, %s172
      %p174 = scmp.lt.s32.totalorder %s17, 1
      %s175 = scalar_select %p174, %s17, 1
      %p176 = scmp.lt.s32.totalorder %s18, 1
      %s177 = scalar_select %p176, %s18, 1
      %s178 = smul.addr %s175, 2
      %s179 = sadd.s32 %s177, %s178
      %s180 = smul.addr %s179, 4
      %s181 = scalar_lea.vmem %s0, %s180
      %p182 = scmp.lt.s32.totalorder %s17, 1
      %s183 = scalar_select %p182, %s17, 1
      %s184 = smul.addr %s183, 4
      %s185 = smul.addr %s184, 4
      %s186 = scalar_lea.vmem %s1, %s185
      %p187 = scmp.lt.s32.totalorder %s17, 1
      %s188 = scalar_select %p187, %s17, 1
      %p189 = scmp.lt.s32.totalorder %s18, 1
      %s190 = scalar_select %p189, %s18, 1
      %s191 = smul.addr %s188, 2
      %s192 = sadd.s32 %s190, %s191
      %s193 = smul.addr %s192, 4
      %s194 = scalar_lea.vmem %s2, %s193
      %p196 = scmp.eq.s32.totalorder %s18, 0
      // Predicated region
      $region29: #{_lambda_.10} parent=27 // pred_check
        %p197 = pneg %p196
      $region30: #{_lambda_.10} parent=27 // pred_check_branch
        %199 = sbr.rel (%p197) target = $region32
      $region31: #{_lambda_.10} parent=27 // pred_region
        %vm200 = vcmask 261120
        %201 = vst.msk [vmem:[#allocation2] sm:$0xff] %vm200, 0.0
        %202 = vst.msk [vmem:[#allocation3] sm:$0xff] %vm200, 0.0
      $region32: #{_lambda_.10} parent=27 // pred_fallthru
        _
      %v203 = vld [vmem:[#allocation2] sm:$0xff]
      %v204 = vpack.c.bf16 %v203, %v203
      %v205 = vld [vmem:[%s181] sm:$0xf]
      %v206 = vunpack.c.l.bf16 %v205
      %v207 = vld [vmem:[%s186] sm:$0xf]
      %v208 = vld [vmem:[%s186 + $0x4] sm:$0xf]
      %v209 = vld [vmem:[%s186 + $0x8] sm:$0xf]
      %v210 = vld [vmem:[%s186 + $0xc] sm:$0xf]
      %v215 = vunpack.c.l.b16 %v207
      %v216 = vunpack.c.l.b16 %v208
      %v217 = vunpack.c.l.b16 %v209
      %v218 = vunpack.c.l.b16 %v210
      %v219 = vpack.c.b16 %v216, %v215
      %v220 = vpack.c.b16 %v218, %v217
      %vm223 = vcmask 261120
      %v225 = vsel %vm223, %v204, 0
      %227 = vmatprep.subr.bf16.mxu0 0
      %228 = vmatpush1.bf16.msra.mxu0 0
      %229 = vmatprep.subr.bf16.mxu0 0
      %230 = vmatpush1.bf16.msra.mxu0 0
      %231 = vmatprep.subr.bf16.mxu0 0
      %232 = vmatpush1.bf16.msra.mxu0 0
      %233 = vmatprep.subr.bf16.mxu0 0
      %234 = vmatpush1.bf16.msra.mxu0 0
      %235 = vmatprep.subr.bf16.mxu0 0
      %236 = vmatpush1.bf16.msra.mxu0 0
      %237 = vmatprep.subr.bf16.mxu0 0
      %238 = vmatpush1.bf16.msra.mxu0 0
      %239 = vmatprep.subr.bf16.mxu0 0
      %240 = vmatpush1.bf16.msra.mxu0 %v220
      %241 = vmatprep.subr.bf16.mxu0 0
      %242 = vmatpush1.bf16.msra.mxu0 %v219
      %243 = vmatprep.subr.bf16.mxu0 0
      %244 = vmatpush2.bf16.msra.mxu0 0
      %245 = vmatprep.subr.bf16.mxu0 0
      %246 = vmatpush2.bf16.msra.mxu0 0
      %247 = vmatprep.subr.bf16.mxu0 0
      %248 = vmatpush2.bf16.msra.mxu0 0
      %249 = vmatprep.subr.bf16.mxu0 0
      %250 = vmatpush2.bf16.msra.mxu0 0
      %251 = vmatprep.subr.bf16.mxu0 0
      %252 = vmatpush2.bf16.msra.mxu0 0
      %253 = vmatprep.subr.bf16.mxu0 0
      %254 = vmatpush2.bf16.msra.mxu0 0
      %255 = vmatprep.subr.bf16.mxu0 0
      %256 = vmatpush2.bf16.msra.mxu0 0
      %257 = vmatprep.subr.bf16.mxu0 0
      %258 = vmatpush2.bf16.msra.mxu0 0
      %259 = vmatprep.mubr.bf16.mxu0 0
      %260 = vmatmul.mubr.bf16.gmra.mxu0 %v225
      %v261 = vpop.f32.mrf.mxu0
      %v262 = vadd.f32 0.0, %v261
      %v263 = vpop.f32.mrf.mxu0
      %v264 = vpop.f32.mrf.mxu0
      %v265 = vpop.f32.mrf.mxu0
      %266 = vdwg.mxu0
      %v267 = vadd.f32 %v206, %v262
      %v268 = vxor.u32 %v267, 2147483648
      %v269 = vmul.f32 %v268, 1.442695
      %v270 = vpow.pop %v269
      %v271 = vadd.f32 %v270, 1.0
      %v272 = vrcp.pop %v271
      %v273 = vmul.f32 1.0, %v272
      %v274 = vtanh.pop %v267
      %v275 = vld [vmem:[#allocation3] sm:$0xff]
      %277 = vrot.lane.b32.xlu0 %v275, 32
      %v278 = vpop.permute.xlu0 %277
      %v280 = vmul.f32 %v273, %v278
      %282 = vrot.lane.b32.xlu0 %v274, 64
      %v283 = vpop.permute.xlu0 %282
      %v285 = vmul.f32 %v273, %v283
      %287 = vrot.lane.b32.xlu0 %v285, 32
      %v288 = vpop.permute.xlu0 %287
      %v290 = vadd.f32 %v280, %v288
      %v291 = vtanh.pop %v290
      %293 = vrot.lane.b32.xlu0 %v291, 64
      %v294 = vpop.permute.xlu0 %293
      %v296 = vmul.f32 %v273, %v294
      %298 = vrot.lane.b32.xlu0 %v290, 96
      %v299 = vpop.permute.xlu0 %298
      %301 = vst.msk [vmem:[#allocation3] sm:$0xff] %vm223, %v299
      %303 = vrot.lane.b32.xlu0 %v296, 32
      %v304 = vpop.permute.xlu0 %303
      %306 = vst.msk [vmem:[#allocation2] sm:$0xff] %vm223, %v304
      %v307 = vpack.c.bf16 %v296, %v296
      %v309 = vunpack.c.l.b16 %v307
      %v310 = vpack.c.b16 %v309, %v309
      %311 = vrot.lane.b32.xlu0 %v310, 32
      %v312 = vpop.permute.xlu0 %311
      %vm314 = vcmask 257024
      %315 = vst.msk [vmem:[%s194] sm:$0xf] %vm314, %v312
      %p316 = scmp.lt.s32.totalorder %s17, 1
      %s317 = scalar_select %p316, %s17, 1
      %p318 = scmp.lt.s32.totalorder %s18, 1
      %s319 = scalar_select %p318, %s18, 1
      %s320 = smul.addr %s317, 2
      %s321 = sadd.s32 %s319, %s320
      %s322 = smul.addr %s321, 4
      %s323 = scalar_lea.vmem %s2, %s322
      // Predicated region
      $region33: #{_lambda_.10} parent=27 // pred_check
        %p324 = pneg %p99
      $region34: #{_lambda_.10} parent=27 // pred_check_branch
        %326 = sbr.rel (%p324) target = $region36
      $region35: #{_lambda_.10} parent=27 // pred_region
        _
      $region36: #{_lambda_.10} parent=27 // pred_fallthru
        _
    $region28: #{_lambda_.10} parent=5 // pred_fallthru
      _
    %p327 = scmp.le.s32.totalorder 2, %s8
    // Predicated region
    $region37: #{_lambda_.10} parent=5 // pred_check
      %p328 = pneg %p327
    $region38: #{_lambda_.10} parent=5 // pred_check_branch
      %330 = sbr.rel (%p328) target = $region40
    $region39: #{_lambda_.10} parent=5 // pred_region
      %s331 = ssub.s32 %s8, 2
      // Predicated region
      $region41: #{_lambda_.10} parent=39 // pred_check
        %p332 = pneg %p105
      $region42: #{_lambda_.10} parent=39 // pred_check_branch
        %334 = sbr.rel (%p332) target = $region44
      $region43: #{_lambda_.10} parent=39 // pred_region
        %p335 = scmp.lt.s32.totalorder %s19, 1
        %s336 = scalar_select %p335, %s19, 1
        %p337 = scmp.lt.s32.totalorder %s20, 1
        %s338 = scalar_select %p337, %s20, 1
        %s339 = smul.addr %s336, 2
        %s340 = sadd.s32 %s338, %s339
        %s341 = smul.addr %s340, 4
        %s342 = scalar_lea.vmem %s2, %s341
      $region44: #{_lambda_.10} parent=39 // pred_fallthru
        _
    $region40: #{_lambda_.10} parent=5 // pred_fallthru
      _
  $region6: #{_lambda_.10} parent=0 // loop_footer
    %s12 = sadd.s32 1, %s8
  $region7: #{_lambda_.10} parent=0 // loop_footer_branch
    %7 = sbr.rel target = $region3
  $region8: #{_lambda_.10} parent=0 // loop_exit
    _

// kernel: _lambda_.6
$region0: #{_lambda_.6}
  #allocation0 [shape = 'u32[]', space=smem, size = 0x4, offset = 0x4, fixed_abs, tag = 'smem constant byte address 0x4 - core index']
  #allocation1 [shape = 'u32[144,128]{1,0:T(1,128)}', space=vmem, size = 0x12000, scoped, tag = 'internal scratch']
  %s0 = inlined_call_operand.vmem [shape: bf16[16,64], index: 0, kind: input, shape index: {}]
  %s1 = inlined_call_operand.vmem [shape: bf16[16,8], index: 1, kind: input, shape index: {}]
  %s2 = inlined_call_operand.vmem [shape: bf16[32,8], index: 2, kind: input, shape index: {}]
  %s3 = inlined_call_operand.vmem [shape: bf16[8,32], index: 3, kind: input, shape index: {}]
  %s4 = inlined_call_operand.vmem [shape: bf16[64,32], index: 4, kind: input, shape index: {}]
  %s5 = inlined_call_operand.vmem [shape: bf16[32,32], index: 5, kind: input, shape index: {}]
  %s6 = inlined_call_operand.vmem [shape: f32[1,32], index: 6, kind: input, shape index: {}]
  %s7 = inlined_call_operand.vmem [shape: bf16[32,128], index: 7, kind: input, shape index: {}]
  %s8 = inlined_call_operand.vmem [shape: f32[1,128], index: 8, kind: input, shape index: {}]
  %s9 = inlined_call_operand.vmem [shape: bf16[16,128], index: 9, kind: output, shape index: {}]
  %s10 = sld [smem:[#allocation0]]
  $region46: #{_lambda_.6} parent=0
    _
  %s12 = ssub.s32 1, %s10
  %s13 = scalar_select 0, %s12, %s10
  // Predicated region
  $region2: #{_lambda_.6} parent=0 // pred_check
    _
  $region3: #{_lambda_.6} parent=0 // pred_check_branch
    %15 = sbr.rel (0) target = $region5
  $region4: #{_lambda_.6} parent=0 // pred_region
    _
  $region5: #{_lambda_.6} parent=0 // pred_fallthru
    _
  // Predicated region
  $region6: #{_lambda_.6} parent=0 // pred_check
    _
  $region7: #{_lambda_.6} parent=0 // pred_check_branch
    %17 = sbr.rel (0) target = $region9
  $region8: #{_lambda_.6} parent=0 // pred_region
    _
  $region9: #{_lambda_.6} parent=0 // pred_fallthru
    _
  // Predicated region
  $region10: #{_lambda_.6} parent=0 // pred_check
    _
  $region11: #{_lambda_.6} parent=0 // pred_check_branch
    %19 = sbr.rel (0) target = $region13
  $region12: #{_lambda_.6} parent=0 // pred_region
    _
  $region13: #{_lambda_.6} parent=0 // pred_fallthru
    _
  // Predicated region
  $region14: #{_lambda_.6} parent=0 // pred_check
    _
  $region15: #{_lambda_.6} parent=0 // pred_check_branch
    %21 = sbr.rel (0) target = $region17
  $region16: #{_lambda_.6} parent=0 // pred_region
    _
  $region17: #{_lambda_.6} parent=0 // pred_fallthru
    _
  // Predicated region
  $region18: #{_lambda_.6} parent=0 // pred_check
    _
  $region19: #{_lambda_.6} parent=0 // pred_check_branch
    %23 = sbr.rel (0) target = $region21
  $region20: #{_lambda_.6} parent=0 // pred_region
    _
  $region21: #{_lambda_.6} parent=0 // pred_fallthru
    _
  // Predicated region
  $region22: #{_lambda_.6} parent=0 // pred_check
    _
  $region23: #{_lambda_.6} parent=0 // pred_check_branch
    %25 = sbr.rel (0) target = $region25
  $region24: #{_lambda_.6} parent=0 // pred_region
    _
  $region25: #{_lambda_.6} parent=0 // pred_fallthru
    _
  // Predicated region
  $region26: #{_lambda_.6} parent=0 // pred_check
    _
  $region27: #{_lambda_.6} parent=0 // pred_check_branch
    %27 = sbr.rel (0) target = $region29
  $region28: #{_lambda_.6} parent=0 // pred_region
    _
  $region29: #{_lambda_.6} parent=0 // pred_fallthru
    _
  // Predicated region
  $region30: #{_lambda_.6} parent=0 // pred_check
    _
  $region31: #{_lambda_.6} parent=0 // pred_check_branch
    %29 = sbr.rel (0) target = $region33
  $region32: #{_lambda_.6} parent=0 // pred_region
    _
  $region33: #{_lambda_.6} parent=0 // pred_fallthru
    _
  // Predicated region
  $region34: #{_lambda_.6} parent=0 // pred_check
    _
  $region35: #{_lambda_.6} parent=0 // pred_check_branch
    %31 = sbr.rel (0) target = $region37
  $region36: #{_lambda_.6} parent=0 // pred_region
    _
  $region37: #{_lambda_.6} parent=0 // pred_fallthru
    _
  %v33 = vld [vmem:[%s0] sm:$0xf]
  %v34 = vld [vmem:[%s0 + $0x4] sm:$0xf]
  %v35 = vld [vmem:[%s1] sm:$0xf]
  %v36 = vld [vmem:[%s1 + $0x4] sm:$0xf]
  %v37 = vld [vmem:[%s2] sm:$0xf]
  %v38 = vld [vmem:[%s2 + $0x4] sm:$0xf]
  %v39 = vld [vmem:[%s2 + $0x8] sm:$0xf]
  %v40 = vld [vmem:[%s2 + $0xc] sm:$0xf]
  %v41 = vld [vmem:[%s3] sm:$0xf]
  %v44 = vunpack.c.l.b16 %v33
  %v45 = vunpack.c.l.b16 %v34
  %v46 = vpack.c.b16 %v45, %v44
  %v51 = vunpack.c.l.b16 %v37
  %v52 = vunpack.c.l.b16 %v38
  %v53 = vunpack.c.l.b16 %v39
  %v54 = vunpack.c.l.b16 %v40
  %v55 = vpack.c.b16 %v52, %v51
  %v56 = vpack.c.b16 %v54, %v53
  %vm59 = vcmask 261120
  %v61 = vsel %vm59, %v46, 0
  %63 = vmatprep.subr.bf16.mxu0 0
  %64 = vmatpush1.bf16.msra.mxu0 0
  %65 = vmatprep.subr.bf16.mxu0 0
  %66 = vmatpush1.bf16.msra.mxu0 0
  %67 = vmatprep.subr.bf16.mxu0 0
  %68 = vmatpush1.bf16.msra.mxu0 0
  %69 = vmatprep.subr.bf16.mxu0 0
  %70 = vmatpush1.bf16.msra.mxu0 0
  %71 = vmatprep.subr.bf16.mxu0 0
  %72 = vmatpush1.bf16.msra.mxu0 0
  %73 = vmatprep.subr.bf16.mxu0 0
  %74 = vmatpush1.bf16.msra.mxu0 0
  %75 = vmatprep.subr.bf16.mxu0 0
  %76 = vmatpush1.bf16.msra.mxu0 %v56
  %77 = vmatprep.subr.bf16.mxu0 0
  %78 = vmatpush1.bf16.msra.mxu0 %v55
  %79 = vmatprep.subr.bf16.mxu0 0
  %80 = vmatpush2.bf16.msra.mxu0 0
  %81 = vmatprep.subr.bf16.mxu0 0
  %82 = vmatpush2.bf16.msra.mxu0 0
  %83 = vmatprep.subr.bf16.mxu0 0
  %84 = vmatpush2.bf16.msra.mxu0 0
  %85 = vmatprep.subr.bf16.mxu0 0
  %86 = vmatpush2.bf16.msra.mxu0 0
  %87 = vmatprep.subr.bf16.mxu0 0
  %88 = vmatpush2.bf16.msra.mxu0 0
  %89 = vmatprep.subr.bf16.mxu0 0
  %90 = vmatpush2.bf16.msra.mxu0 0
  %91 = vmatprep.subr.bf16.mxu0 0
  %92 = vmatpush2.bf16.msra.mxu0 0
  %93 = vmatprep.subr.bf16.mxu0 0
  %94 = vmatpush2.bf16.msra.mxu0 0
  %95 = vmatprep.mubr.bf16.mxu0 0
  %96 = vmatmul.mubr.bf16.gmra.mxu0 %v61
  %v97 = vpop.f32.mrf.mxu0
  %v98 = vadd.f32 0.0, %v97
  %v99 = vpop.f32.mrf.mxu0
  %v100 = vpop.f32.mrf.mxu0
  %v101 = vadd.f32 0.0, %v100
  %v102 = vpop.f32.mrf.mxu0
  %103 = vdwg.mxu0
  %v104 = vunpack.c.l.bf16 %v35
  %v105 = vunpack.c.l.bf16 %v36
  %v106 = vmul.f32 %v98, %v104
  %v107 = vmul.f32 %v101, %v105
  %v108 = vmul.f32 %v106, 0.17677669
  %v109 = vmul.f32 %v107, 0.17677669
  %vm110 = vcmask 64512
  %v111 = vsel %vm110, %v108, -inf
  %112 = vmax.xlane.f32.xlu0 %v111
  %v113 = vpop.xlane.xlu0 %112
  %v114 = vsel %vm110, %v109, -inf
  %115 = vmax.xlane.f32.xlu0 %v114
  %v116 = vpop.xlane.xlu0 %115
  %v117 = vsub.f32 %v108, %v113
  %v118 = vsub.f32 %v109, %v116
  %v119 = vmul.f32 %v117, 1.442695
  %v120 = vpow.pop %v119
  %v121 = vmul.f32 %v118, 1.442695
  %v122 = vpow.pop %v121
  %v123 = vsel %vm110, %v120, 0.0
  %124 = vadd.xlane.f32.xlu0 %v123
  %v125 = vpop.xlane.xlu0 %124
  %v126 = vsel %vm110, %v122, 0.0
  %127 = vadd.xlane.f32.xlu0 %v126
  %v128 = vpop.xlane.xlu0 %127
  %v129 = vrcp.pop %v125
  %v130 = vrcp.pop %v128
  %v131 = vmul.f32 %v120, %v129
  %v132 = vmul.f32 %v122, %v130
  %v133 = vmul.f32 %v131, %v104
  %v134 = vmul.f32 %v132, %v105
  %v135 = vpack.c.bf16 %v134, %v133
  %v137 = vsel %vm110, %v135, 0
  %vm139 = vcmask 1043456
  %v141 = vsel %vm139, %v41, 0
  %143 = vmatprep.subr.bf16.mxu0 0
  %144 = vmatpush1.bf16.msra.mxu0 0
  %145 = vmatprep.subr.bf16.mxu0 0
  %146 = vmatpush1.bf16.msra.mxu0 0
  %147 = vmatprep.subr.bf16.mxu0 0
  %148 = vmatpush1.bf16.msra.mxu0 0
  %149 = vmatprep.subr.bf16.mxu0 0
  %150 = vmatpush1.bf16.msra.mxu0 0
  %151 = vmatprep.subr.bf16.mxu0 0
  %152 = vmatpush1.bf16.msra.mxu0 0
  %153 = vmatprep.subr.bf16.mxu0 0
  %154 = vmatpush1.bf16.msra.mxu0 0
  %155 = vmatprep.subr.bf16.mxu0 0
  %156 = vmatpush1.bf16.msra.mxu0 0
  %157 = vmatprep.subr.bf16.mxu0 0
  %158 = vmatpush1.bf16.msra.mxu0 %v141
  %159 = vmatprep.subr.bf16.mxu0 0
  %160 = vmatpush2.bf16.msra.mxu0 0
  %161 = vmatprep.subr.bf16.mxu0 0
  %162 = vmatpush2.bf16.msra.mxu0 0
  %163 = vmatprep.subr.bf16.mxu0 0
  %164 = vmatpush2.bf16.msra.mxu0 0
  %165 = vmatprep.subr.bf16.mxu0 0
  %166 = vmatpush2.bf16.msra.mxu0 0
  %167 = vmatprep.subr.bf16.mxu0 0
  %168 = vmatpush2.bf16.msra.mxu0 0
  %169 = vmatprep.subr.bf16.mxu0 0
  %170 = vmatpush2.bf16.msra.mxu0 0
  %171 = vmatprep.subr.bf16.mxu0 0
  %172 = vmatpush2.bf16.msra.mxu0 0
  %173 = vmatprep.subr.bf16.mxu0 0
  %174 = vmatpush2.bf16.msra.mxu0 0
  %175 = vmatprep.mubr.bf16.mxu0 0
  %176 = vmatmul.mubr.bf16.gmra.mxu0 %v137
  %v177 = vpop.f32.mrf.mxu0
  %v178 = vadd.f32 0.0, %v177
  %v179 = vpop.f32.mrf.mxu0
  %v180 = vpop.f32.mrf.mxu0
  %v181 = vadd.f32 0.0, %v180
  %v182 = vpop.f32.mrf.mxu0
  %183 = vdwg.mxu0
  %v184 = vld [vmem:[%s4] sm:$0xf]
  %v185 = vld [vmem:[%s4 + $0x4] sm:$0xf]
  %v186 = vld [vmem:[%s4 + $0x8] sm:$0xf]
  %v187 = vld [vmem:[%s4 + $0xc] sm:$0xf]
  %v188 = vld [vmem:[%s4 + $0x10] sm:$0xf]
  %v189 = vld [vmem:[%s4 + $0x14] sm:$0xf]
  %v190 = vld [vmem:[%s4 + $0x18] sm:$0xf]
  %v191 = vld [vmem:[%s4 + $0x1c] sm:$0xf]
  %v192 = vpack.c.bf16 %v181, %v178
  %v193 = vld [vmem:[%s5] sm:$0xf]
  %v194 = vld [vmem:[%s5 + $0x4] sm:$0xf]
  %v195 = vld [vmem:[%s5 + $0x8] sm:$0xf]
  %v196 = vld [vmem:[%s5 + $0xc] sm:$0xf]
  %v201 = vunpack.c.l.b16 %v193
  %v202 = vunpack.c.l.b16 %v194
  %v203 = vunpack.c.l.b16 %v195
  %v204 = vunpack.c.l.b16 %v196
  %v205 = vpack.c.b16 %v202, %v201
  %v206 = vpack.c.b16 %v204, %v203
  %v210 = vsel %vm59, %v192, 0
  %212 = vmatprep.subr.bf16.mxu0 0
  %213 = vmatpush1.bf16.msra.mxu0 0
  %214 = vmatprep.subr.bf16.mxu0 0
  %215 = vmatpush1.bf16.msra.mxu0 0
  %216 = vmatprep.subr.bf16.mxu0 0
  %217 = vmatpush1.bf16.msra.mxu0 0
  %218 = vmatprep.subr.bf16.mxu0 0
  %219 = vmatpush1.bf16.msra.mxu0 0
  %220 = vmatprep.subr.bf16.mxu0 0
  %221 = vmatpush1.bf16.msra.mxu0 0
  %222 = vmatprep.subr.bf16.mxu0 0
  %223 = vmatpush1.bf16.msra.mxu0 0
  %224 = vmatprep.subr.bf16.mxu0 0
  %225 = vmatpush1.bf16.msra.mxu0 %v206
  %226 = vmatprep.subr.bf16.mxu0 0
  %227 = vmatpush1.bf16.msra.mxu0 %v205
  %228 = vmatprep.subr.bf16.mxu0 0
  %229 = vmatpush2.bf16.msra.mxu0 0
  %230 = vmatprep.subr.bf16.mxu0 0
  %231 = vmatpush2.bf16.msra.mxu0 0
  %232 = vmatprep.subr.bf16.mxu0 0
  %233 = vmatpush2.bf16.msra.mxu0 0
  %234 = vmatprep.subr.bf16.mxu0 0
  %235 = vmatpush2.bf16.msra.mxu0 0
  %236 = vmatprep.subr.bf16.mxu0 0
  %237 = vmatpush2.bf16.msra.mxu0 0
  %238 = vmatprep.subr.bf16.mxu0 0
  %239 = vmatpush2.bf16.msra.mxu0 0
  %240 = vmatprep.subr.bf16.mxu0 0
  %241 = vmatpush2.bf16.msra.mxu0 0
  %242 = vmatprep.subr.bf16.mxu0 0
  %243 = vmatpush2.bf16.msra.mxu0 0
  %244 = vmatprep.mubr.bf16.mxu0 0
  %245 = vmatmul.mubr.bf16.gmra.mxu0 %v210
  %v246 = vpop.f32.mrf.mxu0
  %v247 = vadd.f32 0.0, %v246
  %v248 = vpop.f32.mrf.mxu0
  %v249 = vpop.f32.mrf.mxu0
  %v250 = vadd.f32 0.0, %v249
  %v251 = vpop.f32.mrf.mxu0
  %252 = vdwg.mxu0
  %v261 = vunpack.c.l.b16 %v184
  %v262 = vunpack.c.l.b16 %v185
  %v263 = vunpack.c.l.b16 %v186
  %v264 = vunpack.c.l.b16 %v187
  %v265 = vunpack.c.l.b16 %v188
  %v266 = vunpack.c.l.b16 %v189
  %v267 = vunpack.c.l.b16 %v190
  %v268 = vunpack.c.l.b16 %v191
  %v269 = vpack.c.b16 %v262, %v261
  %v270 = vpack.c.b16 %v264, %v263
  %v271 = vpack.c.b16 %v266, %v265
  %v272 = vpack.c.b16 %v268, %v267
  %vm277 = vcmask 523264
  %v278 = vsel %vm277, %v46, 0
  %280 = vmatprep.subr.bf16.mxu0 0
  %281 = vmatpush1.bf16.msra.mxu0 0
  %282 = vmatprep.subr.bf16.mxu0 0
  %283 = vmatpush1.bf16.msra.mxu0 0
  %284 = vmatprep.subr.bf16.mxu0 0
  %285 = vmatpush1.bf16.msra.mxu0 0
  %286 = vmatprep.subr.bf16.mxu0 0
  %287 = vmatpush1.bf16.msra.mxu0 0
  %288 = vmatprep.subr.bf16.mxu0 0
  %289 = vmatpush1.bf16.msra.mxu0 %v272
  %290 = vmatprep.subr.bf16.mxu0 0
  %291 = vmatpush1.bf16.msra.mxu0 %v271
  %292 = vmatprep.subr.bf16.mxu0 0
  %293 = vmatpush1.bf16.msra.mxu0 %v270
  %294 = vmatprep.subr.bf16.mxu0 0
  %295 = vmatpush1.bf16.msra.mxu0 %v269
  %296 = vmatprep.subr.bf16.mxu0 0
  %297 = vmatpush2.bf16.msra.mxu0 0
  %298 = vmatprep.subr.bf16.mxu0 0
  %299 = vmatpush2.bf16.msra.mxu0 0
  %300 = vmatprep.subr.bf16.mxu0 0
  %301 = vmatpush2.bf16.msra.mxu0 0
  %302 = vmatprep.subr.bf16.mxu0 0
  %303 = vmatpush2.bf16.msra.mxu0 0
  %304 = vmatprep.subr.bf16.mxu0 0
  %305 = vmatpush2.bf16.msra.mxu0 0
  %306 = vmatprep.subr.bf16.mxu0 0
  %307 = vmatpush2.bf16.msra.mxu0 0
  %308 = vmatprep.subr.bf16.mxu0 0
  %309 = vmatpush2.bf16.msra.mxu0 0
  %310 = vmatprep.subr.bf16.mxu0 0
  %311 = vmatpush2.bf16.msra.mxu0 0
  %312 = vmatprep.mubr.bf16.mxu0 0
  %313 = vmatmul.mubr.bf16.gmra.mxu0 %v278
  %v314 = vpop.f32.mrf.mxu0
  %v315 = vadd.f32 %v247, %v314
  %v316 = vpop.f32.mrf.mxu0
  %v317 = vpop.f32.mrf.mxu0
  %v318 = vadd.f32 %v250, %v317
  %v319 = vpop.f32.mrf.mxu0
  %320 = vdwg.mxu0
  %v321 = vld [vmem:[%s6] sm:$0x1]
  %v323 = vlaneseq
  %v324 = vshrl.u32 %v323, 7
  %v325 = vsub.s32 0, %v324
  %v326 = vrot.slane %v321, %v325
  %v328 = vadd.f32 %v315, %v326
  %v329 = vadd.f32 %v318, %v326
  %v330 = vpack.c.bf16 %v329, %v328
  %v331 = vld [vmem:[%s7] sm:$0xf]
  %v332 = vld [vmem:[%s7 + $0x4] sm:$0xf]
  %v333 = vld [vmem:[%s7 + $0x8] sm:$0xf]
  %v334 = vld [vmem:[%s7 + $0xc] sm:$0xf]
  %v335 = vld [vmem:[%s8] sm:$0x1]
  %v337 = vlaneseq
  %v338 = vshrl.u32 %v337, 7
  %v339 = vsub.s32 0, %v338
  %v340 = vrot.slane %v335, %v339
  %v346 = vunpack.c.l.b16 %v331
  %v347 = vunpack.c.l.b16 %v332
  %v348 = vunpack.c.l.b16 %v333
  %v349 = vunpack.c.l.b16 %v334
  %v350 = vpack.c.b16 %v347, %v346
  %v351 = vpack.c.b16 %v349, %v348
  %v355 = vsel %vm59, %v330, 0
  %357 = vmatprep.subr.bf16.mxu0 0
  %358 = vmatpush1.bf16.msra.mxu0 0
  %359 = vmatprep.subr.bf16.mxu0 0
  %360 = vmatpush1.bf16.msra.mxu0 0
  %361 = vmatprep.subr.bf16.mxu0 0
  %362 = vmatpush1.bf16.msra.mxu0 0
  %363 = vmatprep.subr.bf16.mxu0 0
  %364 = vmatpush1.bf16.msra.mxu0 0
  %365 = vmatprep.subr.bf16.mxu0 0
  %366 = vmatpush1.bf16.msra.mxu0 0
  %367 = vmatprep.subr.bf16.mxu0 0
  %368 = vmatpush1.bf16.msra.mxu0 0
  %369 = vmatprep.subr.bf16.mxu0 0
  %370 = vmatpush1.bf16.msra.mxu0 %v351
  %371 = vmatprep.subr.bf16.mxu0 0
  %372 = vmatpush1.bf16.msra.mxu0 %v350
  %373 = vmatprep.subr.bf16.mxu0 0
  %374 = vmatpush2.bf16.msra.mxu0 0
  %375 = vmatprep.subr.bf16.mxu0 0
  %376 = vmatpush2.bf16.msra.mxu0 0
  %377 = vmatprep.subr.bf16.mxu0 0
  %378 = vmatpush2.bf16.msra.mxu0 0
  %379 = vmatprep.subr.bf16.mxu0 0
  %380 = vmatpush2.bf16.msra.mxu0 0
  %381 = vmatprep.subr.bf16.mxu0 0
  %382 = vmatpush2.bf16.msra.mxu0 0
  %383 = vmatprep.subr.bf16.mxu0 0
  %384 = vmatpush2.bf16.msra.mxu0 0
  %385 = vmatprep.subr.bf16.mxu0 0
  %386 = vmatpush2.bf16.msra.mxu0 0
  %387 = vmatprep.subr.bf16.mxu0 0
  %388 = vmatpush2.bf16.msra.mxu0 0
  %389 = vmatprep.mubr.bf16.mxu0 0
  %390 = vmatmul.mubr.bf16.gmra.mxu0 %v355
  %v391 = vpop.f32.mrf.mxu0
  %v392 = vadd.f32 %v340, %v391
  %v393 = vpop.f32.mrf.mxu0
  %v394 = vpop.f32.mrf.mxu0
  %v395 = vadd.f32 %v340, %v394
  %v396 = vpop.f32.mrf.mxu0
  %397 = vdwg.mxu0
  %v398 = vpack.c.bf16 %v395, %v392
  %v400 = vunpack.c.l.b16 %v398
  %v401 = vunpack.c.h.b16 %v398
  %v402 = vpack.c.b16 %v400, %v400
  %v403 = vpack.c.b16 %v401, %v401
  %406 = vst [vmem:[%s9] sm:$0xf] %v402
  %407 = vst [vmem:[%s9 + $0x4] sm:$0xf] %v403
  // Predicated region
  $region38: #{_lambda_.6} parent=0 // pred_check
    _
  $region39: #{_lambda_.6} parent=0 // pred_check_branch
    %409 = sbr.rel (0) target = $region41
  $region40: #{_lambda_.6} parent=0 // pred_region
    _
  $region41: #{_lambda_.6} parent=0 // pred_fallthru
    _
  // Predicated region
  $region42: #{_lambda_.6} parent=0 // pred_check
    _
  $region43: #{_lambda_.6} parent=0 // pred_check_branch
    %411 = sbr.rel (0) target = $region45
  $region44: #{_lambda_.6} parent=0 // pred_region
    _
  $region45: #{_lambda_.6} parent=0 // pred_fallthru
    _

// kernel: squeeze.41
$region0: #{squeeze.41}
  %s0 = inlined_call_operand.vmem [shape: f32[16], index: 0, kind: input, shape index: {}]
  %s1 = inlined_call_operand.hbm [shape: f32[2,8], index: 1, kind: output, shape index: {}]
  $region1: #{squeeze.41} parent=0
    #allocation0 [shape = 'u8[1024]{0}', space=vmem, size = 0x400, scoped, tag = 'operand span for operand 1']
    #allocation1 [shape = 's32[1]{0}', space=sflag, size = 0x4, scoped, tag = 'scoped memory for squeeze.41']
    #allocation2 [shape = 'u8[4096]{0}', space=vmem, size = 0x1000, scoped, tag = 'scoped mem for output reshape']
    #allocation3 [shape = 'u8[4096]{0}', space=vmem, size = 0x1000, scoped, tag = 'scoped mem for input reshape']
    %2 = vsyncpa [#allocation1], 0
    %s4 = sshll.u32 1, 1
    %s5 = ssub.s32 %s4, 1
    %v6 = vld [vmem:[%s0] sm:%s5]
    %7 = vst [vmem:[#allocation3] sm:%s5] %v6
    %v8 = vld [vmem:[#allocation3] sm:$0x1]
    %vm9 = vcmask 64512
    %10 = vst.msk [vmem:[#allocation2] sm:$0x1] %vm9, %v8
    %v11 = vld [vmem:[#allocation3] sm:$0x1]
    %12 = vrot.lane.b32.xlu0 %v11, 120
    %v13 = vpop.permute.xlu0 %12
    %vm14 = vcmask 64512
    %s15 = scalar_lea.vmem [#allocation2], 1
    %16 = vst.msk [vmem:[%s15] sm:$0x1] %vm14, %v13
    %s18 = sshll.u32 1, 2
    %s19 = ssub.s32 %s18, 1
    %v21 = vld [vmem:[#allocation2] sm:%s19]
    %s22 = sshll.u32 1, 2
    %s23 = ssub.s32 %s22, 1
    %24 = vst [vmem:[#allocation0] sm:%s23] %v21
    %s26 = ssub.s32 32, 32
    %27 = vsyncadd [#allocation1], %s26
    %s29 = sshll.u32 [#allocation0], 4
    %s30 = int_to_ptr.vmem [resolvable:$true] %s29
    %32 = dma.vmem_to_hbm [thread:$0]  %s30, 32, %s1, [#allocation1]
    %33 = dma.done [#allocation1], 32
    %34 = vsyncpa [#allocation1], 1

// kernel: _lambda_.9
$region0: #{_lambda_.9}
  #allocation0 [shape = 'u32[]', space=smem, size = 0x4, offset = 0x4, fixed_abs, tag = 'smem constant byte address 0x4 - core index']
  #allocation1 [shape = 'u32[144,128]{1,0:T(1,128)}', space=vmem, size = 0x12000, scoped, tag = 'internal scratch']
  #allocation2 [shape = 'f32[16,32]{1,0:T(8,128)}', space=vmem, size = 0x2000, scoped, tag = 'scratch operand']
  %s0 = inlined_call_operand.vmem [shape: bf16[16,648], index: 0, kind: input, shape index: {}]
  %s1 = inlined_call_operand.vmem [shape: bf16[16,648], index: 1, kind: input, shape index: {}]
  %s2 = inlined_call_operand.vmem [shape: bf16[648,32], index: 2, kind: input, shape index: {}]
  %s3 = inlined_call_operand.vmem [shape: bf16[648,32], index: 3, kind: input, shape index: {}]
  %s4 = inlined_call_operand.vmem [shape: f32[1,32], index: 4, kind: input, shape index: {}]
  %s5 = inlined_call_operand.vmem [shape: bf16[16,32], index: 5, kind: output, shape index: {}]
  %s6 = sld [smem:[#allocation0]]
  $region38: #{_lambda_.9} parent=0
    _
  %s8 = ssub.s32 1, %s6
  %s9 = scalar_select 0, %s8, %s6
  // Predicated region
  $region2: #{_lambda_.9} parent=0 // pred_check
    _
  $region3: #{_lambda_.9} parent=0 // pred_check_branch
    %11 = sbr.rel (0) target = $region5
  $region4: #{_lambda_.9} parent=0 // pred_region
    _
  $region5: #{_lambda_.9} parent=0 // pred_fallthru
    _
  // Predicated region
  $region6: #{_lambda_.9} parent=0 // pred_check
    _
  $region7: #{_lambda_.9} parent=0 // pred_check_branch
    %13 = sbr.rel (0) target = $region9
  $region8: #{_lambda_.9} parent=0 // pred_region
    _
  $region9: #{_lambda_.9} parent=0 // pred_fallthru
    _
  // Predicated region
  $region10: #{_lambda_.9} parent=0 // pred_check
    _
  $region11: #{_lambda_.9} parent=0 // pred_check_branch
    %15 = sbr.rel (0) target = $region13
  $region12: #{_lambda_.9} parent=0 // pred_region
    _
  $region13: #{_lambda_.9} parent=0 // pred_fallthru
    _
  // Predicated region
  $region14: #{_lambda_.9} parent=0 // pred_check
    _
  $region15: #{_lambda_.9} parent=0 // pred_check_branch
    %17 = sbr.rel (0) target = $region17
  $region16: #{_lambda_.9} parent=0 // pred_region
    _
  $region17: #{_lambda_.9} parent=0 // pred_fallthru
    _
  // Predicated region
  $region18: #{_lambda_.9} parent=0 // pred_check
    _
  $region19: #{_lambda_.9} parent=0 // pred_check_branch
    %19 = sbr.rel (0) target = $region21
  $region20: #{_lambda_.9} parent=0 // pred_region
    _
  $region21: #{_lambda_.9} parent=0 // pred_fallthru
    _
  %p21 = scmp.eq.s32.totalorder 0, 0
  // Predicated region
  $region22: #{_lambda_.9} parent=0 // pred_check
    %p22 = pneg %p21
  $region23: #{_lambda_.9} parent=0 // pred_check_branch
    %24 = sbr.rel (%p22) target = $region25
  $region24: #{_lambda_.9} parent=0 // pred_region
    %vm25 = vcmask 261120
    %26 = vst.msk [vmem:[#allocation2] sm:$0xff] %vm25, 0.0
    %27 = vst.msk [vmem:[#allocation2 + $0x8] sm:$0xff] %vm25, 0.0
  $region25: #{_lambda_.9} parent=0 // pred_fallthru
    _
  %v28 = vld [vmem:[#allocation2] sm:$0xff]
  %v29 = vld [vmem:[#allocation2 + $0x8] sm:$0xff]
  %v30 = vld [vmem:[%s0] sm:$0xff]
  %v31 = vld [vmem:[%s0 + $0x8] sm:$0xff]
  %v32 = vld [vmem:[%s0 + $0x10] sm:$0xff]
  %v33 = vld [vmem:[%s0 + $0x18] sm:$0xff]
  %v34 = vld [vmem:[%s0 + $0x20] sm:$0xff]
  %v35 = vld [vmem:[%s0 + $0x28] sm:$0xff]
  %v36 = vld [vmem:[%s2] sm:$0xf]
  %v37 = vld [vmem:[%s2 + $0x4] sm:$0xf]
  %v38 = vld [vmem:[%s2 + $0x8] sm:$0xf]
  %v39 = vld [vmem:[%s2 + $0xc] sm:$0xf]
  %v40 = vld [vmem:[%s2 + $0x10] sm:$0xf]
  %v41 = vld [vmem:[%s2 + $0x14] sm:$0xf]
  %v42 = vld [vmem:[%s2 + $0x18] sm:$0xf]
  %v43 = vld [vmem:[%s2 + $0x1c] sm:$0xf]
  %v44 = vld [vmem:[%s2 + $0x20] sm:$0xf]
  %v45 = vld [vmem:[%s2 + $0x24] sm:$0xf]
  %v46 = vld [vmem:[%s2 + $0x28] sm:$0xf]
  %v47 = vld [vmem:[%s2 + $0x2c] sm:$0xf]
  %v48 = vld [vmem:[%s2 + $0x30] sm:$0xf]
  %v49 = vld [vmem:[%s2 + $0x34] sm:$0xf]
  %v50 = vld [vmem:[%s2 + $0x38] sm:$0xf]
  %v51 = vld [vmem:[%s2 + $0x3c] sm:$0xf]
  %v52 = vld [vmem:[%s2 + $0x40] sm:$0xf]
  %v53 = vld [vmem:[%s2 + $0x44] sm:$0xf]
  %v54 = vld [vmem:[%s2 + $0x48] sm:$0xf]
  %v55 = vld [vmem:[%s2 + $0x4c] sm:$0xf]
  %v56 = vld [vmem:[%s2 + $0x50] sm:$0xf]
  %v57 = vld [vmem:[%s2 + $0x54] sm:$0xf]
  %v58 = vld [vmem:[%s2 + $0x58] sm:$0xf]
  %v59 = vld [vmem:[%s2 + $0x5c] sm:$0xf]
  %v60 = vld [vmem:[%s2 + $0x60] sm:$0xf]
  %v61 = vld [vmem:[%s2 + $0x64] sm:$0xf]
  %v62 = vld [vmem:[%s2 + $0x68] sm:$0xf]
  %v63 = vld [vmem:[%s2 + $0x6c] sm:$0xf]
  %v64 = vld [vmem:[%s2 + $0x70] sm:$0xf]
  %v65 = vld [vmem:[%s2 + $0x74] sm:$0xf]
  %v66 = vld [vmem:[%s2 + $0x78] sm:$0xf]
  %v67 = vld [vmem:[%s2 + $0x7c] sm:$0xf]
  %v68 = vld [vmem:[%s2 + $0x80] sm:$0xf]
  %v69 = vld [vmem:[%s2 + $0x84] sm:$0xf]
  %v70 = vld [vmem:[%s2 + $0x88] sm:$0xf]
  %v71 = vld [vmem:[%s2 + $0x8c] sm:$0xf]
  %v72 = vld [vmem:[%s2 + $0x90] sm:$0xf]
  %v73 = vld [vmem:[%s2 + $0x94] sm:$0xf]
  %v74 = vld [vmem:[%s2 + $0x98] sm:$0xf]
  %v75 = vld [vmem:[%s2 + $0x9c] sm:$0xf]
  %v76 = vld [vmem:[%s2 + $0xa0] sm:$0xf]
  %v77 = vld [vmem:[%s2 + $0xa4] sm:$0xf]
  %v78 = vld [vmem:[%s2 + $0xa8] sm:$0xf]
  %v79 = vld [vmem:[%s2 + $0xac] sm:$0xf]
  %v80 = vld [vmem:[%s2 + $0xb0] sm:$0xf]
  %v81 = vld [vmem:[%s2 + $0xb4] sm:$0xf]
  %v82 = vld [vmem:[%s2 + $0xb8] sm:$0xf]
  %v83 = vld [vmem:[%s2 + $0xbc] sm:$0xf]
  %v84 = vld [vmem:[%s2 + $0xc0] sm:$0xf]
  %v85 = vld [vmem:[%s2 + $0xc4] sm:$0xf]
  %v86 = vld [vmem:[%s2 + $0xc8] sm:$0xf]
  %v87 = vld [vmem:[%s2 + $0xcc] sm:$0xf]
  %v88 = vld [vmem:[%s2 + $0xd0] sm:$0xf]
  %v89 = vld [vmem:[%s2 + $0xd4] sm:$0xf]
  %v90 = vld [vmem:[%s2 + $0xd8] sm:$0xf]
  %v91 = vld [vmem:[%s2 + $0xdc] sm:$0xf]
  %v92 = vld [vmem:[%s2 + $0xe0] sm:$0xf]
  %v93 = vld [vmem:[%s2 + $0xe4] sm:$0xf]
  %v94 = vld [vmem:[%s2 + $0xe8] sm:$0xf]
  %v95 = vld [vmem:[%s2 + $0xec] sm:$0xf]
  %v96 = vld [vmem:[%s2 + $0xf0] sm:$0xf]
  %v97 = vld [vmem:[%s2 + $0xf4] sm:$0xf]
  %v98 = vld [vmem:[%s2 + $0xf8] sm:$0xf]
  %v99 = vld [vmem:[%s2 + $0xfc] sm:$0xf]
  %v100 = vld [vmem:[%s2 + $0x100] sm:$0xf]
  %v101 = vld [vmem:[%s2 + $0x104] sm:$0xf]
  %v102 = vld [vmem:[%s2 + $0x108] sm:$0xf]
  %v103 = vld [vmem:[%s2 + $0x10c] sm:$0xf]
  %v104 = vld [vmem:[%s2 + $0x110] sm:$0xf]
  %v105 = vld [vmem:[%s2 + $0x114] sm:$0xf]
  %v106 = vld [vmem:[%s2 + $0x118] sm:$0xf]
  %v107 = vld [vmem:[%s2 + $0x11c] sm:$0xf]
  %v108 = vld [vmem:[%s2 + $0x120] sm:$0xf]
  %v109 = vld [vmem:[%s2 + $0x124] sm:$0xf]
  %v110 = vld [vmem:[%s2 + $0x128] sm:$0xf]
  %v111 = vld [vmem:[%s2 + $0x12c] sm:$0xf]
  %v112 = vld [vmem:[%s2 + $0x130] sm:$0xf]
  %v113 = vld [vmem:[%s2 + $0x134] sm:$0xf]
  %v114 = vld [vmem:[%s2 + $0x138] sm:$0xf]
  %v115 = vld [vmem:[%s2 + $0x13c] sm:$0xf]
  %v116 = vld [vmem:[%s2 + $0x140] sm:$0xf]
  %v117 = vld [vmem:[%s1] sm:$0xff]
  %v118 = vld [vmem:[%s1 + $0x8] sm:$0xff]
  %v119 = vld [vmem:[%s1 + $0x10] sm:$0xff]
  %v120 = vld [vmem:[%s1 + $0x18] sm:$0xff]
  %v121 = vld [vmem:[%s1 + $0x20] sm:$0xff]
  %v122 = vld [vmem:[%s1 + $0x28] sm:$0xff]
  %v123 = vld [vmem:[%s3] sm:$0xf]
  %v124 = vld [vmem:[%s3 + $0x4] sm:$0xf]
  %v125 = vld [vmem:[%s3 + $0x8] sm:$0xf]
  %v126 = vld [vmem:[%s3 + $0xc] sm:$0xf]
  %v127 = vld [vmem:[%s3 + $0x10] sm:$0xf]
  %v128 = vld [vmem:[%s3 + $0x14] sm:$0xf]
  %v129 = vld [vmem:[%s3 + $0x18] sm:$0xf]
  %v130 = vld [vmem:[%s3 + $0x1c] sm:$0xf]
  %v131 = vld [vmem:[%s3 + $0x20] sm:$0xf]
  %v132 = vld [vmem:[%s3 + $0x24] sm:$0xf]
  %v133 = vld [vmem:[%s3 + $0x28] sm:$0xf]
  %v134 = vld [vmem:[%s3 + $0x2c] sm:$0xf]
  %v135 = vld [vmem:[%s3 + $0x30] sm:$0xf]
  %v136 = vld [vmem:[%s3 + $0x34] sm:$0xf]
  %v137 = vld [vmem:[%s3 + $0x38] sm:$0xf]
  %v138 = vld [vmem:[%s3 + $0x3c] sm:$0xf]
  %v139 = vld [vmem:[%s3 + $0x40] sm:$0xf]
  %v140 = vld [vmem:[%s3 + $0x44] sm:$0xf]
  %v141 = vld [vmem:[%s3 + $0x48] sm:$0xf]
  %v142 = vld [vmem:[%s3 + $0x4c] sm:$0xf]
  %v143 = vld [vmem:[%s3 + $0x50] sm:$0xf]
  %v144 = vld [vmem:[%s3 + $0x54] sm:$0xf]
  %v145 = vld [vmem:[%s3 + $0x58] sm:$0xf]
  %v146 = vld [vmem:[%s3 + $0x5c] sm:$0xf]
  %v147 = vld [vmem:[%s3 + $0x60] sm:$0xf]
  %v148 = vld [vmem:[%s3 + $0x64] sm:$0xf]
  %v149 = vld [vmem:[%s3 + $0x68] sm:$0xf]
  %v150 = vld [vmem:[%s3 + $0x6c] sm:$0xf]
  %v151 = vld [vmem:[%s3 + $0x70] sm:$0xf]
  %v152 = vld [vmem:[%s3 + $0x74] sm:$0xf]
  %v153 = vld [vmem:[%s3 + $0x78] sm:$0xf]
  %v154 = vld [vmem:[%s3 + $0x7c] sm:$0xf]
  %v155 = vld [vmem:[%s3 + $0x80] sm:$0xf]
  %v156 = vld [vmem:[%s3 + $0x84] sm:$0xf]
  %v157 = vld [vmem:[%s3 + $0x88] sm:$0xf]
  %v158 = vld [vmem:[%s3 + $0x8c] sm:$0xf]
  %v159 = vld [vmem:[%s3 + $0x90] sm:$0xf]
  %v160 = vld [vmem:[%s3 + $0x94] sm:$0xf]
  %v161 = vld [vmem:[%s3 + $0x98] sm:$0xf]
  %v162 = vld [vmem:[%s3 + $0x9c] sm:$0xf]
  %v163 = vld [vmem:[%s3 + $0xa0] sm:$0xf]
  %v164 = vld [vmem:[%s3 + $0xa4] sm:$0xf]
  %v165 = vld [vmem:[%s3 + $0xa8] sm:$0xf]
  %v166 = vld [vmem:[%s3 + $0xac] sm:$0xf]
  %v167 = vld [vmem:[%s3 + $0xb0] sm:$0xf]
  %v168 = vld [vmem:[%s3 + $0xb4] sm:$0xf]
  %v169 = vld [vmem:[%s3 + $0xb8] sm:$0xf]
  %v170 = vld [vmem:[%s3 + $0xbc] sm:$0xf]
  %v171 = vld [vmem:[%s3 + $0xc0] sm:$0xf]
  %v172 = vld [vmem:[%s3 + $0xc4] sm:$0xf]
  %v173 = vld [vmem:[%s3 + $0xc8] sm:$0xf]
  %v174 = vld [vmem:[%s3 + $0xcc] sm:$0xf]
  %v175 = vld [vmem:[%s3 + $0xd0] sm:$0xf]
  %v176 = vld [vmem:[%s3 + $0xd4] sm:$0xf]
  %v177 = vld [vmem:[%s3 + $0xd8] sm:$0xf]
  %v178 = vld [vmem:[%s3 + $0xdc] sm:$0xf]
  %v179 = vld [vmem:[%s3 + $0xe0] sm:$0xf]
  %v180 = vld [vmem:[%s3 + $0xe4] sm:$0xf]
  %v181 = vld [vmem:[%s3 + $0xe8] sm:$0xf]
  %v182 = vld [vmem:[%s3 + $0xec] sm:$0xf]
  %v183 = vld [vmem:[%s3 + $0xf0] sm:$0xf]
  %v184 = vld [vmem:[%s3 + $0xf4] sm:$0xf]
  %v185 = vld [vmem:[%s3 + $0xf8] sm:$0xf]
  %v186 = vld [vmem:[%s3 + $0xfc] sm:$0xf]
  %v187 = vld [vmem:[%s3 + $0x100] sm:$0xf]
  %v188 = vld [vmem:[%s3 + $0x104] sm:$0xf]
  %v189 = vld [vmem:[%s3 + $0x108] sm:$0xf]
  %v190 = vld [vmem:[%s3 + $0x10c] sm:$0xf]
  %v191 = vld [vmem:[%s3 + $0x110] sm:$0xf]
  %v192 = vld [vmem:[%s3 + $0x114] sm:$0xf]
  %v193 = vld [vmem:[%s3 + $0x118] sm:$0xf]
  %v194 = vld [vmem:[%s3 + $0x11c] sm:$0xf]
  %v195 = vld [vmem:[%s3 + $0x120] sm:$0xf]
  %v196 = vld [vmem:[%s3 + $0x124] sm:$0xf]
  %v197 = vld [vmem:[%s3 + $0x128] sm:$0xf]
  %v198 = vld [vmem:[%s3 + $0x12c] sm:$0xf]
  %v199 = vld [vmem:[%s3 + $0x130] sm:$0xf]
  %v200 = vld [vmem:[%s3 + $0x134] sm:$0xf]
  %v201 = vld [vmem:[%s3 + $0x138] sm:$0xf]
  %v202 = vld [vmem:[%s3 + $0x13c] sm:$0xf]
  %v203 = vld [vmem:[%s3 + $0x140] sm:$0xf]
  %v210 = vunpack.c.l.b16 %v117
  %v211 = vunpack.c.h.b16 %v117
  %v212 = vunpack.c.l.b16 %v118
  %v213 = vunpack.c.h.b16 %v118
  %v214 = vunpack.c.l.b16 %v119
  %v215 = vunpack.c.h.b16 %v119
  %v216 = vunpack.c.l.b16 %v120
  %v217 = vunpack.c.h.b16 %v120
  %v218 = vunpack.c.l.b16 %v121
  %v219 = vunpack.c.h.b16 %v121
  %v220 = vunpack.c.l.b16 %v122
  %v221 = vunpack.c.h.b16 %v122
  %v222 = vpack.c.b16 %v216, %v210
  %v223 = vpack.c.b16 %v217, %v211
  %v224 = vpack.c.b16 %v218, %v212
  %v225 = vpack.c.b16 %v219, %v213
  %v226 = vpack.c.b16 %v220, %v214
  %v227 = vpack.c.b16 %v221, %v215
  %v314 = vunpack.c.l.b16 %v123
  %v315 = vunpack.c.l.b16 %v124
  %v316 = vunpack.c.l.b16 %v125
  %v317 = vunpack.c.l.b16 %v126
  %v318 = vunpack.c.l.b16 %v127
  %v319 = vunpack.c.l.b16 %v128
  %v320 = vunpack.c.l.b16 %v129
  %v321 = vunpack.c.l.b16 %v130
  %v322 = vunpack.c.l.b16 %v131
  %v323 = vunpack.c.l.b16 %v132
  %v324 = vunpack.c.l.b16 %v133
  %v325 = vunpack.c.l.b16 %v134
  %v326 = vunpack.c.l.b16 %v135
  %v327 = vunpack.c.l.b16 %v136
  %v328 = vunpack.c.l.b16 %v137
  %v329 = vunpack.c.l.b16 %v138
  %v330 = vunpack.c.l.b16 %v139
  %v331 = vunpack.c.l.b16 %v140
  %v332 = vunpack.c.l.b16 %v141
  %v333 = vunpack.c.l.b16 %v142
  %v334 = vunpack.c.l.b16 %v143
  %v335 = vunpack.c.l.b16 %v144
  %v336 = vunpack.c.l.b16 %v145
  %v337 = vunpack.c.l.b16 %v146
  %v338 = vunpack.c.l.b16 %v147
  %v339 = vunpack.c.l.b16 %v148
  %v340 = vunpack.c.l.b16 %v149
  %v341 = vunpack.c.l.b16 %v150
  %v342 = vunpack.c.l.b16 %v151
  %v343 = vunpack.c.l.b16 %v152
  %v344 = vunpack.c.l.b16 %v153
  %v345 = vunpack.c.l.b16 %v154
  %v346 = vunpack.c.l.b16 %v155
  %v347 = vunpack.c.l.b16 %v156
  %v348 = vunpack.c.l.b16 %v157
  %v349 = vunpack.c.l.b16 %v158
  %v350 = vunpack.c.l.b16 %v159
  %v351 = vunpack.c.l.b16 %v160
  %v352 = vunpack.c.l.b16 %v161
  %v353 = vunpack.c.l.b16 %v162
  %v354 = vunpack.c.l.b16 %v163
  %v355 = vunpack.c.l.b16 %v164
  %v356 = vunpack.c.l.b16 %v165
  %v357 = vunpack.c.l.b16 %v166
  %v358 = vunpack.c.l.b16 %v167
  %v359 = vunpack.c.l.b16 %v168
  %v360 = vunpack.c.l.b16 %v169
  %v361 = vunpack.c.l.b16 %v170
  %v362 = vunpack.c.l.b16 %v171
  %v363 = vunpack.c.l.b16 %v172
  %v364 = vunpack.c.l.b16 %v173
  %v365 = vunpack.c.l.b16 %v174
  %v366 = vunpack.c.l.b16 %v175
  %v367 = vunpack.c.l.b16 %v176
  %v368 = vunpack.c.l.b16 %v177
  %v369 = vunpack.c.l.b16 %v178
  %v370 = vunpack.c.l.b16 %v179
  %v371 = vunpack.c.l.b16 %v180
  %v372 = vunpack.c.l.b16 %v181
  %v373 = vunpack.c.l.b16 %v182
  %v374 = vunpack.c.l.b16 %v183
  %v375 = vunpack.c.l.b16 %v184
  %v376 = vunpack.c.l.b16 %v185
  %v377 = vunpack.c.l.b16 %v186
  %v378 = vunpack.c.l.b16 %v187
  %v379 = vunpack.c.l.b16 %v188
  %v380 = vunpack.c.l.b16 %v189
  %v381 = vunpack.c.l.b16 %v190
  %v382 = vunpack.c.l.b16 %v191
  %v383 = vunpack.c.l.b16 %v192
  %v384 = vunpack.c.l.b16 %v193
  %v385 = vunpack.c.l.b16 %v194
  %v386 = vunpack.c.l.b16 %v195
  %v387 = vunpack.c.l.b16 %v196
  %v388 = vunpack.c.l.b16 %v197
  %v389 = vunpack.c.l.b16 %v198
  %v390 = vunpack.c.l.b16 %v199
  %v391 = vunpack.c.l.b16 %v200
  %v392 = vunpack.c.l.b16 %v201
  %v393 = vunpack.c.l.b16 %v202
  %v394 = vunpack.c.l.b16 %v203
  %v395 = vpack.c.b16 %v315, %v314
  %v396 = vpack.c.b16 %v317, %v316
  %v397 = vpack.c.b16 %v319, %v318
  %v398 = vpack.c.b16 %v321, %v320
  %v399 = vpack.c.b16 %v323, %v322
  %v400 = vpack.c.b16 %v325, %v324
  %v401 = vpack.c.b16 %v327, %v326
  %v402 = vpack.c.b16 %v329, %v328
  %v403 = vpack.c.b16 %v331, %v330
  %v404 = vpack.c.b16 %v333, %v332
  %v405 = vpack.c.b16 %v335, %v334
  %v406 = vpack.c.b16 %v337, %v336
  %v407 = vpack.c.b16 %v339, %v338
  %v408 = vpack.c.b16 %v341, %v340
  %v409 = vpack.c.b16 %v343, %v342
  %v410 = vpack.c.b16 %v345, %v344
  %v411 = vpack.c.b16 %v347, %v346
  %v412 = vpack.c.b16 %v349, %v348
  %v413 = vpack.c.b16 %v351, %v350
  %v414 = vpack.c.b16 %v353, %v352
  %v415 = vpack.c.b16 %v355, %v354
  %v416 = vpack.c.b16 %v357, %v356
  %v417 = vpack.c.b16 %v359, %v358
  %v418 = vpack.c.b16 %v361, %v360
  %v419 = vpack.c.b16 %v363, %v362
  %v420 = vpack.c.b16 %v365, %v364
  %v421 = vpack.c.b16 %v367, %v366
  %v422 = vpack.c.b16 %v369, %v368
  %v423 = vpack.c.b16 %v371, %v370
  %v424 = vpack.c.b16 %v373, %v372
  %v425 = vpack.c.b16 %v375, %v374
  %v426 = vpack.c.b16 %v377, %v376
  %v427 = vpack.c.b16 %v379, %v378
  %v428 = vpack.c.b16 %v381, %v380
  %v429 = vpack.c.b16 %v383, %v382
  %v430 = vpack.c.b16 %v385, %v384
  %v431 = vpack.c.b16 %v387, %v386
  %v432 = vpack.c.b16 %v389, %v388
  %v433 = vpack.c.b16 %v391, %v390
  %v434 = vpack.c.b16 %v393, %v392
  %v435 = vpack.c.b16 %v394, %v394
  %vm476 = vcmask 64512
  %v478 = vsel %vm476, %v227, 0
  %vm480 = vcmask 1043456
  %v482 = vsel %vm480, %v435, 0
  %484 = vmatprep.subr.bf16.mxu0 0
  %485 = vmatpush1.bf16.msra.mxu0 %v402
  %486 = vmatprep.subr.bf16.mxu0 0
  %487 = vmatpush1.bf16.msra.mxu0 %v401
  %488 = vmatprep.subr.bf16.mxu0 0
  %489 = vmatpush1.bf16.msra.mxu0 %v400
  %490 = vmatprep.subr.bf16.mxu0 0
  %491 = vmatpush1.bf16.msra.mxu0 %v399
  %492 = vmatprep.subr.bf16.mxu0 0
  %493 = vmatpush1.bf16.msra.mxu0 %v398
  %494 = vmatprep.subr.bf16.mxu0 0
  %495 = vmatpush1.bf16.msra.mxu0 %v397
  %496 = vmatprep.subr.bf16.mxu0 0
  %497 = vmatpush1.bf16.msra.mxu0 %v396
  %498 = vmatprep.subr.bf16.mxu0 0
  %499 = vmatpush1.bf16.msra.mxu0 %v395
  %500 = vmatprep.subr.bf16.mxu0 0
  %501 = vmatpush2.bf16.msra.mxu0 %v410
  %502 = vmatprep.subr.bf16.mxu0 0
  %503 = vmatpush2.bf16.msra.mxu0 %v409
  %504 = vmatprep.subr.bf16.mxu0 0
  %505 = vmatpush2.bf16.msra.mxu0 %v408
  %506 = vmatprep.subr.bf16.mxu0 0
  %507 = vmatpush2.bf16.msra.mxu0 %v407
  %508 = vmatprep.subr.bf16.mxu0 0
  %509 = vmatpush2.bf16.msra.mxu0 %v406
  %510 = vmatprep.subr.bf16.mxu0 0
  %511 = vmatpush2.bf16.msra.mxu0 %v405
  %512 = vmatprep.subr.bf16.mxu0 0
  %513 = vmatpush2.bf16.msra.mxu0 %v404
  %514 = vmatprep.subr.bf16.mxu0 0
  %515 = vmatpush2.bf16.msra.mxu0 %v403
  %516 = vmatprep.mubr.bf16.mxu0 %v223
  %517 = vmatmul.mubr.bf16.gmra.mxu0 %v222
  %v518 = vpop.f32.mrf.mxu0
  %v519 = vadd.f32 0.0, %v518
  %v520 = vpop.f32.mrf.mxu0
  %v521 = vpop.f32.mrf.mxu0
  %v522 = vadd.f32 0.0, %v521
  %v523 = vpop.f32.mrf.mxu0
  %524 = vdwg.mxu0
  %525 = vmatprep.subr.bf16.mxu0 0
  %526 = vmatpush1.bf16.msra.mxu0 %v418
  %527 = vmatprep.subr.bf16.mxu0 0
  %528 = vmatpush1.bf16.msra.mxu0 %v417
  %529 = vmatprep.subr.bf16.mxu0 0
  %530 = vmatpush1.bf16.msra.mxu0 %v416
  %531 = vmatprep.subr.bf16.mxu0 0
  %532 = vmatpush1.bf16.msra.mxu0 %v415
  %533 = vmatprep.subr.bf16.mxu0 0
  %534 = vmatpush1.bf16.msra.mxu0 %v414
  %535 = vmatprep.subr.bf16.mxu0 0
  %536 = vmatpush1.bf16.msra.mxu0 %v413
  %537 = vmatprep.subr.bf16.mxu0 0
  %538 = vmatpush1.bf16.msra.mxu0 %v412
  %539 = vmatprep.subr.bf16.mxu0 0
  %540 = vmatpush1.bf16.msra.mxu0 %v411
  %541 = vmatprep.subr.bf16.mxu0 0
  %542 = vmatpush2.bf16.msra.mxu0 %v426
  %543 = vmatprep.subr.bf16.mxu0 0
  %544 = vmatpush2.bf16.msra.mxu0 %v425
  %545 = vmatprep.subr.bf16.mxu0 0
  %546 = vmatpush2.bf16.msra.mxu0 %v424
  %547 = vmatprep.subr.bf16.mxu0 0
  %548 = vmatpush2.bf16.msra.mxu0 %v423
  %549 = vmatprep.subr.bf16.mxu0 0
  %550 = vmatpush2.bf16.msra.mxu0 %v422
  %551 = vmatprep.subr.bf16.mxu0 0
  %552 = vmatpush2.bf16.msra.mxu0 %v421
  %553 = vmatprep.subr.bf16.mxu0 0
  %554 = vmatpush2.bf16.msra.mxu0 %v420
  %555 = vmatprep.subr.bf16.mxu0 0
  %556 = vmatpush2.bf16.msra.mxu0 %v419
  %557 = vmatprep.mubr.bf16.mxu0 %v225
  %558 = vmatmul.mubr.bf16.gmra.mxu0 %v224
  %v559 = vpop.f32.mrf.mxu0
  %v560 = vadd.f32 %v519, %v559
  %v561 = vpop.f32.mrf.mxu0
  %v562 = vpop.f32.mrf.mxu0
  %v563 = vadd.f32 %v522, %v562
  %v564 = vpop.f32.mrf.mxu0
  %565 = vdwg.mxu0
  %566 = vmatprep.subr.bf16.mxu0 0
  %567 = vmatpush1.bf16.msra.mxu0 %v434
  %568 = vmatprep.subr.bf16.mxu0 0
  %569 = vmatpush1.bf16.msra.mxu0 %v433
  %570 = vmatprep.subr.bf16.mxu0 0
  %571 = vmatpush1.bf16.msra.mxu0 %v432
  %572 = vmatprep.subr.bf16.mxu0 0
  %573 = vmatpush1.bf16.msra.mxu0 %v431
  %574 = vmatprep.subr.bf16.mxu0 0
  %575 = vmatpush1.bf16.msra.mxu0 %v430
  %576 = vmatprep.subr.bf16.mxu0 0
  %577 = vmatpush1.bf16.msra.mxu0 %v429
  %578 = vmatprep.subr.bf16.mxu0 0
  %579 = vmatpush1.bf16.msra.mxu0 %v428
  %580 = vmatprep.subr.bf16.mxu0 0
  %581 = vmatpush1.bf16.msra.mxu0 %v427
  %582 = vmatprep.subr.bf16.mxu0 0
  %583 = vmatpush2.bf16.msra.mxu0 0
  %584 = vmatprep.subr.bf16.mxu0 0
  %585 = vmatpush2.bf16.msra.mxu0 0
  %586 = vmatprep.subr.bf16.mxu0 0
  %587 = vmatpush2.bf16.msra.mxu0 0
  %588 = vmatprep.subr.bf16.mxu0 0
  %589 = vmatpush2.bf16.msra.mxu0 0
  %590 = vmatprep.subr.bf16.mxu0 0
  %591 = vmatpush2.bf16.msra.mxu0 0
  %592 = vmatprep.subr.bf16.mxu0 0
  %593 = vmatpush2.bf16.msra.mxu0 0
  %594 = vmatprep.subr.bf16.mxu0 0
  %595 = vmatpush2.bf16.msra.mxu0 0
  %596 = vmatprep.subr.bf16.mxu0 0
  %597 = vmatpush2.bf16.msra.mxu0 %v482
  %598 = vmatprep.mubr.bf16.mxu0 %v478
  %599 = vmatmul.mubr.bf16.gmra.mxu0 %v226
  %v600 = vpop.f32.mrf.mxu0
  %v601 = vadd.f32 %v560, %v600
  %v602 = vpop.f32.mrf.mxu0
  %v603 = vpop.f32.mrf.mxu0
  %v604 = vadd.f32 %v563, %v603
  %v605 = vpop.f32.mrf.mxu0
  %606 = vdwg.mxu0
  %v613 = vunpack.c.l.b16 %v30
  %v614 = vunpack.c.h.b16 %v30
  %v615 = vunpack.c.l.b16 %v31
  %v616 = vunpack.c.h.b16 %v31
  %v617 = vunpack.c.l.b16 %v32
  %v618 = vunpack.c.h.b16 %v32
  %v619 = vunpack.c.l.b16 %v33
  %v620 = vunpack.c.h.b16 %v33
  %v621 = vunpack.c.l.b16 %v34
  %v622 = vunpack.c.h.b16 %v34
  %v623 = vunpack.c.l.b16 %v35
  %v624 = vunpack.c.h.b16 %v35
  %v625 = vpack.c.b16 %v619, %v613
  %v626 = vpack.c.b16 %v620, %v614
  %v627 = vpack.c.b16 %v621, %v615
  %v628 = vpack.c.b16 %v622, %v616
  %v629 = vpack.c.b16 %v623, %v617
  %v630 = vpack.c.b16 %v624, %v618
  %v717 = vunpack.c.l.b16 %v36
  %v718 = vunpack.c.l.b16 %v37
  %v719 = vunpack.c.l.b16 %v38
  %v720 = vunpack.c.l.b16 %v39
  %v721 = vunpack.c.l.b16 %v40
  %v722 = vunpack.c.l.b16 %v41
  %v723 = vunpack.c.l.b16 %v42
  %v724 = vunpack.c.l.b16 %v43
  %v725 = vunpack.c.l.b16 %v44
  %v726 = vunpack.c.l.b16 %v45
  %v727 = vunpack.c.l.b16 %v46
  %v728 = vunpack.c.l.b16 %v47
  %v729 = vunpack.c.l.b16 %v48
  %v730 = vunpack.c.l.b16 %v49
  %v731 = vunpack.c.l.b16 %v50
  %v732 = vunpack.c.l.b16 %v51
  %v733 = vunpack.c.l.b16 %v52
  %v734 = vunpack.c.l.b16 %v53
  %v735 = vunpack.c.l.b16 %v54
  %v736 = vunpack.c.l.b16 %v55
  %v737 = vunpack.c.l.b16 %v56
  %v738 = vunpack.c.l.b16 %v57
  %v739 = vunpack.c.l.b16 %v58
  %v740 = vunpack.c.l.b16 %v59
  %v741 = vunpack.c.l.b16 %v60
  %v742 = vunpack.c.l.b16 %v61
  %v743 = vunpack.c.l.b16 %v62
  %v744 = vunpack.c.l.b16 %v63
  %v745 = vunpack.c.l.b16 %v64
  %v746 = vunpack.c.l.b16 %v65
  %v747 = vunpack.c.l.b16 %v66
  %v748 = vunpack.c.l.b16 %v67
  %v749 = vunpack.c.l.b16 %v68
  %v750 = vunpack.c.l.b16 %v69
  %v751 = vunpack.c.l.b16 %v70
  %v752 = vunpack.c.l.b16 %v71
  %v753 = vunpack.c.l.b16 %v72
  %v754 = vunpack.c.l.b16 %v73
  %v755 = vunpack.c.l.b16 %v74
  %v756 = vunpack.c.l.b16 %v75
  %v757 = vunpack.c.l.b16 %v76
  %v758 = vunpack.c.l.b16 %v77
  %v759 = vunpack.c.l.b16 %v78
  %v760 = vunpack.c.l.b16 %v79
  %v761 = vunpack.c.l.b16 %v80
  %v762 = vunpack.c.l.b16 %v81
  %v763 = vunpack.c.l.b16 %v82
  %v764 = vunpack.c.l.b16 %v83
  %v765 = vunpack.c.l.b16 %v84
  %v766 = vunpack.c.l.b16 %v85
  %v767 = vunpack.c.l.b16 %v86
  %v768 = vunpack.c.l.b16 %v87
  %v769 = vunpack.c.l.b16 %v88
  %v770 = vunpack.c.l.b16 %v89
  %v771 = vunpack.c.l.b16 %v90
  %v772 = vunpack.c.l.b16 %v91
  %v773 = vunpack.c.l.b16 %v92
  %v774 = vunpack.c.l.b16 %v93
  %v775 = vunpack.c.l.b16 %v94
  %v776 = vunpack.c.l.b16 %v95
  %v777 = vunpack.c.l.b16 %v96
  %v778 = vunpack.c.l.b16 %v97
  %v779 = vunpack.c.l.b16 %v98
  %v780 = vunpack.c.l.b16 %v99
  %v781 = vunpack.c.l.b16 %v100
  %v782 = vunpack.c.l.b16 %v101
  %v783 = vunpack.c.l.b16 %v102
  %v784 = vunpack.c.l.b16 %v103
  %v785 = vunpack.c.l.b16 %v104
  %v786 = vunpack.c.l.b16 %v105
  %v787 = vunpack.c.l.b16 %v106
  %v788 = vunpack.c.l.b16 %v107
  %v789 = vunpack.c.l.b16 %v108
  %v790 = vunpack.c.l.b16 %v109
  %v791 = vunpack.c.l.b16 %v110
  %v792 = vunpack.c.l.b16 %v111
  %v793 = vunpack.c.l.b16 %v112
  %v794 = vunpack.c.l.b16 %v113
  %v795 = vunpack.c.l.b16 %v114
  %v796 = vunpack.c.l.b16 %v115
  %v797 = vunpack.c.l.b16 %v116
  %v798 = vpack.c.b16 %v718, %v717
  %v799 = vpack.c.b16 %v720, %v719
  %v800 = vpack.c.b16 %v722, %v721
  %v801 = vpack.c.b16 %v724, %v723
  %v802 = vpack.c.b16 %v726, %v725
  %v803 = vpack.c.b16 %v728, %v727
  %v804 = vpack.c.b16 %v730, %v729
  %v805 = vpack.c.b16 %v732, %v731
  %v806 = vpack.c.b16 %v734, %v733
  %v807 = vpack.c.b16 %v736, %v735
  %v808 = vpack.c.b16 %v738, %v737
  %v809 = vpack.c.b16 %v740, %v739
  %v810 = vpack.c.b16 %v742, %v741
  %v811 = vpack.c.b16 %v744, %v743
  %v812 = vpack.c.b16 %v746, %v745
  %v813 = vpack.c.b16 %v748, %v747
  %v814 = vpack.c.b16 %v750, %v749
  %v815 = vpack.c.b16 %v752, %v751
  %v816 = vpack.c.b16 %v754, %v753
  %v817 = vpack.c.b16 %v756, %v755
  %v818 = vpack.c.b16 %v758, %v757
  %v819 = vpack.c.b16 %v760, %v759
  %v820 = vpack.c.b16 %v762, %v761
  %v821 = vpack.c.b16 %v764, %v763
  %v822 = vpack.c.b16 %v766, %v765
  %v823 = vpack.c.b16 %v768, %v767
  %v824 = vpack.c.b16 %v770, %v769
  %v825 = vpack.c.b16 %v772, %v771
  %v826 = vpack.c.b16 %v774, %v773
  %v827 = vpack.c.b16 %v776, %v775
  %v828 = vpack.c.b16 %v778, %v777
  %v829 = vpack.c.b16 %v780, %v779
  %v830 = vpack.c.b16 %v782, %v781
  %v831 = vpack.c.b16 %v784, %v783
  %v832 = vpack.c.b16 %v786, %v785
  %v833 = vpack.c.b16 %v788, %v787
  %v834 = vpack.c.b16 %v790, %v789
  %v835 = vpack.c.b16 %v792, %v791
  %v836 = vpack.c.b16 %v794, %v793
  %v837 = vpack.c.b16 %v796, %v795
  %v838 = vpack.c.b16 %v797, %v797
  %v880 = vsel %vm476, %v630, 0
  %v883 = vsel %vm480, %v838, 0
  %885 = vmatprep.subr.bf16.mxu0 0
  %886 = vmatpush1.bf16.msra.mxu0 %v805
  %887 = vmatprep.subr.bf16.mxu0 0
  %888 = vmatpush1.bf16.msra.mxu0 %v804
  %889 = vmatprep.subr.bf16.mxu0 0
  %890 = vmatpush1.bf16.msra.mxu0 %v803
  %891 = vmatprep.subr.bf16.mxu0 0
  %892 = vmatpush1.bf16.msra.mxu0 %v802
  %893 = vmatprep.subr.bf16.mxu0 0
  %894 = vmatpush1.bf16.msra.mxu0 %v801
  %895 = vmatprep.subr.bf16.mxu0 0
  %896 = vmatpush1.bf16.msra.mxu0 %v800
  %897 = vmatprep.subr.bf16.mxu0 0
  %898 = vmatpush1.bf16.msra.mxu0 %v799
  %899 = vmatprep.subr.bf16.mxu0 0
  %900 = vmatpush1.bf16.msra.mxu0 %v798
  %901 = vmatprep.subr.bf16.mxu0 0
  %902 = vmatpush2.bf16.msra.mxu0 %v813
  %903 = vmatprep.subr.bf16.mxu0 0
  %904 = vmatpush2.bf16.msra.mxu0 %v812
  %905 = vmatprep.subr.bf16.mxu0 0
  %906 = vmatpush2.bf16.msra.mxu0 %v811
  %907 = vmatprep.subr.bf16.mxu0 0
  %908 = vmatpush2.bf16.msra.mxu0 %v810
  %909 = vmatprep.subr.bf16.mxu0 0
  %910 = vmatpush2.bf16.msra.mxu0 %v809
  %911 = vmatprep.subr.bf16.mxu0 0
  %912 = vmatpush2.bf16.msra.mxu0 %v808
  %913 = vmatprep.subr.bf16.mxu0 0
  %914 = vmatpush2.bf16.msra.mxu0 %v807
  %915 = vmatprep.subr.bf16.mxu0 0
  %916 = vmatpush2.bf16.msra.mxu0 %v806
  %917 = vmatprep.mubr.bf16.mxu0 %v626
  %918 = vmatmul.mubr.bf16.gmra.mxu0 %v625
  %v919 = vpop.f32.mrf.mxu0
  %v920 = vadd.f32 %v601, %v919
  %v921 = vpop.f32.mrf.mxu0
  %v922 = vpop.f32.mrf.mxu0
  %v923 = vadd.f32 %v604, %v922
  %v924 = vpop.f32.mrf.mxu0
  %925 = vdwg.mxu0
  %926 = vmatprep.subr.bf16.mxu0 0
  %927 = vmatpush1.bf16.msra.mxu0 %v821
  %928 = vmatprep.subr.bf16.mxu0 0
  %929 = vmatpush1.bf16.msra.mxu0 %v820
  %930 = vmatprep.subr.bf16.mxu0 0
  %931 = vmatpush1.bf16.msra.mxu0 %v819
  %932 = vmatprep.subr.bf16.mxu0 0
  %933 = vmatpush1.bf16.msra.mxu0 %v818
  %934 = vmatprep.subr.bf16.mxu0 0
  %935 = vmatpush1.bf16.msra.mxu0 %v817
  %936 = vmatprep.subr.bf16.mxu0 0
  %937 = vmatpush1.bf16.msra.mxu0 %v816
  %938 = vmatprep.subr.bf16.mxu0 0
  %939 = vmatpush1.bf16.msra.mxu0 %v815
  %940 = vmatprep.subr.bf16.mxu0 0
  %941 = vmatpush1.bf16.msra.mxu0 %v814
  %942 = vmatprep.subr.bf16.mxu0 0
  %943 = vmatpush2.bf16.msra.mxu0 %v829
  %944 = vmatprep.subr.bf16.mxu0 0
  %945 = vmatpush2.bf16.msra.mxu0 %v828
  %946 = vmatprep.subr.bf16.mxu0 0
  %947 = vmatpush2.bf16.msra.mxu0 %v827
  %948 = vmatprep.subr.bf16.mxu0 0
  %949 = vmatpush2.bf16.msra.mxu0 %v826
  %950 = vmatprep.subr.bf16.mxu0 0
  %951 = vmatpush2.bf16.msra.mxu0 %v825
  %952 = vmatprep.subr.bf16.mxu0 0
  %953 = vmatpush2.bf16.msra.mxu0 %v824
  %954 = vmatprep.subr.bf16.mxu0 0
  %955 = vmatpush2.bf16.msra.mxu0 %v823
  %956 = vmatprep.subr.bf16.mxu0 0
  %957 = vmatpush2.bf16.msra.mxu0 %v822
  %958 = vmatprep.mubr.bf16.mxu0 %v628
  %959 = vmatmul.mubr.bf16.gmra.mxu0 %v627
  %v960 = vpop.f32.mrf.mxu0
  %v961 = vadd.f32 %v920, %v960
  %v962 = vpop.f32.mrf.mxu0
  %v963 = vpop.f32.mrf.mxu0
  %v964 = vadd.f32 %v923, %v963
  %v965 = vpop.f32.mrf.mxu0
  %966 = vdwg.mxu0
  %967 = vmatprep.subr.bf16.mxu0 0
  %968 = vmatpush1.bf16.msra.mxu0 %v837
  %969 = vmatprep.subr.bf16.mxu0 0
  %970 = vmatpush1.bf16.msra.mxu0 %v836
  %971 = vmatprep.subr.bf16.mxu0 0
  %972 = vmatpush1.bf16.msra.mxu0 %v835
  %973 = vmatprep.subr.bf16.mxu0 0
  %974 = vmatpush1.bf16.msra.mxu0 %v834
  %975 = vmatprep.subr.bf16.mxu0 0
  %976 = vmatpush1.bf16.msra.mxu0 %v833
  %977 = vmatprep.subr.bf16.mxu0 0
  %978 = vmatpush1.bf16.msra.mxu0 %v832
  %979 = vmatprep.subr.bf16.mxu0 0
  %980 = vmatpush1.bf16.msra.mxu0 %v831
  %981 = vmatprep.subr.bf16.mxu0 0
  %982 = vmatpush1.bf16.msra.mxu0 %v830
  %983 = vmatprep.subr.bf16.mxu0 0
  %984 = vmatpush2.bf16.msra.mxu0 0
  %985 = vmatprep.subr.bf16.mxu0 0
  %986 = vmatpush2.bf16.msra.mxu0 0
  %987 = vmatprep.subr.bf16.mxu0 0
  %988 = vmatpush2.bf16.msra.mxu0 0
  %989 = vmatprep.subr.bf16.mxu0 0
  %990 = vmatpush2.bf16.msra.mxu0 0
  %991 = vmatprep.subr.bf16.mxu0 0
  %992 = vmatpush2.bf16.msra.mxu0 0
  %993 = vmatprep.subr.bf16.mxu0 0
  %994 = vmatpush2.bf16.msra.mxu0 0
  %995 = vmatprep.subr.bf16.mxu0 0
  %996 = vmatpush2.bf16.msra.mxu0 0
  %997 = vmatprep.subr.bf16.mxu0 0
  %998 = vmatpush2.bf16.msra.mxu0 %v883
  %999 = vmatprep.mubr.bf16.mxu0 %v880
  %1000 = vmatmul.mubr.bf16.gmra.mxu0 %v629
  %v1001 = vpop.f32.mrf.mxu0
  %v1002 = vadd.f32 %v961, %v1001
  %v1003 = vpop.f32.mrf.mxu0
  %v1004 = vpop.f32.mrf.mxu0
  %v1005 = vadd.f32 %v964, %v1004
  %v1006 = vpop.f32.mrf.mxu0
  %1007 = vdwg.mxu0
  %v1008 = vadd.f32 %v28, %v1002
  %v1009 = vadd.f32 %v29, %v1005
  %vm1010 = vcmask 261120
  %1011 = vst.msk [vmem:[#allocation2] sm:$0xff] %vm1010, %v1008
  %1012 = vst.msk [vmem:[#allocation2 + $0x8] sm:$0xff] %vm1010, %v1009
  // Predicated region
  $region26: #{_lambda_.9} parent=0 // pred_check
    %p1013 = pneg %p21
  $region27: #{_lambda_.9} parent=0 // pred_check_branch
    %1015 = sbr.rel (%p1013) target = $region29
  $region28: #{_lambda_.9} parent=0 // pred_region
    %v1016 = vld [vmem:[#allocation2] sm:$0xff]
    %v1017 = vld [vmem:[#allocation2 + $0x8] sm:$0xff]
    %v1018 = vld [vmem:[%s4] sm:$0x1]
    %v1020 = vlaneseq
    %v1021 = vshrl.u32 %v1020, 7
    %v1022 = vsub.s32 0, %v1021
    %v1023 = vrot.slane %v1018, %v1022
    %v1025 = vadd.f32 %v1016, %v1023
    %v1026 = vadd.f32 %v1017, %v1023
    %v1027 = vpack.c.bf16 %v1026, %v1025
    %v1029 = vunpack.c.l.b16 %v1027
    %v1030 = vunpack.c.h.b16 %v1027
    %v1031 = vpack.c.b16 %v1029, %v1029
    %v1032 = vpack.c.b16 %v1030, %v1030
    %vm1035 = vcmask 257024
    %1036 = vst.msk [vmem:[%s5] sm:$0xf] %vm1035, %v1031
    %1037 = vst.msk [vmem:[%s5 + $0x4] sm:$0xf] %vm1035, %v1032
  $region29: #{_lambda_.9} parent=0 // pred_fallthru
    _
  // Predicated region
  $region30: #{_lambda_.9} parent=0 // pred_check
    _
  $region31: #{_lambda_.9} parent=0 // pred_check_branch
    %1039 = sbr.rel (0) target = $region33
  $region32: #{_lambda_.9} parent=0 // pred_region
    _
  $region33: #{_lambda_.9} parent=0 // pred_fallthru
    _
  // Predicated region
  $region34: #{_lambda_.9} parent=0 // pred_check
    _
  $region35: #{_lambda_.9} parent=0 // pred_check_branch
    %1041 = sbr.rel (0) target = $region37
  $region36: #{_lambda_.9} parent=0 // pred_region
    _
  $region37: #{_lambda_.9} parent=0 // pred_fallthru
    _

// kernel: _lambda_.11
$region0: #{_lambda_.11}
  #allocation0 [shape = 'u32[]', space=smem, size = 0x4, offset = 0x4, fixed_abs, tag = 'smem constant byte address 0x4 - core index']
  #allocation1 [shape = 'u32[144,128]{1,0:T(1,128)}', space=vmem, size = 0x12000, scoped, tag = 'internal scratch']
  #allocation2 [shape = 'f32[1,1]{1,0:T(1,128)S(1)}', space=vmem, size = 0x200, scoped, tag = 'scoped memory for _lambda_.11']
  %s0 = inlined_call_operand.vmem [shape: bf16[16,32], index: 0, kind: input, shape index: {}]
  %s1 = inlined_call_operand.vmem [shape: bf16[16,32], index: 1, kind: input, shape index: {}]
  %s2 = inlined_call_operand.vmem [shape: bf16[16,32], index: 2, kind: input, shape index: {}]
  %s3 = inlined_call_operand.vmem [shape: bf16[16,32], index: 3, kind: input, shape index: {}]
  %s4 = inlined_call_operand.vmem [shape: bf16[32,32], index: 4, kind: input, shape index: {}]
  %s5 = inlined_call_operand.vmem [shape: bf16[32,32], index: 5, kind: input, shape index: {}]
  %s6 = inlined_call_operand.vmem [shape: f32[1,32], index: 6, kind: input, shape index: {}]
  %s7 = inlined_call_operand.vmem [shape: bf16[32,32], index: 7, kind: input, shape index: {}]
  %s8 = inlined_call_operand.vmem [shape: bf16[32,32], index: 8, kind: input, shape index: {}]
  %s9 = inlined_call_operand.vmem [shape: f32[1,32], index: 9, kind: input, shape index: {}]
  %s10 = inlined_call_operand.vmem [shape: bf16[1,32], index: 10, kind: input, shape index: {}]
  %s11 = inlined_call_operand.vmem [shape: bf16[1,32], index: 11, kind: input, shape index: {}]
  %s12 = inlined_call_operand.<no memory space> [shape: f32[1,1], index: 12, kind: input, shape index: {}]
  %s13 = inlined_call_operand.vmem [shape: f32[1,16], index: 13, kind: output, shape index: {}]
  %s14 = sld [smem:[#allocation0]]
  $region62: #{_lambda_.11} parent=0
    _
  %s16 = ssub.s32 1, %s14
  %s17 = scalar_select 0, %s16, %s14
  %v18 = vstv %s12
  %19 = vst [vmem:[#allocation2] sm:$0x1] %v18
  // Predicated region
  $region2: #{_lambda_.11} parent=0 // pred_check
    _
  $region3: #{_lambda_.11} parent=0 // pred_check_branch
    %21 = sbr.rel (0) target = $region5
  $region4: #{_lambda_.11} parent=0 // pred_region
    _
  $region5: #{_lambda_.11} parent=0 // pred_fallthru
    _
  // Predicated region
  $region6: #{_lambda_.11} parent=0 // pred_check
    _
  $region7: #{_lambda_.11} parent=0 // pred_check_branch
    %23 = sbr.rel (0) target = $region9
  $region8: #{_lambda_.11} parent=0 // pred_region
    _
  $region9: #{_lambda_.11} parent=0 // pred_fallthru
    _
  // Predicated region
  $region10: #{_lambda_.11} parent=0 // pred_check
    _
  $region11: #{_lambda_.11} parent=0 // pred_check_branch
    %25 = sbr.rel (0) target = $region13
  $region12: #{_lambda_.11} parent=0 // pred_region
    _
  $region13: #{_lambda_.11} parent=0 // pred_fallthru
    _
  // Predicated region
  $region14: #{_lambda_.11} parent=0 // pred_check
    _
  $region15: #{_lambda_.11} parent=0 // pred_check_branch
    %27 = sbr.rel (0) target = $region17
  $region16: #{_lambda_.11} parent=0 // pred_region
    _
  $region17: #{_lambda_.11} parent=0 // pred_fallthru
    _
  // Predicated region
  $region18: #{_lambda_.11} parent=0 // pred_check
    _
  $region19: #{_lambda_.11} parent=0 // pred_check_branch
    %29 = sbr.rel (0) target = $region21
  $region20: #{_lambda_.11} parent=0 // pred_region
    _
  $region21: #{_lambda_.11} parent=0 // pred_fallthru
    _
  // Predicated region
  $region22: #{_lambda_.11} parent=0 // pred_check
    _
  $region23: #{_lambda_.11} parent=0 // pred_check_branch
    %31 = sbr.rel (0) target = $region25
  $region24: #{_lambda_.11} parent=0 // pred_region
    _
  $region25: #{_lambda_.11} parent=0 // pred_fallthru
    _
  // Predicated region
  $region26: #{_lambda_.11} parent=0 // pred_check
    _
  $region27: #{_lambda_.11} parent=0 // pred_check_branch
    %33 = sbr.rel (0) target = $region29
  $region28: #{_lambda_.11} parent=0 // pred_region
    _
  $region29: #{_lambda_.11} parent=0 // pred_fallthru
    _
  // Predicated region
  $region30: #{_lambda_.11} parent=0 // pred_check
    _
  $region31: #{_lambda_.11} parent=0 // pred_check_branch
    %35 = sbr.rel (0) target = $region33
  $region32: #{_lambda_.11} parent=0 // pred_region
    _
  $region33: #{_lambda_.11} parent=0 // pred_fallthru
    _
  // Predicated region
  $region34: #{_lambda_.11} parent=0 // pred_check
    _
  $region35: #{_lambda_.11} parent=0 // pred_check_branch
    %37 = sbr.rel (0) target = $region37
  $region36: #{_lambda_.11} parent=0 // pred_region
    _
  $region37: #{_lambda_.11} parent=0 // pred_fallthru
    _
  // Predicated region
  $region38: #{_lambda_.11} parent=0 // pred_check
    _
  $region39: #{_lambda_.11} parent=0 // pred_check_branch
    %39 = sbr.rel (0) target = $region41
  $region40: #{_lambda_.11} parent=0 // pred_region
    _
  $region41: #{_lambda_.11} parent=0 // pred_fallthru
    _
  // Predicated region
  $region42: #{_lambda_.11} parent=0 // pred_check
    _
  $region43: #{_lambda_.11} parent=0 // pred_check_branch
    %41 = sbr.rel (0) target = $region45
  $region44: #{_lambda_.11} parent=0 // pred_region
    _
  $region45: #{_lambda_.11} parent=0 // pred_fallthru
    _
  // Predicated region
  $region46: #{_lambda_.11} parent=0 // pred_check
    _
  $region47: #{_lambda_.11} parent=0 // pred_check_branch
    %43 = sbr.rel (0) target = $region49
  $region48: #{_lambda_.11} parent=0 // pred_region
    _
  $region49: #{_lambda_.11} parent=0 // pred_fallthru
    _
  // Predicated region
  $region50: #{_lambda_.11} parent=0 // pred_check
    _
  $region51: #{_lambda_.11} parent=0 // pred_check_branch
    %45 = sbr.rel (0) target = $region53
  $region52: #{_lambda_.11} parent=0 // pred_region
    _
  $region53: #{_lambda_.11} parent=0 // pred_fallthru
    _
  %v47 = vld [vmem:[%s0] sm:$0xf]
  %v48 = vld [vmem:[%s0 + $0x4] sm:$0xf]
  %v49 = vld [vmem:[%s4] sm:$0xf]
  %v50 = vld [vmem:[%s4 + $0x4] sm:$0xf]
  %v51 = vld [vmem:[%s4 + $0x8] sm:$0xf]
  %v52 = vld [vmem:[%s4 + $0xc] sm:$0xf]
  %v53 = vld [vmem:[%s1] sm:$0xf]
  %v54 = vld [vmem:[%s1 + $0x4] sm:$0xf]
  %v55 = vld [vmem:[%s5] sm:$0xf]
  %v56 = vld [vmem:[%s5 + $0x4] sm:$0xf]
  %v57 = vld [vmem:[%s5 + $0x8] sm:$0xf]
  %v58 = vld [vmem:[%s5 + $0xc] sm:$0xf]
  %v61 = vunpack.c.l.b16 %v53
  %v62 = vunpack.c.l.b16 %v54
  %v63 = vpack.c.b16 %v62, %v61
  %v68 = vunpack.c.l.b16 %v55
  %v69 = vunpack.c.l.b16 %v56
  %v70 = vunpack.c.l.b16 %v57
  %v71 = vunpack.c.l.b16 %v58
  %v72 = vpack.c.b16 %v69, %v68
  %v73 = vpack.c.b16 %v71, %v70
  %vm76 = vcmask 261120
  %v78 = vsel %vm76, %v63, 0
  %80 = vmatprep.subr.bf16.mxu0 0
  %81 = vmatpush1.bf16.msra.mxu0 0
  %82 = vmatprep.subr.bf16.mxu0 0
  %83 = vmatpush1.bf16.msra.mxu0 0
  %84 = vmatprep.subr.bf16.mxu0 0
  %85 = vmatpush1.bf16.msra.mxu0 0
  %86 = vmatprep.subr.bf16.mxu0 0
  %87 = vmatpush1.bf16.msra.mxu0 0
  %88 = vmatprep.subr.bf16.mxu0 0
  %89 = vmatpush1.bf16.msra.mxu0 0
  %90 = vmatprep.subr.bf16.mxu0 0
  %91 = vmatpush1.bf16.msra.mxu0 0
  %92 = vmatprep.subr.bf16.mxu0 0
  %93 = vmatpush1.bf16.msra.mxu0 %v73
  %94 = vmatprep.subr.bf16.mxu0 0
  %95 = vmatpush1.bf16.msra.mxu0 %v72
  %96 = vmatprep.subr.bf16.mxu0 0
  %97 = vmatpush2.bf16.msra.mxu0 0
  %98 = vmatprep.subr.bf16.mxu0 0
  %99 = vmatpush2.bf16.msra.mxu0 0
  %100 = vmatprep.subr.bf16.mxu0 0
  %101 = vmatpush2.bf16.msra.mxu0 0
  %102 = vmatprep.subr.bf16.mxu0 0
  %103 = vmatpush2.bf16.msra.mxu0 0
  %104 = vmatprep.subr.bf16.mxu0 0
  %105 = vmatpush2.bf16.msra.mxu0 0
  %106 = vmatprep.subr.bf16.mxu0 0
  %107 = vmatpush2.bf16.msra.mxu0 0
  %108 = vmatprep.subr.bf16.mxu0 0
  %109 = vmatpush2.bf16.msra.mxu0 0
  %110 = vmatprep.subr.bf16.mxu0 0
  %111 = vmatpush2.bf16.msra.mxu0 0
  %112 = vmatprep.mubr.bf16.mxu0 0
  %113 = vmatmul.mubr.bf16.gmra.mxu0 %v78
  %v114 = vpop.f32.mrf.mxu0
  %v115 = vadd.f32 0.0, %v114
  %v116 = vpop.f32.mrf.mxu0
  %v117 = vpop.f32.mrf.mxu0
  %v118 = vadd.f32 0.0, %v117
  %v119 = vpop.f32.mrf.mxu0
  %120 = vdwg.mxu0
  %v123 = vunpack.c.l.b16 %v47
  %v124 = vunpack.c.l.b16 %v48
  %v125 = vpack.c.b16 %v124, %v123
  %v130 = vunpack.c.l.b16 %v49
  %v131 = vunpack.c.l.b16 %v50
  %v132 = vunpack.c.l.b16 %v51
  %v133 = vunpack.c.l.b16 %v52
  %v134 = vpack.c.b16 %v131, %v130
  %v135 = vpack.c.b16 %v133, %v132
  %v139 = vsel %vm76, %v125, 0
  %141 = vmatprep.subr.bf16.mxu0 0
  %142 = vmatpush1.bf16.msra.mxu0 0
  %143 = vmatprep.subr.bf16.mxu0 0
  %144 = vmatpush1.bf16.msra.mxu0 0
  %145 = vmatprep.subr.bf16.mxu0 0
  %146 = vmatpush1.bf16.msra.mxu0 0
  %147 = vmatprep.subr.bf16.mxu0 0
  %148 = vmatpush1.bf16.msra.mxu0 0
  %149 = vmatprep.subr.bf16.mxu0 0
  %150 = vmatpush1.bf16.msra.mxu0 0
  %151 = vmatprep.subr.bf16.mxu0 0
  %152 = vmatpush1.bf16.msra.mxu0 0
  %153 = vmatprep.subr.bf16.mxu0 0
  %154 = vmatpush1.bf16.msra.mxu0 %v135
  %155 = vmatprep.subr.bf16.mxu0 0
  %156 = vmatpush1.bf16.msra.mxu0 %v134
  %157 = vmatprep.subr.bf16.mxu0 0
  %158 = vmatpush2.bf16.msra.mxu0 0
  %159 = vmatprep.subr.bf16.mxu0 0
  %160 = vmatpush2.bf16.msra.mxu0 0
  %161 = vmatprep.subr.bf16.mxu0 0
  %162 = vmatpush2.bf16.msra.mxu0 0
  %163 = vmatprep.subr.bf16.mxu0 0
  %164 = vmatpush2.bf16.msra.mxu0 0
  %165 = vmatprep.subr.bf16.mxu0 0
  %166 = vmatpush2.bf16.msra.mxu0 0
  %167 = vmatprep.subr.bf16.mxu0 0
  %168 = vmatpush2.bf16.msra.mxu0 0
  %169 = vmatprep.subr.bf16.mxu0 0
  %170 = vmatpush2.bf16.msra.mxu0 0
  %171 = vmatprep.subr.bf16.mxu0 0
  %172 = vmatpush2.bf16.msra.mxu0 0
  %173 = vmatprep.mubr.bf16.mxu0 0
  %174 = vmatmul.mubr.bf16.gmra.mxu0 %v139
  %v175 = vpop.f32.mrf.mxu0
  %v176 = vadd.f32 %v115, %v175
  %v177 = vpop.f32.mrf.mxu0
  %v178 = vpop.f32.mrf.mxu0
  %v179 = vadd.f32 %v118, %v178
  %v180 = vpop.f32.mrf.mxu0
  %181 = vdwg.mxu0
  %v182 = vld [vmem:[%s6] sm:$0x1]
  %v184 = vlaneseq
  %v185 = vshrl.u32 %v184, 7
  %v186 = vsub.s32 0, %v185
  %v187 = vrot.slane %v182, %v186
  %v189 = vadd.f32 %v176, %v187
  %v190 = vadd.f32 %v179, %v187
  %v191 = vmax.f32 %v189, 0.0
  %v192 = vmax.f32 %v190, 0.0
  %v193 = vld [vmem:[%s2] sm:$0xf]
  %v194 = vld [vmem:[%s2 + $0x4] sm:$0xf]
  %v195 = vld [vmem:[%s7] sm:$0xf]
  %v196 = vld [vmem:[%s7 + $0x4] sm:$0xf]
  %v197 = vld [vmem:[%s7 + $0x8] sm:$0xf]
  %v198 = vld [vmem:[%s7 + $0xc] sm:$0xf]
  %v199 = vld [vmem:[%s3] sm:$0xf]
  %v200 = vld [vmem:[%s3 + $0x4] sm:$0xf]
  %v201 = vld [vmem:[%s8] sm:$0xf]
  %v202 = vld [vmem:[%s8 + $0x4] sm:$0xf]
  %v203 = vld [vmem:[%s8 + $0x8] sm:$0xf]
  %v204 = vld [vmem:[%s8 + $0xc] sm:$0xf]
  %v207 = vunpack.c.l.b16 %v199
  %v208 = vunpack.c.l.b16 %v200
  %v209 = vpack.c.b16 %v208, %v207
  %v214 = vunpack.c.l.b16 %v201
  %v215 = vunpack.c.l.b16 %v202
  %v216 = vunpack.c.l.b16 %v203
  %v217 = vunpack.c.l.b16 %v204
  %v218 = vpack.c.b16 %v215, %v214
  %v219 = vpack.c.b16 %v217, %v216
  %v223 = vsel %vm76, %v209, 0
  %225 = vmatprep.subr.bf16.mxu0 0
  %226 = vmatpush1.bf16.msra.mxu0 0
  %227 = vmatprep.subr.bf16.mxu0 0
  %228 = vmatpush1.bf16.msra.mxu0 0
  %229 = vmatprep.subr.bf16.mxu0 0
  %230 = vmatpush1.bf16.msra.mxu0 0
  %231 = vmatprep.subr.bf16.mxu0 0
  %232 = vmatpush1.bf16.msra.mxu0 0
  %233 = vmatprep.subr.bf16.mxu0 0
  %234 = vmatpush1.bf16.msra.mxu0 0
  %235 = vmatprep.subr.bf16.mxu0 0
  %236 = vmatpush1.bf16.msra.mxu0 0
  %237 = vmatprep.subr.bf16.mxu0 0
  %238 = vmatpush1.bf16.msra.mxu0 %v219
  %239 = vmatprep.subr.bf16.mxu0 0
  %240 = vmatpush1.bf16.msra.mxu0 %v218
  %241 = vmatprep.subr.bf16.mxu0 0
  %242 = vmatpush2.bf16.msra.mxu0 0
  %243 = vmatprep.subr.bf16.mxu0 0
  %244 = vmatpush2.bf16.msra.mxu0 0
  %245 = vmatprep.subr.bf16.mxu0 0
  %246 = vmatpush2.bf16.msra.mxu0 0
  %247 = vmatprep.subr.bf16.mxu0 0
  %248 = vmatpush2.bf16.msra.mxu0 0
  %249 = vmatprep.subr.bf16.mxu0 0
  %250 = vmatpush2.bf16.msra.mxu0 0
  %251 = vmatprep.subr.bf16.mxu0 0
  %252 = vmatpush2.bf16.msra.mxu0 0
  %253 = vmatprep.subr.bf16.mxu0 0
  %254 = vmatpush2.bf16.msra.mxu0 0
  %255 = vmatprep.subr.bf16.mxu0 0
  %256 = vmatpush2.bf16.msra.mxu0 0
  %257 = vmatprep.mubr.bf16.mxu0 0
  %258 = vmatmul.mubr.bf16.gmra.mxu0 %v223
  %v259 = vpop.f32.mrf.mxu0
  %v260 = vadd.f32 0.0, %v259
  %v261 = vpop.f32.mrf.mxu0
  %v262 = vpop.f32.mrf.mxu0
  %v263 = vadd.f32 0.0, %v262
  %v264 = vpop.f32.mrf.mxu0
  %265 = vdwg.mxu0
  %v268 = vunpack.c.l.b16 %v193
  %v269 = vunpack.c.l.b16 %v194
  %v270 = vpack.c.b16 %v269, %v268
  %v275 = vunpack.c.l.b16 %v195
  %v276 = vunpack.c.l.b16 %v196
  %v277 = vunpack.c.l.b16 %v197
  %v278 = vunpack.c.l.b16 %v198
  %v279 = vpack.c.b16 %v276, %v275
  %v280 = vpack.c.b16 %v278, %v277
  %v284 = vsel %vm76, %v270, 0
  %286 = vmatprep.subr.bf16.mxu0 0
  %287 = vmatpush1.bf16.msra.mxu0 0
  %288 = vmatprep.subr.bf16.mxu0 0
  %289 = vmatpush1.bf16.msra.mxu0 0
  %290 = vmatprep.subr.bf16.mxu0 0
  %291 = vmatpush1.bf16.msra.mxu0 0
  %292 = vmatprep.subr.bf16.mxu0 0
  %293 = vmatpush1.bf16.msra.mxu0 0
  %294 = vmatprep.subr.bf16.mxu0 0
  %295 = vmatpush1.bf16.msra.mxu0 0
  %296 = vmatprep.subr.bf16.mxu0 0
  %297 = vmatpush1.bf16.msra.mxu0 0
  %298 = vmatprep.subr.bf16.mxu0 0
  %299 = vmatpush1.bf16.msra.mxu0 %v280
  %300 = vmatprep.subr.bf16.mxu0 0
  %301 = vmatpush1.bf16.msra.mxu0 %v279
  %302 = vmatprep.subr.bf16.mxu0 0
  %303 = vmatpush2.bf16.msra.mxu0 0
  %304 = vmatprep.subr.bf16.mxu0 0
  %305 = vmatpush2.bf16.msra.mxu0 0
  %306 = vmatprep.subr.bf16.mxu0 0
  %307 = vmatpush2.bf16.msra.mxu0 0
  %308 = vmatprep.subr.bf16.mxu0 0
  %309 = vmatpush2.bf16.msra.mxu0 0
  %310 = vmatprep.subr.bf16.mxu0 0
  %311 = vmatpush2.bf16.msra.mxu0 0
  %312 = vmatprep.subr.bf16.mxu0 0
  %313 = vmatpush2.bf16.msra.mxu0 0
  %314 = vmatprep.subr.bf16.mxu0 0
  %315 = vmatpush2.bf16.msra.mxu0 0
  %316 = vmatprep.subr.bf16.mxu0 0
  %317 = vmatpush2.bf16.msra.mxu0 0
  %318 = vmatprep.mubr.bf16.mxu0 0
  %319 = vmatmul.mubr.bf16.gmra.mxu0 %v284
  %v320 = vpop.f32.mrf.mxu0
  %v321 = vadd.f32 %v260, %v320
  %v322 = vpop.f32.mrf.mxu0
  %v323 = vpop.f32.mrf.mxu0
  %v324 = vadd.f32 %v263, %v323
  %v325 = vpop.f32.mrf.mxu0
  %326 = vdwg.mxu0
  %v327 = vld [vmem:[%s9] sm:$0x1]
  %v329 = vlaneseq
  %v330 = vshrl.u32 %v329, 7
  %v331 = vsub.s32 0, %v330
  %v332 = vrot.slane %v327, %v331
  %v334 = vadd.f32 %v321, %v332
  %v335 = vadd.f32 %v324, %v332
  %v336 = vmax.f32 %v334, 0.0
  %v337 = vmax.f32 %v335, 0.0
  %v338 = vld [vmem:[%s10] sm:$0x1]
  %v339 = vpack.c.bf16 %v192, %v191
  %v340 = vld [vmem:[%s11] sm:$0x1]
  %v341 = vpack.c.bf16 %v337, %v336
  %v343 = vsel %vm76, %v340, 0
  %v346 = vsel %vm76, %v341, 0
  %348 = vmatprep.subr.bf16.mxu0 0
  %349 = vmatpush1.bf16.xpose.msra.mxu0 0
  %350 = vmatprep.subr.bf16.mxu0 0
  %351 = vmatpush1.bf16.xpose.msra.mxu0 0
  %352 = vmatprep.subr.bf16.mxu0 0
  %353 = vmatpush1.bf16.xpose.msra.mxu0 0
  %354 = vmatprep.subr.bf16.mxu0 0
  %355 = vmatpush1.bf16.xpose.msra.mxu0 0
  %356 = vmatprep.subr.bf16.mxu0 0
  %357 = vmatpush1.bf16.xpose.msra.mxu0 0
  %358 = vmatprep.subr.bf16.mxu0 0
  %359 = vmatpush1.bf16.xpose.msra.mxu0 0
  %360 = vmatprep.subr.bf16.mxu0 0
  %361 = vmatpush1.bf16.xpose.msra.mxu0 0
  %362 = vmatprep.subr.bf16.mxu0 0
  %363 = vmatpush1.bf16.xpose.msra.mxu0 %v346
  %364 = vmatprep.subr.bf16.mxu0 0
  %365 = vmatpush2.bf16.xpose.msra.mxu0 0
  %366 = vmatprep.subr.bf16.mxu0 0
  %367 = vmatpush2.bf16.xpose.msra.mxu0 0
  %368 = vmatprep.subr.bf16.mxu0 0
  %369 = vmatpush2.bf16.xpose.msra.mxu0 0
  %370 = vmatprep.subr.bf16.mxu0 0
  %371 = vmatpush2.bf16.xpose.msra.mxu0 0
  %372 = vmatprep.subr.bf16.mxu0 0
  %373 = vmatpush2.bf16.xpose.msra.mxu0 0
  %374 = vmatprep.subr.bf16.mxu0 0
  %375 = vmatpush2.bf16.xpose.msra.mxu0 0
  %376 = vmatprep.subr.bf16.mxu0 0
  %377 = vmatpush2.bf16.xpose.msra.mxu0 0
  %378 = vmatprep.subr.bf16.mxu0 0
  %379 = vmatpush2.bf16.xpose.msra.mxu0 0
  %380 = vmatprep.mubr.bf16.mxu0 0
  %381 = vmatmul.mubr.bf16.gmra.mxu0 %v343
  %v382 = vpop.f32.mrf.mxu0
  %v383 = vadd.f32 0.0, %v382
  %v384 = vpop.f32.mrf.mxu0
  %v385 = vpop.f32.mrf.mxu0
  %v386 = vpop.f32.mrf.mxu0
  %387 = vdwg.mxu0
  %v389 = vsel %vm76, %v338, 0
  %v392 = vsel %vm76, %v339, 0
  %394 = vmatprep.subr.bf16.mxu0 0
  %395 = vmatpush1.bf16.xpose.msra.mxu0 0
  %396 = vmatprep.subr.bf16.mxu0 0
  %397 = vmatpush1.bf16.xpose.msra.mxu0 0
  %398 = vmatprep.subr.bf16.mxu0 0
  %399 = vmatpush1.bf16.xpose.msra.mxu0 0
  %400 = vmatprep.subr.bf16.mxu0 0
  %401 = vmatpush1.bf16.xpose.msra.mxu0 0
  %402 = vmatprep.subr.bf16.mxu0 0
  %403 = vmatpush1.bf16.xpose.msra.mxu0 0
  %404 = vmatprep.subr.bf16.mxu0 0
  %405 = vmatpush1.bf16.xpose.msra.mxu0 0
  %406 = vmatprep.subr.bf16.mxu0 0
  %407 = vmatpush1.bf16.xpose.msra.mxu0 0
  %408 = vmatprep.subr.bf16.mxu0 0
  %409 = vmatpush1.bf16.xpose.msra.mxu0 %v392
  %410 = vmatprep.subr.bf16.mxu0 0
  %411 = vmatpush2.bf16.xpose.msra.mxu0 0
  %412 = vmatprep.subr.bf16.mxu0 0
  %413 = vmatpush2.bf16.xpose.msra.mxu0 0
  %414 = vmatprep.subr.bf16.mxu0 0
  %415 = vmatpush2.bf16.xpose.msra.mxu0 0
  %416 = vmatprep.subr.bf16.mxu0 0
  %417 = vmatpush2.bf16.xpose.msra.mxu0 0
  %418 = vmatprep.subr.bf16.mxu0 0
  %419 = vmatpush2.bf16.xpose.msra.mxu0 0
  %420 = vmatprep.subr.bf16.mxu0 0
  %421 = vmatpush2.bf16.xpose.msra.mxu0 0
  %422 = vmatprep.subr.bf16.mxu0 0
  %423 = vmatpush2.bf16.xpose.msra.mxu0 0
  %424 = vmatprep.subr.bf16.mxu0 0
  %425 = vmatpush2.bf16.xpose.msra.mxu0 0
  %426 = vmatprep.mubr.bf16.mxu0 0
  %427 = vmatmul.mubr.bf16.gmra.mxu0 %v389
  %v428 = vpop.f32.mrf.mxu0
  %v429 = vadd.f32 %v383, %v428
  %v430 = vpop.f32.mrf.mxu0
  %v431 = vpop.f32.mrf.mxu0
  %v432 = vpop.f32.mrf.mxu0
  %433 = vdwg.mxu0
  %v434 = vld [vmem:[#allocation2] sm:$0x1]
  %436 = vset.pattern.permute.xlu0 0
  %437 = vperm.xlu0 %436, %v434
  %v438 = vpop.permute.xlu0 %437
  %v440 = vlaneseq
  %v441 = vshrl.u32 %v440, 7
  %v442 = vsub.s32 0, %v441
  %v443 = vrot.slane %v438, %v442
  %v444 = vadd.f32 %v429, %v443
  %v445 = vxor.u32 %v444, 2147483648
  %v446 = vmul.f32 %v445, 1.442695
  %v447 = vpow.pop %v446
  %v448 = vadd.f32 %v447, 1.0
  %v449 = vrcp.pop %v448
  %v450 = vmul.f32 1.0, %v449
  %vm451 = vcmask 122880
  %452 = vst.msk [vmem:[%s13] sm:$0x1] %vm451, %v450
  // Predicated region
  $region54: #{_lambda_.11} parent=0 // pred_check
    _
  $region55: #{_lambda_.11} parent=0 // pred_check_branch
    %454 = sbr.rel (0) target = $region57
  $region56: #{_lambda_.11} parent=0 // pred_region
    _
  $region57: #{_lambda_.11} parent=0 // pred_fallthru
    _
  // Predicated region
  $region58: #{_lambda_.11} parent=0 // pred_check
    _
  $region59: #{_lambda_.11} parent=0 // pred_check_branch
    %456 = sbr.rel (0) target = $region61
  $region60: #{_lambda_.11} parent=0 // pred_region
    _
  $region61: #{_lambda_.11} parent=0 // pred_fallthru
    _

</llo_original>
